<compile_context>
chip_gen: v6e
topology: v6e:2x2x1
jax: 0.10.0
libtpu: 0.0.40
codegen_flags: <defaults>
</compile_context>

<pallas_src>
import jax
import jax.numpy as jnp
from jax import lax
from jax.experimental import pallas as pl
from jax.experimental.pallas import tpu as pltpu


# ----------------------------- helpers -------------------------------------- #
def _round_up(n, m):
    return ((n + m - 1) // m) * m


def _vmem_limit_bytes():
    # Derive the scoped-VMEM budget from the hardware (v7x: 64 MiB/TC,
    # v5e/v6e: 128 MiB), leaving headroom for Mosaic internal scratch and the
    # pipeline's double buffers.
    try:
        cap = int(pltpu.get_tpu_info().vmem_capacity_bytes)
    except Exception:
        cap = 64 * 1024 * 1024
    return max(32 * 1024 * 1024, cap - 16 * 1024 * 1024)


# ----------------------------- Pallas kernel -------------------------------- #
def _interaction_kernel(idx_kj_ref,                         # SMEM (scalar prefetch)
                        x_ref, rbf_ref, sbf_ref, idx_ji_ref,
                        wjikj_ref, bjikj_ref, wrbf_ref, wsbf_ref, wbil_ref,
                        bw_ref, bb_ref, wlin_ref, blin_ref, aw_ref, ab_ref,
                        out_ref,
                        xji_scr, xkj_scr, scat_scr, xg_scr, outer_scr):
    f32 = jnp.float32
    bf16 = jnp.bfloat16
    it = pl.program_id(0)
    n_t = pl.num_programs(0)
    Ep, Hp = xji_scr.shape
    TT = xg_scr.shape[0]
    NB = wsbf_ref.shape[1]

    def silu(v):
        # exp and reciprocal both routed to the EUP (approx reciprocal).
        return v * pl.reciprocal(1.0 + jnp.exp(-v), approx=True)

    # ---------------- edge phase: run once at the first triplet tile --------
    @pl.when(it == 0)
    def _():
        xb = x_ref[...].astype(bf16)
        rbf_h = jnp.dot(rbf_ref[...].astype(bf16), wrbf_ref[...],
                        preferred_element_type=f32)                      # [Ep, Hp]
        # fused lin_ji | lin_kj : one [Hp, 2Hp] bf16 matmul, split at lane 128.
        h2 = silu(jnp.dot(xb, wjikj_ref[...],
                          preferred_element_type=f32) + bjikj_ref[...])  # [Ep, 2Hp]
        xji_scr[...] = h2[:, :Hp]
        xkj_scr[...] = h2[:, Hp:] * rbf_h
        scat_scr[...] = jnp.zeros_like(scat_scr)

    # ---------------- triplet phase: gather -> bilinear -> scatter-add ------
    sbf_p = jnp.dot(sbf_ref[...], wsbf_ref[...],
                    preferred_element_type=f32)                          # [TT, NB]

    # Index-driven gather of x_kj rows (cost O(TT*Hp), independent of #edges).
    base = it * TT

    def _gather_row(t, carry):
        e = idx_kj_ref[base + t]                       # in-range (clamped in wrapper)
        xg_scr[pl.ds(t, 1), :] = xkj_scr[pl.ds(e, 1), :]
        return carry

    lax.fori_loop(0, TT, _gather_row, 0)
    xg = xg_scr[...]                                                     # [TT, Hp] f32

    # outer[w, j*Hp + l] = sbf_p[w, j] * xg[w, l], assembled via static
    # 128-lane slice stores into a bf16 scratch (no concat / reshape relayout),
    # then contracted in ONE fused K = NB*Hp matmul: wbil[(j,l), i] = W[i,j,l].
    for j in range(NB):
        outer_scr[:, j * Hp:(j + 1) * Hp] = (xg * sbf_p[:, j:j + 1]).astype(bf16)
    trip = jnp.dot(outer_scr[...], wbil_ref[...],
                   preferred_element_type=f32)                           # [TT, Hp]

    # Scatter-add over idx_ji as a one-hot matmul (TPU has no in-kernel dynamic
    # scatter-add); 0/1 matrix is exact in bf16, accumulation stays f32 in VMEM.
    row_e = lax.broadcasted_iota(jnp.int32, (Ep, TT), 0)
    s_ji = (idx_ji_ref[...] == row_e).astype(f32).astype(bf16)           # [Ep, TT]
    scat_scr[...] += jnp.dot(s_ji, trip.astype(bf16),
                             preferred_element_type=f32)

    # ---------------- post phase: residual MLPs + skip, at the last tile ----
    @pl.when(it == n_t - 1)
    def _():
        h = xji_scr[...] + scat_scr[...]

        n_before = bw_ref.shape[0] // 2
        for i in range(n_before):
            t = silu(jnp.dot(h.astype(bf16), bw_ref[2 * i],
                             preferred_element_type=f32) + bb_ref[2 * i])
            t = silu(jnp.dot(t.astype(bf16), bw_ref[2 * i + 1],
                             preferred_element_type=f32) + bb_ref[2 * i + 1])
            h = h + t

        h = silu(jnp.dot(h.astype(bf16), wlin_ref[...],
                         preferred_element_type=f32) + blin_ref[...]) + x_ref[...]

        n_after = aw_ref.shape[0] // 2
        for i in range(n_after):
            t = silu(jnp.dot(h.astype(bf16), aw_ref[2 * i],
                             preferred_element_type=f32) + ab_ref[2 * i])
            t = silu(jnp.dot(t.astype(bf16), aw_ref[2 * i + 1],
                             preferred_element_type=f32) + ab_ref[2 * i + 1])
            h = h + t

        out_ref[...] = h.astype(out_ref.dtype)


# ------------------------------- wrapper ------------------------------------ #
def interaction_block(x, rbf, sbf, idx_kj, idx_ji, params, *, max_tt=512):
    f32, bf16 = jnp.float32, jnp.bfloat16
    assert max_tt % 128 == 0
    E, H = x.shape
    T, S = sbf.shape
    NR = rbf.shape[1]
    NB = params["wsbf"].shape[1]
    n_before2 = params["before_w"].shape[0]
    n_after2 = params["after_w"].shape[0]

    # lane-dense padded sizes (feature dims NR / S are NOT padded any more)
    Hp = _round_up(H, 128)
    Ep = _round_up(E, 8)
    if T <= max_tt:                     # single triplet tile (full-extent block)
        TT = _round_up(max(T, 8), 8)
        Tp = TT
    else:                               # stream max_tt-row triplet tiles
        TT = max_tt
        Tp = _round_up(T, TT)
    n_tiles = Tp // TT

    def pad2(a, r, c, dtype=f32):
        a = jnp.asarray(a, f32)
        out = jnp.zeros((r, c), f32).at[:a.shape[0], :a.shape[1]].set(a)
        return out.astype(dtype)

    def pad_stack(w, r, c, dtype):      # [n, h, h] -> [n, r, c]
        w = jnp.asarray(w, f32)
        out = jnp.zeros((w.shape[0], r, c), f32).at[:, :w.shape[1], :w.shape[2]].set(w)
        return out.astype(dtype)

    def pad_bias_stack(b, c):           # [n, h] -> [n, 1, c]  (kept f32)
        b = jnp.asarray(b, f32)
        return jnp.zeros((b.shape[0], 1, c), f32).at[:, 0, :b.shape[1]].set(b)

    # ---- inputs --------------------------------------------------------------
    x_pad = pad2(x, Ep, Hp)                                   # f32, resident
    rbf_pad = pad2(rbf, Ep, NR)                               # f32, no lane padding
    sbf_pad = pad2(sbf, Tp, S, dtype=bf16)                    # bf16, streamed
    # idx_kj is used by a raw VMEM row read (no bounds check) -> clamp in-range.
    # Padded / bad triplets are neutralized by zero sbf rows and idx_ji = -1.
    kj = jnp.zeros((Tp,), jnp.int32).at[:T].set(
        jnp.clip(idx_kj.astype(jnp.int32), 0, E - 1))
    ji = jnp.full((1, Tp), -1, jnp.int32).at[0, :T].set(idx_ji.astype(jnp.int32))

    # ---- weights: pre-transposed [in, out], lane-padded, bf16, fused ---------
    wrbf = pad2(params["wrbf"], NR, Hp, dtype=bf16)
    wsbf = pad2(params["wsbf"], S, NB, dtype=bf16)
    w_jikj = jnp.concatenate([pad2(params["wji"], Hp, Hp, dtype=bf16),
                              pad2(params["wkj"], Hp, Hp, dtype=bf16)], axis=1)
    b_jikj = jnp.concatenate([pad2(params["bji"][None, :], 1, Hp),
                              pad2(params["bkj"][None, :], 1, Hp)], axis=1)   # f32
    # W[i, j, l] -> flat [(j, l), i] padded to [NB*Hp, Hp], bf16
    W = jnp.asarray(params["W"], f32)                                          # [H, NB, H]
    Wf = jnp.zeros((NB, Hp, Hp), f32).at[:, :H, :H].set(jnp.transpose(W, (1, 2, 0)))
    wbil = Wf.reshape(NB * Hp, Hp).astype(bf16)

    bw = pad_stack(params["before_w"], Hp, Hp, bf16)
    bb = pad_bias_stack(params["before_b"], Hp)
    wlin = pad2(params["wlin"], Hp, Hp, dtype=bf16)
    blin = pad2(params["blin"][None, :], 1, Hp)
    aw = pad_stack(params["after_w"], Hp, Hp, bf16)
    ab = pad_bias_stack(params["after_b"], Hp)

    # ---- VMEM budget: generation-aware limit + whole-edge-resident guard -----
    vmem_limit = _vmem_limit_bytes()
    edge_io = Ep * Hp * 4 * 2                                   # x + out slabs
    edge_scratch = Ep * Hp * 4 * 3                              # xji / xkj / scat
    weight_bytes = 2 * Hp * Hp * (3 + NB + n_before2 + n_after2)
    tile_bytes = TT * (NB * Hp * 2 + Hp * 4 + S * 2 + 4)
    approx_vmem = 2 * edge_io + edge_scratch + 2 * weight_bytes + 2 * tile_bytes
    if approx_vmem > vmem_limit:
        # TODO(synk): edge-axis tiling (per-edge-tile scatter passes) for graphs
        # that do not fit the whole-edge-resident design, esp. on v7x.
        raise ValueError(
            f"InteractionBlock VMEM footprint ~{approx_vmem / 2**20:.1f} MiB exceeds "
            f"budget {vmem_limit / 2**20:.1f} MiB; edge-axis tiling not implemented.")

    c0 = lambda it, *_: (0, 0)
    c000 = lambda it, *_: (0, 0, 0)
    in_specs = [
        pl.BlockSpec((Ep, Hp), c0),                         # x (resident)
        pl.BlockSpec((Ep, NR), c0),                         # rbf (resident, full lanes)
        pl.BlockSpec((TT, S), lambda it, *_: (it, 0)),      # sbf tile (streamed, bf16)
        pl.BlockSpec((1, TT), lambda it, *_: (0, it)),      # idx_ji tile
        pl.BlockSpec((Hp, 2 * Hp), c0),                     # fused w_ji | w_kj (bf16)
        pl.BlockSpec((1, 2 * Hp), c0),                      # fused b_ji | b_kj
        pl.BlockSpec((NR, Hp), c0),                         # w_rbf (bf16)
        pl.BlockSpec((S, NB), c0),                          # w_sbf (bf16)
        pl.BlockSpec((NB * Hp, Hp), c0),                    # W flattened [(j,l), i]
        pl.BlockSpec((n_before2, Hp, Hp), c000),            # before-skip weights
        pl.BlockSpec((n_before2, 1, Hp), c000),             # before-skip biases
        pl.BlockSpec((Hp, Hp), c0),                         # w_lin (skip)
        pl.BlockSpec((1, Hp), c0),                          # b_lin
        pl.BlockSpec((n_after2, Hp, Hp), c000),             # after-skip weights
        pl.BlockSpec((n_after2, 1, Hp), c000),              # after-skip biases
    ]
    out_spec = pl.BlockSpec((Ep, Hp), c0)

    out = pl.pallas_call(
        _interaction_kernel,
        out_shape=jax.ShapeDtypeStruct((Ep, Hp), x.dtype),
        grid_spec=pltpu.PrefetchScalarGridSpec(
            num_scalar_prefetch=1,                          # idx_kj -> SMEM
            grid=(n_tiles,),
            in_specs=in_specs,
            out_specs=out_spec,
            scratch_shapes=[pltpu.VMEM((Ep, Hp), f32),          # x_ji
                            pltpu.VMEM((Ep, Hp), f32),          # x_kj * rbf
                            pltpu.VMEM((Ep, Hp), f32),          # scatter accumulator
                            pltpu.VMEM((TT, Hp), f32),          # gathered x_kj rows
                            pltpu.VMEM((TT, NB * Hp), bf16)],   # bilinear outer prod
        ),
        compiler_params=pltpu.CompilerParams(
            dimension_semantics=("arbitrary",),             # triplet axis accumulates
            vmem_limit_bytes=vmem_limit,
        ),
    )(kj, x_pad, rbf_pad, sbf_pad, ji, w_jikj, b_jikj, wrbf, wsbf, wbil,
      bw, bb, wlin, blin, aw, ab)
    return out[:E, :H]


# --------------------------- pure-JAX reference ------------------------------ #
def interaction_block_ref(x, rbf, sbf, idx_kj, idx_ji, p):
    silu = jax.nn.silu
    rbf_h = rbf @ p["wrbf"]
    sbf_h = sbf @ p["wsbf"]
    x_ji = silu(x @ p["wji"] + p["bji"])
    x_kj = silu(x @ p["wkj"] + p["bkj"]) * rbf_h
    t = jnp.einsum("wj,wl,ijl->wi", sbf_h, x_kj[idx_kj], p["W"])
    h = x_ji + jnp.zeros_like(x).at[idx_ji].add(t)
    bw, bb = p["before_w"], p["before_b"]
    for i in range(bw.shape[0] // 2):
        u = silu(h @ bw[2 * i] + bb[2 * i])
        u = silu(u @ bw[2 * i + 1] + bb[2 * i + 1])
        h = h + u
    h = silu(h @ p["wlin"] + p["blin"]) + x
    aw, ab = p["after_w"], p["after_b"]
    for i in range(aw.shape[0] // 2):
        u = silu(h @ aw[2 * i] + ab[2 * i])
        u = silu(u @ aw[2 * i + 1] + ab[2 * i + 1])
        h = h + u
    return h


# ------------------------------ param setup ---------------------------------- #
def make_params(key, H, NB, NS, NR, n_before, n_after):
    # Deterministic synthetic init (glorot_orthogonal replaced by scaled normal).
    ks = iter(jax.random.split(key, 64))

    def lin_w(fan_in, fan_out):
        return jax.random.normal(next(ks), (fan_in, fan_out), jnp.float32) / jnp.sqrt(
            jnp.float32(fan_in))

    def bias(n):
        return jax.random.normal(next(ks), (n,), jnp.float32) * 0.01

    return {
        "wrbf": lin_w(NR, H),
        "wsbf": lin_w(NS * NR, NB),
        "wji": lin_w(H, H), "bji": jnp.zeros((H,), jnp.float32),
        "wkj": lin_w(H, H), "bkj": jnp.zeros((H,), jnp.float32),
        "W": jax.random.normal(next(ks), (H, NB, H), jnp.float32) * (2.0 / H),
        "before_w": jnp.stack([lin_w(H, H) for _ in range(2 * n_before)]),
        "before_b": jnp.stack([bias(H) for _ in range(2 * n_before)]),
        "wlin": lin_w(H, H), "blin": jnp.zeros((H,), jnp.float32),
        "after_w": jnp.stack([lin_w(H, H) for _ in range(2 * n_after)]),
        "after_b": jnp.stack([bias(H) for _ in range(2 * n_after)]),
    }


if __name__ == "__main__":
    # Small shapes consistent with DimeNet's InteractionBlock.
    E, T = 16, 32                 # num edges, num triplets
    H, NB, NS, NR = 32, 8, 7, 6   # hidden, bilinear, spherical, radial
    N_BEFORE, N_AFTER = 1, 2

    key = jax.random.PRNGKey(0)
    k_x, k_rbf, k_sbf, k_kj, k_ji, k_p = jax.random.split(key, 6)

    x = jax.random.normal(k_x, (E, H), jnp.float32)
    rbf = jax.random.normal(k_rbf, (E, NR), jnp.float32)
    sbf = jax.random.normal(k_sbf, (T, NS * NR), jnp.float32)
    idx_kj = jax.random.randint(k_kj, (T,), 0, E, dtype=jnp.int32)
    idx_ji = jax.random.randint(k_ji, (T,), 0, E, dtype=jnp.int32)

    params = make_params(k_p, H, NB, NS, NR, N_BEFORE, N_AFTER)

    out = jax.block_until_ready(interaction_block(x, rbf, sbf, idx_kj, idx_ji, params))
    ref = interaction_block_ref(x, rbf, sbf, idx_kj, idx_ji, params)

    assert out.shape == (E, H) and out.dtype == jnp.float32
    # Tolerance vs the exact-f32 reference: matmul operands are bf16 (f32
    # accumulation) and SiLU uses the EUP approximate reciprocal; structural
    # errors (wrong gather/scatter/fusion) would be O(1), far above this.
    assert jnp.allclose(out, ref, rtol=5e-2, atol=5e-2), "mismatch vs reference"

    print("KERNEL_OK")
</pallas_src>

<mosaic_0001>
module attributes {stable_mosaic.version = 11 : i64} {
  func.func @_interaction_kernel(%arg0: i32, %arg1: memref<32xi32, #tpu.memory_space<smem>>, %arg2: memref<16x128xf32, #tpu.memory_space<vmem>>, %arg3: memref<16x6xf32, #tpu.memory_space<vmem>>, %arg4: memref<32x42xbf16, #tpu.memory_space<vmem>>, %arg5: memref<1x32xi32, #tpu.memory_space<vmem>>, %arg6: memref<128x256xbf16, #tpu.memory_space<vmem>>, %arg7: memref<1x256xf32, #tpu.memory_space<vmem>>, %arg8: memref<6x128xbf16, #tpu.memory_space<vmem>>, %arg9: memref<42x8xbf16, #tpu.memory_space<vmem>>, %arg10: memref<1024x128xbf16, #tpu.memory_space<vmem>>, %arg11: memref<2x128x128xbf16, #tpu.memory_space<vmem>>, %arg12: memref<2x1x128xf32, #tpu.memory_space<vmem>>, %arg13: memref<128x128xbf16, #tpu.memory_space<vmem>>, %arg14: memref<1x128xf32, #tpu.memory_space<vmem>>, %arg15: memref<4x128x128xbf16, #tpu.memory_space<vmem>>, %arg16: memref<4x1x128xf32, #tpu.memory_space<vmem>>, %arg17: memref<16x128xf32, #tpu.memory_space<vmem>>, %arg18: memref<16x128xf32, #tpu.memory_space<vmem>>, %arg19: memref<16x128xf32, #tpu.memory_space<vmem>>, %arg20: memref<16x128xf32, #tpu.memory_space<vmem>>, %arg21: memref<32x128xf32, #tpu.memory_space<vmem>>, %arg22: memref<32x1024xbf16, #tpu.memory_space<vmem>>) attributes {dimension_semantics = [#tpu.dimension_semantics<arbitrary>], iteration_bounds = array<i64: 1>, scalar_prefetch = 1 : i64, scratch_operands = 5 : i64, tpu.core_type = #tpu.core_type<tc>, window_params = [{pipeline_mode = #tpu.pipeline_mode<synchronous>, transform_indices = @transform_0, window_bounds = array<i64: 16, 128>}, {pipeline_mode = #tpu.pipeline_mode<synchronous>, transform_indices = @transform_1, window_bounds = array<i64: 16, 6>}, {transform_indices = @transform_2, window_bounds = array<i64: 32, 42>}, {transform_indices = @transform_3, window_bounds = array<i64: 1, 32>}, {pipeline_mode = #tpu.pipeline_mode<synchronous>, transform_indices = @transform_4, window_bounds = array<i64: 128, 256>}, {pipeline_mode = #tpu.pipeline_mode<synchronous>, transform_indices = @transform_5, window_bounds = array<i64: 1, 256>}, {pipeline_mode = #tpu.pipeline_mode<synchronous>, transform_indices = @transform_6, window_bounds = array<i64: 6, 128>}, {pipeline_mode = #tpu.pipeline_mode<synchronous>, transform_indices = @transform_7, window_bounds = array<i64: 42, 8>}, {pipeline_mode = #tpu.pipeline_mode<synchronous>, transform_indices = @transform_8, window_bounds = array<i64: 1024, 128>}, {pipeline_mode = #tpu.pipeline_mode<synchronous>, transform_indices = @transform_9, window_bounds = array<i64: 2, 128, 128>}, {pipeline_mode = #tpu.pipeline_mode<synchronous>, transform_indices = @transform_10, window_bounds = array<i64: 2, 1, 128>}, {pipeline_mode = #tpu.pipeline_mode<synchronous>, transform_indices = @transform_11, window_bounds = array<i64: 128, 128>}, {pipeline_mode = #tpu.pipeline_mode<synchronous>, transform_indices = @transform_12, window_bounds = array<i64: 1, 128>}, {pipeline_mode = #tpu.pipeline_mode<synchronous>, transform_indices = @transform_13, window_bounds = array<i64: 4, 128, 128>}, {pipeline_mode = #tpu.pipeline_mode<synchronous>, transform_indices = @transform_14, window_bounds = array<i64: 4, 1, 128>}, {pipeline_mode = #tpu.pipeline_mode<synchronous>, transform_indices = @transform_15, window_bounds = array<i64: 16, 128>}]} {
    %c0_i32 = arith.constant 0 : i32
    %0 = arith.cmpi eq, %arg0, %c0_i32 : i32
    %1 = arith.extui %0 : i1 to i32
    %c0_i32_0 = arith.constant 0 : i32
    %2 = arith.cmpi ne, %1, %c0_i32_0 : i32
    scf.if %2 {
      %c0_32 = arith.constant 0 : index
      %c0_33 = arith.constant 0 : index
      %67 = vector.load %arg2[%c0_32, %c0_33] : memref<16x128xf32, #tpu.memory_space<vmem>>, vector<16x128xf32>
      %68 = arith.truncf %67 : vector<16x128xf32> to vector<16x128xbf16>
      %c0_34 = arith.constant 0 : index
      %c0_35 = arith.constant 0 : index
      %69 = vector.load %arg3[%c0_34, %c0_35] : memref<16x6xf32, #tpu.memory_space<vmem>>, vector<16x6xf32>
      %70 = arith.truncf %69 : vector<16x6xf32> to vector<16x6xbf16>
      %c0_36 = arith.constant 0 : index
      %c0_37 = arith.constant 0 : index
      %71 = vector.load %arg8[%c0_36, %c0_37] : memref<6x128xbf16, #tpu.memory_space<vmem>>, vector<6x128xbf16>
      %cst_38 = arith.constant dense<0.000000e+00> : vector<16x128xf32>
      %72 = tpu.matmul %70, %71, %cst_38 {dimension_numbers = #tpu.dot_dimension_numbers<[1], [0], [0], [1], [0, 0, 1, 1], [], []>} : vector<16x6xbf16>, vector<6x128xbf16>, vector<16x128xf32> -> vector<16x128xf32>
      %c0_39 = arith.constant 0 : index
      %c0_40 = arith.constant 0 : index
      %73 = vector.load %arg6[%c0_39, %c0_40] : memref<128x256xbf16, #tpu.memory_space<vmem>>, vector<128x256xbf16>
      %cst_41 = arith.constant dense<0.000000e+00> : vector<16x256xf32>
      %74 = tpu.matmul %68, %73, %cst_41 {dimension_numbers = #tpu.dot_dimension_numbers<[1], [0], [0], [1], [0, 0, 1, 1], [], []>} : vector<16x128xbf16>, vector<128x256xbf16>, vector<16x256xf32> -> vector<16x256xf32>
      %c0_42 = arith.constant 0 : index
      %c0_43 = arith.constant 0 : index
      %75 = vector.load %arg7[%c0_42, %c0_43] : memref<1x256xf32, #tpu.memory_space<vmem>>, vector<1x256xf32>
      %76 = vector.broadcast %75 : vector<1x256xf32> to vector<16x256xf32>
      %77 = arith.addf %74, %76 : vector<16x256xf32>
      %cst_44 = arith.constant 0.000000e+00 : f32
      %78 = vector.broadcast %cst_44 : f32 to vector<16x256xf32>
      %79 = arith.subf %78, %77 : vector<16x256xf32>
      %80 = math.exp %79 : vector<16x256xf32>
      %cst_45 = arith.constant 1.000000e+00 : f32
      %81 = vector.broadcast %cst_45 : f32 to vector<16x256xf32>
      %82 = arith.addf %81, %80 : vector<16x256xf32>
      %83 = tpu.reciprocal %82 {approx = true} : vector<16x256xf32> -> vector<16x256xf32>
      %84 = arith.mulf %77, %83 : vector<16x256xf32>
      %85 = vector.extract_strided_slice %84 {offsets = [0, 0], sizes = [16, 128], strides = [1, 1]} : vector<16x256xf32> to vector<16x128xf32>
      %c0_46 = arith.constant 0 : index
      %c0_47 = arith.constant 0 : index
      %86 = vector.load %arg18[%c0_46, %c0_47] : memref<16x128xf32, #tpu.memory_space<vmem>>, vector<16x128xf32>
      tpu.vector_store %arg18[%c0_46, %c0_47], %85 {strides = array<i32>} : memref<16x128xf32, #tpu.memory_space<vmem>>, vector<16x128xf32>,
      %87 = vector.extract_strided_slice %84 {offsets = [0, 128], sizes = [16, 128], strides = [1, 1]} : vector<16x256xf32> to vector<16x128xf32>
      %88 = arith.mulf %87, %72 : vector<16x128xf32>
      %c0_48 = arith.constant 0 : index
      %c0_49 = arith.constant 0 : index
      %89 = vector.load %arg19[%c0_48, %c0_49] : memref<16x128xf32, #tpu.memory_space<vmem>>, vector<16x128xf32>
      tpu.vector_store %arg19[%c0_48, %c0_49], %88 {strides = array<i32>} : memref<16x128xf32, #tpu.memory_space<vmem>>, vector<16x128xf32>,
      %cst_50 = arith.constant 0.000000e+00 : f32
      %90 = vector.broadcast %cst_50 : f32 to vector<16x128xf32>
      %c0_51 = arith.constant 0 : index
      %c0_52 = arith.constant 0 : index
      %91 = vector.load %arg20[%c0_51, %c0_52] : memref<16x128xf32, #tpu.memory_space<vmem>>, vector<16x128xf32>
      tpu.vector_store %arg20[%c0_51, %c0_52], %90 {strides = array<i32>} : memref<16x128xf32, #tpu.memory_space<vmem>>, vector<16x128xf32>,
    } else {
    }
    %c0 = arith.constant 0 : index
    %c0_1 = arith.constant 0 : index
    %3 = vector.load %arg4[%c0, %c0_1] : memref<32x42xbf16, #tpu.memory_space<vmem>>, vector<32x42xbf16>
    %c0_2 = arith.constant 0 : index
    %c0_3 = arith.constant 0 : index
    %4 = vector.load %arg9[%c0_2, %c0_3] : memref<42x8xbf16, #tpu.memory_space<vmem>>, vector<42x8xbf16>
    %cst = arith.constant dense<0.000000e+00> : vector<32x8xf32>
    %5 = tpu.matmul %3, %4, %cst {dimension_numbers = #tpu.dot_dimension_numbers<[1], [0], [0], [1], [0, 0, 1, 1], [], []>} : vector<32x42xbf16>, vector<42x8xbf16>, vector<32x8xf32> -> vector<32x8xf32>
    %c32_i32 = arith.constant 32 : i32
    %6 = arith.muli %arg0, %c32_i32 : i32
    %c0_i32_4 = arith.constant 0 : i32
    %c32_i32_5 = arith.constant 32 : i32
    %7 = arith.addi %c0_i32_4, %c32_i32_5 : i32
    %c1_i32 = arith.constant 1 : i32
    scf.for %arg23 = %c0_i32_4 to %7 step %c1_i32  : i32 {
      %67 = arith.addi %6, %arg23 : i32
      %68 = arith.index_cast %67 : i32 to index
      %69 = memref.load %arg1[%68] : memref<32xi32, #tpu.memory_space<smem>>
      %70 = arith.index_cast %69 : i32 to index
      %c0_32 = arith.constant 0 : index
      %71 = vector.load %arg19[%70, %c0_32] : memref<16x128xf32, #tpu.memory_space<vmem>>, vector<1x128xf32>
      %72 = arith.index_cast %arg23 : i32 to index
      %c0_33 = arith.constant 0 : index
      %73 = vector.load %arg21[%72, %c0_33] : memref<32x128xf32, #tpu.memory_space<vmem>>, vector<1x128xf32>
      tpu.vector_store %arg21[%72, %c0_33], %71 {strides = array<i32>} : memref<32x128xf32, #tpu.memory_space<vmem>>, vector<1x128xf32>,
    }
    %c32_i32_6 = arith.constant 32 : i32
    %c0_7 = arith.constant 0 : index
    %c0_8 = arith.constant 0 : index
    %8 = vector.load %arg21[%c0_7, %c0_8] : memref<32x128xf32, #tpu.memory_space<vmem>>, vector<32x128xf32>
    %9 = vector.extract_strided_slice %5 {offsets = [0, 0], sizes = [32, 1], strides = [1, 1]} : vector<32x8xf32> to vector<32x1xf32>
    %10 = vector.broadcast %9 : vector<32x1xf32> to vector<32x128xf32>
    %11 = arith.mulf %8, %10 : vector<32x128xf32>
    %12 = arith.truncf %11 : vector<32x128xf32> to vector<32x128xbf16>
    %c0_9 = arith.constant 0 : index
    %c0_10 = arith.constant 0 : index
    %13 = vector.load %arg22[%c0_9, %c0_10] : memref<32x1024xbf16, #tpu.memory_space<vmem>>, vector<32x128xbf16>
    tpu.vector_store %arg22[%c0_9, %c0_10], %12 {strides = array<i32>} : memref<32x1024xbf16, #tpu.memory_space<vmem>>, vector<32x128xbf16>,
    %14 = vector.extract_strided_slice %5 {offsets = [0, 1], sizes = [32, 1], strides = [1, 1]} : vector<32x8xf32> to vector<32x1xf32>
    %15 = vector.broadcast %14 : vector<32x1xf32> to vector<32x128xf32>
    %16 = arith.mulf %8, %15 : vector<32x128xf32>
    %17 = arith.truncf %16 : vector<32x128xf32> to vector<32x128xbf16>
    %c0_11 = arith.constant 0 : index
    %c128 = arith.constant 128 : index
    %18 = vector.load %arg22[%c0_11, %c128] : memref<32x1024xbf16, #tpu.memory_space<vmem>>, vector<32x128xbf16>
    tpu.vector_store %arg22[%c0_11, %c128], %17 {strides = array<i32>} : memref<32x1024xbf16, #tpu.memory_space<vmem>>, vector<32x128xbf16>,
    %19 = vector.extract_strided_slice %5 {offsets = [0, 2], sizes = [32, 1], strides = [1, 1]} : vector<32x8xf32> to vector<32x1xf32>
    %20 = vector.broadcast %19 : vector<32x1xf32> to vector<32x128xf32>
    %21 = arith.mulf %8, %20 : vector<32x128xf32>
    %22 = arith.truncf %21 : vector<32x128xf32> to vector<32x128xbf16>
    %c0_12 = arith.constant 0 : index
    %c256 = arith.constant 256 : index
    %23 = vector.load %arg22[%c0_12, %c256] : memref<32x1024xbf16, #tpu.memory_space<vmem>>, vector<32x128xbf16>
    tpu.vector_store %arg22[%c0_12, %c256], %22 {strides = array<i32>} : memref<32x1024xbf16, #tpu.memory_space<vmem>>, vector<32x128xbf16>,
    %24 = vector.extract_strided_slice %5 {offsets = [0, 3], sizes = [32, 1], strides = [1, 1]} : vector<32x8xf32> to vector<32x1xf32>
    %25 = vector.broadcast %24 : vector<32x1xf32> to vector<32x128xf32>
    %26 = arith.mulf %8, %25 : vector<32x128xf32>
    %27 = arith.truncf %26 : vector<32x128xf32> to vector<32x128xbf16>
    %c0_13 = arith.constant 0 : index
    %c384 = arith.constant 384 : index
    %28 = vector.load %arg22[%c0_13, %c384] : memref<32x1024xbf16, #tpu.memory_space<vmem>>, vector<32x128xbf16>
    tpu.vector_store %arg22[%c0_13, %c384], %27 {strides = array<i32>} : memref<32x1024xbf16, #tpu.memory_space<vmem>>, vector<32x128xbf16>,
    %29 = vector.extract_strided_slice %5 {offsets = [0, 4], sizes = [32, 1], strides = [1, 1]} : vector<32x8xf32> to vector<32x1xf32>
    %30 = vector.broadcast %29 : vector<32x1xf32> to vector<32x128xf32>
    %31 = arith.mulf %8, %30 : vector<32x128xf32>
    %32 = arith.truncf %31 : vector<32x128xf32> to vector<32x128xbf16>
    %c0_14 = arith.constant 0 : index
    %c512 = arith.constant 512 : index
    %33 = vector.load %arg22[%c0_14, %c512] : memref<32x1024xbf16, #tpu.memory_space<vmem>>, vector<32x128xbf16>
    tpu.vector_store %arg22[%c0_14, %c512], %32 {strides = array<i32>} : memref<32x1024xbf16, #tpu.memory_space<vmem>>, vector<32x128xbf16>,
    %34 = vector.extract_strided_slice %5 {offsets = [0, 5], sizes = [32, 1], strides = [1, 1]} : vector<32x8xf32> to vector<32x1xf32>
    %35 = vector.broadcast %34 : vector<32x1xf32> to vector<32x128xf32>
    %36 = arith.mulf %8, %35 : vector<32x128xf32>
    %37 = arith.truncf %36 : vector<32x128xf32> to vector<32x128xbf16>
    %c0_15 = arith.constant 0 : index
    %c640 = arith.constant 640 : index
    %38 = vector.load %arg22[%c0_15, %c640] : memref<32x1024xbf16, #tpu.memory_space<vmem>>, vector<32x128xbf16>
    tpu.vector_store %arg22[%c0_15, %c640], %37 {strides = array<i32>} : memref<32x1024xbf16, #tpu.memory_space<vmem>>, vector<32x128xbf16>,
    %39 = vector.extract_strided_slice %5 {offsets = [0, 6], sizes = [32, 1], strides = [1, 1]} : vector<32x8xf32> to vector<32x1xf32>
    %40 = vector.broadcast %39 : vector<32x1xf32> to vector<32x128xf32>
    %41 = arith.mulf %8, %40 : vector<32x128xf32>
    %42 = arith.truncf %41 : vector<32x128xf32> to vector<32x128xbf16>
    %c0_16 = arith.constant 0 : index
    %c768 = arith.constant 768 : index
    %43 = vector.load %arg22[%c0_16, %c768] : memref<32x1024xbf16, #tpu.memory_space<vmem>>, vector<32x128xbf16>
    tpu.vector_store %arg22[%c0_16, %c768], %42 {strides = array<i32>} : memref<32x1024xbf16, #tpu.memory_space<vmem>>, vector<32x128xbf16>,
    %44 = vector.extract_strided_slice %5 {offsets = [0, 7], sizes = [32, 1], strides = [1, 1]} : vector<32x8xf32> to vector<32x1xf32>
    %45 = vector.broadcast %44 : vector<32x1xf32> to vector<32x128xf32>
    %46 = arith.mulf %8, %45 : vector<32x128xf32>
    %47 = arith.truncf %46 : vector<32x128xf32> to vector<32x128xbf16>
    %c0_17 = arith.constant 0 : index
    %c896 = arith.constant 896 : index
    %48 = vector.load %arg22[%c0_17, %c896] : memref<32x1024xbf16, #tpu.memory_space<vmem>>, vector<32x128xbf16>
    tpu.vector_store %arg22[%c0_17, %c896], %47 {strides = array<i32>} : memref<32x1024xbf16, #tpu.memory_space<vmem>>, vector<32x128xbf16>,
    %c0_18 = arith.constant 0 : index
    %c0_19 = arith.constant 0 : index
    %49 = vector.load %arg22[%c0_18, %c0_19] : memref<32x1024xbf16, #tpu.memory_space<vmem>>, vector<32x1024xbf16>
    %c0_20 = arith.constant 0 : index
    %c0_21 = arith.constant 0 : index
    %50 = vector.load %arg10[%c0_20, %c0_21] : memref<1024x128xbf16, #tpu.memory_space<vmem>>, vector<1024x128xbf16>
    %cst_22 = arith.constant dense<0.000000e+00> : vector<32x128xf32>
    %51 = tpu.matmul %49, %50, %cst_22 {dimension_numbers = #tpu.dot_dimension_numbers<[1], [0], [0], [1], [0, 0, 1, 1], [], []>} : vector<32x1024xbf16>, vector<1024x128xbf16>, vector<32x128xf32> -> vector<32x128xf32>
    %52 = tpu.iota {dimensions = array<i32: 0>} : vector<16x32xi32>
    %c0_23 = arith.constant 0 : index
    %c0_24 = arith.constant 0 : index
    %53 = vector.load %arg5[%c0_23, %c0_24] : memref<1x32xi32, #tpu.memory_space<vmem>>, vector<1x32xi32>
    %54 = vector.broadcast %53 : vector<1x32xi32> to vector<16x32xi32>
    %55 = arith.cmpi eq, %54, %52 : vector<16x32xi32>
    %56 = arith.extui %55 : vector<16x32xi1> to vector<16x32xi32>
    %57 = arith.sitofp %56 : vector<16x32xi32> to vector<16x32xf32>
    %58 = arith.truncf %57 : vector<16x32xf32> to vector<16x32xbf16>
    %c0_25 = arith.constant 0 : index
    %c0_26 = arith.constant 0 : index
    %59 = vector.load %arg20[%c0_25, %c0_26] : memref<16x128xf32, #tpu.memory_space<vmem>>, vector<16x128xf32>
    %60 = arith.truncf %51 : vector<32x128xf32> to vector<32x128xbf16>
    %cst_27 = arith.constant dense<0.000000e+00> : vector<16x128xf32>
    %61 = tpu.matmul %58, %60, %cst_27 {dimension_numbers = #tpu.dot_dimension_numbers<[1], [0], [0], [1], [0, 0, 1, 1], [], []>} : vector<16x32xbf16>, vector<32x128xbf16>, vector<16x128xf32> -> vector<16x128xf32>
    %62 = arith.addf %59, %61 : vector<16x128xf32>
    %c0_28 = arith.constant 0 : index
    %c0_29 = arith.constant 0 : index
    %63 = vector.load %arg20[%c0_28, %c0_29] : memref<16x128xf32, #tpu.memory_space<vmem>>, vector<16x128xf32>
    tpu.vector_store %arg20[%c0_28, %c0_29], %62 {strides = array<i32>} : memref<16x128xf32, #tpu.memory_space<vmem>>, vector<16x128xf32>,
    %c0_i32_30 = arith.constant 0 : i32
    %64 = arith.cmpi eq, %arg0, %c0_i32_30 : i32
    %65 = arith.extui %64 : i1 to i32
    %c0_i32_31 = arith.constant 0 : i32
    %66 = arith.cmpi ne, %65, %c0_i32_31 : i32
    scf.if %66 {
      %c0_32 = arith.constant 0 : index
      %c0_33 = arith.constant 0 : index
      %67 = vector.load %arg18[%c0_32, %c0_33] : memref<16x128xf32, #tpu.memory_space<vmem>>, vector<16x128xf32>
      %c0_34 = arith.constant 0 : index
      %c0_35 = arith.constant 0 : index
      %68 = vector.load %arg20[%c0_34, %c0_35] : memref<16x128xf32, #tpu.memory_space<vmem>>, vector<16x128xf32>
      %69 = arith.addf %67, %68 : vector<16x128xf32>
      %70 = arith.truncf %69 : vector<16x128xf32> to vector<16x128xbf16>
      %c0_36 = arith.constant 0 : index
      %c0_37 = arith.constant 0 : index
      %c0_38 = arith.constant 0 : index
      %71 = vector.load %arg11[%c0_36, %c0_37, %c0_38] : memref<2x128x128xbf16, #tpu.memory_space<vmem>>, vector<1x128x128xbf16>
      %72 = vector.shape_cast %71 : vector<1x128x128xbf16> to vector<128x128xbf16>
      %cst_39 = arith.constant dense<0.000000e+00> : vector<16x128xf32>
      %73 = tpu.matmul %70, %72, %cst_39 {dimension_numbers = #tpu.dot_dimension_numbers<[1], [0], [0], [1], [0, 0, 1, 1], [], []>} : vector<16x128xbf16>, vector<128x128xbf16>, vector<16x128xf32> -> vector<16x128xf32>
      %c0_40 = arith.constant 0 : index
      %c0_41 = arith.constant 0 : index
      %c0_42 = arith.constant 0 : index
      %74 = vector.load %arg12[%c0_40, %c0_41, %c0_42] : memref<2x1x128xf32, #tpu.memory_space<vmem>>, vector<1x1x128xf32>
      %75 = vector.shape_cast %74 : vector<1x1x128xf32> to vector<1x128xf32>
      %76 = vector.broadcast %75 : vector<1x128xf32> to vector<16x128xf32>
      %77 = arith.addf %73, %76 : vector<16x128xf32>
      %cst_43 = arith.constant 0.000000e+00 : f32
      %78 = vector.broadcast %cst_43 : f32 to vector<16x128xf32>
      %79 = arith.subf %78, %77 : vector<16x128xf32>
      %80 = math.exp %79 : vector<16x128xf32>
      %cst_44 = arith.constant 1.000000e+00 : f32
      %81 = vector.broadcast %cst_44 : f32 to vector<16x128xf32>
      %82 = arith.addf %81, %80 : vector<16x128xf32>
      %83 = tpu.reciprocal %82 {approx = true} : vector<16x128xf32> -> vector<16x128xf32>
      %84 = arith.mulf %77, %83 : vector<16x128xf32>
      %85 = arith.truncf %84 : vector<16x128xf32> to vector<16x128xbf16>
      %c1 = arith.constant 1 : index
      %c0_45 = arith.constant 0 : index
      %c0_46 = arith.constant 0 : index
      %86 = vector.load %arg11[%c1, %c0_45, %c0_46] : memref<2x128x128xbf16, #tpu.memory_space<vmem>>, vector<1x128x128xbf16>
      %87 = vector.shape_cast %86 : vector<1x128x128xbf16> to vector<128x128xbf16>
      %cst_47 = arith.constant dense<0.000000e+00> : vector<16x128xf32>
      %88 = tpu.matmul %85, %87, %cst_47 {dimension_numbers = #tpu.dot_dimension_numbers<[1], [0], [0], [1], [0, 0, 1, 1], [], []>} : vector<16x128xbf16>, vector<128x128xbf16>, vector<16x128xf32> -> vector<16x128xf32>
      %c1_48 = arith.constant 1 : index
      %c0_49 = arith.constant 0 : index
      %c0_50 = arith.constant 0 : index
      %89 = vector.load %arg12[%c1_48, %c0_49, %c0_50] : memref<2x1x128xf32, #tpu.memory_space<vmem>>, vector<1x1x128xf32>
      %90 = vector.shape_cast %89 : vector<1x1x128xf32> to vector<1x128xf32>
      %91 = vector.broadcast %90 : vector<1x128xf32> to vector<16x128xf32>
      %92 = arith.addf %88, %91 : vector<16x128xf32>
      %cst_51 = arith.constant 0.000000e+00 : f32
      %93 = vector.broadcast %cst_51 : f32 to vector<16x128xf32>
      %94 = arith.subf %93, %92 : vector<16x128xf32>
      %95 = math.exp %94 : vector<16x128xf32>
      %cst_52 = arith.constant 1.000000e+00 : f32
      %96 = vector.broadcast %cst_52 : f32 to vector<16x128xf32>
      %97 = arith.addf %96, %95 : vector<16x128xf32>
      %98 = tpu.reciprocal %97 {approx = true} : vector<16x128xf32> -> vector<16x128xf32>
      %99 = arith.mulf %92, %98 : vector<16x128xf32>
      %100 = arith.addf %69, %99 : vector<16x128xf32>
      %101 = arith.truncf %100 : vector<16x128xf32> to vector<16x128xbf16>
      %c0_53 = arith.constant 0 : index
      %c0_54 = arith.constant 0 : index
      %102 = vector.load %arg13[%c0_53, %c0_54] : memref<128x128xbf16, #tpu.memory_space<vmem>>, vector<128x128xbf16>
      %cst_55 = arith.constant dense<0.000000e+00> : vector<16x128xf32>
      %103 = tpu.matmul %101, %102, %cst_55 {dimension_numbers = #tpu.dot_dimension_numbers<[1], [0], [0], [1], [0, 0, 1, 1], [], []>} : vector<16x128xbf16>, vector<128x128xbf16>, vector<16x128xf32> -> vector<16x128xf32>
      %c0_56 = arith.constant 0 : index
      %c0_57 = arith.constant 0 : index
      %104 = vector.load %arg14[%c0_56, %c0_57] : memref<1x128xf32, #tpu.memory_space<vmem>>, vector<1x128xf32>
      %105 = vector.broadcast %104 : vector<1x128xf32> to vector<16x128xf32>
      %106 = arith.addf %103, %105 : vector<16x128xf32>
      %cst_58 = arith.constant 0.000000e+00 : f32
      %107 = vector.broadcast %cst_58 : f32 to vector<16x128xf32>
      %108 = arith.subf %107, %106 : vector<16x128xf32>
      %109 = math.exp %108 : vector<16x128xf32>
      %cst_59 = arith.constant 1.000000e+00 : f32
      %110 = vector.broadcast %cst_59 : f32 to vector<16x128xf32>
      %111 = arith.addf %110, %109 : vector<16x128xf32>
      %112 = tpu.reciprocal %111 {approx = true} : vector<16x128xf32> -> vector<16x128xf32>
      %113 = arith.mulf %106, %112 : vector<16x128xf32>
      %c0_60 = arith.constant 0 : index
      %c0_61 = arith.constant 0 : index
      %114 = vector.load %arg2[%c0_60, %c0_61] : memref<16x128xf32, #tpu.memory_space<vmem>>, vector<16x128xf32>
      %115 = arith.addf %113, %114 : vector<16x128xf32>
      %116 = arith.truncf %115 : vector<16x128xf32> to vector<16x128xbf16>
      %c0_62 = arith.constant 0 : index
      %c0_63 = arith.constant 0 : index
      %c0_64 = arith.constant 0 : index
      %117 = vector.load %arg15[%c0_62, %c0_63, %c0_64] : memref<4x128x128xbf16, #tpu.memory_space<vmem>>, vector<1x128x128xbf16>
      %118 = vector.shape_cast %117 : vector<1x128x128xbf16> to vector<128x128xbf16>
      %cst_65 = arith.constant dense<0.000000e+00> : vector<16x128xf32>
      %119 = tpu.matmul %116, %118, %cst_65 {dimension_numbers = #tpu.dot_dimension_numbers<[1], [0], [0], [1], [0, 0, 1, 1], [], []>} : vector<16x128xbf16>, vector<128x128xbf16>, vector<16x128xf32> -> vector<16x128xf32>
      %c0_66 = arith.constant 0 : index
      %c0_67 = arith.constant 0 : index
      %c0_68 = arith.constant 0 : index
      %120 = vector.load %arg16[%c0_66, %c0_67, %c0_68] : memref<4x1x128xf32, #tpu.memory_space<vmem>>, vector<1x1x128xf32>
      %121 = vector.shape_cast %120 : vector<1x1x128xf32> to vector<1x128xf32>
      %122 = vector.broadcast %121 : vector<1x128xf32> to vector<16x128xf32>
      %123 = arith.addf %119, %122 : vector<16x128xf32>
      %cst_69 = arith.constant 0.000000e+00 : f32
      %124 = vector.broadcast %cst_69 : f32 to vector<16x128xf32>
      %125 = arith.subf %124, %123 : vector<16x128xf32>
      %126 = math.exp %125 : vector<16x128xf32>
      %cst_70 = arith.constant 1.000000e+00 : f32
      %127 = vector.broadcast %cst_70 : f32 to vector<16x128xf32>
      %128 = arith.addf %127, %126 : vector<16x128xf32>
      %129 = tpu.reciprocal %128 {approx = true} : vector<16x128xf32> -> vector<16x128xf32>
      %130 = arith.mulf %123, %129 : vector<16x128xf32>
      %131 = arith.truncf %130 : vector<16x128xf32> to vector<16x128xbf16>
      %c1_71 = arith.constant 1 : index
      %c0_72 = arith.constant 0 : index
      %c0_73 = arith.constant 0 : index
      %132 = vector.load %arg15[%c1_71, %c0_72, %c0_73] : memref<4x128x128xbf16, #tpu.memory_space<vmem>>, vector<1x128x128xbf16>
      %133 = vector.shape_cast %132 : vector<1x128x128xbf16> to vector<128x128xbf16>
      %cst_74 = arith.constant dense<0.000000e+00> : vector<16x128xf32>
      %134 = tpu.matmul %131, %133, %cst_74 {dimension_numbers = #tpu.dot_dimension_numbers<[1], [0], [0], [1], [0, 0, 1, 1], [], []>} : vector<16x128xbf16>, vector<128x128xbf16>, vector<16x128xf32> -> vector<16x128xf32>
      %c1_75 = arith.constant 1 : index
      %c0_76 = arith.constant 0 : index
      %c0_77 = arith.constant 0 : index
      %135 = vector.load %arg16[%c1_75, %c0_76, %c0_77] : memref<4x1x128xf32, #tpu.memory_space<vmem>>, vector<1x1x128xf32>
      %136 = vector.shape_cast %135 : vector<1x1x128xf32> to vector<1x128xf32>
      %137 = vector.broadcast %136 : vector<1x128xf32> to vector<16x128xf32>
      %138 = arith.addf %134, %137 : vector<16x128xf32>
      %cst_78 = arith.constant 0.000000e+00 : f32
      %139 = vector.broadcast %cst_78 : f32 to vector<16x128xf32>
      %140 = arith.subf %139, %138 : vector<16x128xf32>
      %141 = math.exp %140 : vector<16x128xf32>
      %cst_79 = arith.constant 1.000000e+00 : f32
      %142 = vector.broadcast %cst_79 : f32 to vector<16x128xf32>
      %143 = arith.addf %142, %141 : vector<16x128xf32>
      %144 = tpu.reciprocal %143 {approx = true} : vector<16x128xf32> -> vector<16x128xf32>
      %145 = arith.mulf %138, %144 : vector<16x128xf32>
      %146 = arith.addf %115, %145 : vector<16x128xf32>
      %147 = arith.truncf %146 : vector<16x128xf32> to vector<16x128xbf16>
      %c2 = arith.constant 2 : index
      %c0_80 = arith.constant 0 : index
      %c0_81 = arith.constant 0 : index
      %148 = vector.load %arg15[%c2, %c0_80, %c0_81] : memref<4x128x128xbf16, #tpu.memory_space<vmem>>, vector<1x128x128xbf16>
      %149 = vector.shape_cast %148 : vector<1x128x128xbf16> to vector<128x128xbf16>
      %cst_82 = arith.constant dense<0.000000e+00> : vector<16x128xf32>
      %150 = tpu.matmul %147, %149, %cst_82 {dimension_numbers = #tpu.dot_dimension_numbers<[1], [0], [0], [1], [0, 0, 1, 1], [], []>} : vector<16x128xbf16>, vector<128x128xbf16>, vector<16x128xf32> -> vector<16x128xf32>
      %c2_83 = arith.constant 2 : index
      %c0_84 = arith.constant 0 : index
      %c0_85 = arith.constant 0 : index
      %151 = vector.load %arg16[%c2_83, %c0_84, %c0_85] : memref<4x1x128xf32, #tpu.memory_space<vmem>>, vector<1x1x128xf32>
      %152 = vector.shape_cast %151 : vector<1x1x128xf32> to vector<1x128xf32>
      %153 = vector.broadcast %152 : vector<1x128xf32> to vector<16x128xf32>
      %154 = arith.addf %150, %153 : vector<16x128xf32>
      %cst_86 = arith.constant 0.000000e+00 : f32
      %155 = vector.broadcast %cst_86 : f32 to vector<16x128xf32>
      %156 = arith.subf %155, %154 : vector<16x128xf32>
      %157 = math.exp %156 : vector<16x128xf32>
      %cst_87 = arith.constant 1.000000e+00 : f32
      %158 = vector.broadcast %cst_87 : f32 to vector<16x128xf32>
      %159 = arith.addf %158, %157 : vector<16x128xf32>
      %160 = tpu.reciprocal %159 {approx = true} : vector<16x128xf32> -> vector<16x128xf32>
      %161 = arith.mulf %154, %160 : vector<16x128xf32>
      %162 = arith.truncf %161 : vector<16x128xf32> to vector<16x128xbf16>
      %c3 = arith.constant 3 : index
      %c0_88 = arith.constant 0 : index
      %c0_89 = arith.constant 0 : index
      %163 = vector.load %arg15[%c3, %c0_88, %c0_89] : memref<4x128x128xbf16, #tpu.memory_space<vmem>>, vector<1x128x128xbf16>
      %164 = vector.shape_cast %163 : vector<1x128x128xbf16> to vector<128x128xbf16>
      %cst_90 = arith.constant dense<0.000000e+00> : vector<16x128xf32>
      %165 = tpu.matmul %162, %164, %cst_90 {dimension_numbers = #tpu.dot_dimension_numbers<[1], [0], [0], [1], [0, 0, 1, 1], [], []>} : vector<16x128xbf16>, vector<128x128xbf16>, vector<16x128xf32> -> vector<16x128xf32>
      %c3_91 = arith.constant 3 : index
      %c0_92 = arith.constant 0 : index
      %c0_93 = arith.constant 0 : index
      %166 = vector.load %arg16[%c3_91, %c0_92, %c0_93] : memref<4x1x128xf32, #tpu.memory_space<vmem>>, vector<1x1x128xf32>
      %167 = vector.shape_cast %166 : vector<1x1x128xf32> to vector<1x128xf32>
      %168 = vector.broadcast %167 : vector<1x128xf32> to vector<16x128xf32>
      %169 = arith.addf %165, %168 : vector<16x128xf32>
      %cst_94 = arith.constant 0.000000e+00 : f32
      %170 = vector.broadcast %cst_94 : f32 to vector<16x128xf32>
      %171 = arith.subf %170, %169 : vector<16x128xf32>
      %172 = math.exp %171 : vector<16x128xf32>
      %cst_95 = arith.constant 1.000000e+00 : f32
      %173 = vector.broadcast %cst_95 : f32 to vector<16x128xf32>
      %174 = arith.addf %173, %172 : vector<16x128xf32>
      %175 = tpu.reciprocal %174 {approx = true} : vector<16x128xf32> -> vector<16x128xf32>
      %176 = arith.mulf %169, %175 : vector<16x128xf32>
      %177 = arith.addf %146, %176 : vector<16x128xf32>
      %c0_96 = arith.constant 0 : index
      %c0_97 = arith.constant 0 : index
      %178 = vector.load %arg17[%c0_96, %c0_97] : memref<16x128xf32, #tpu.memory_space<vmem>>, vector<16x128xf32>
      tpu.vector_store %arg17[%c0_96, %c0_97], %177 {strides = array<i32>} : memref<16x128xf32, #tpu.memory_space<vmem>>, vector<16x128xf32>,
    } else {
    }
    return
  }
  func.func @transform_0(%arg0: i32, %arg1: memref<32xi32, #tpu.memory_space<smem>>) -> (i32, i32) {
    %c0_i32 = arith.constant 0 : i32
    %c0_i32_0 = arith.constant 0 : i32
    %c0_i32_1 = arith.constant 0 : i32
    return %c0_i32, %c0_i32_0 : i32, i32
  }
  func.func @transform_1(%arg0: i32, %arg1: memref<32xi32, #tpu.memory_space<smem>>) -> (i32, i32) {
    %c0_i32 = arith.constant 0 : i32
    %c0_i32_0 = arith.constant 0 : i32
    %c0_i32_1 = arith.constant 0 : i32
    return %c0_i32, %c0_i32_0 : i32, i32
  }
  func.func @transform_2(%arg0: i32, %arg1: memref<32xi32, #tpu.memory_space<smem>>) -> (i32, i32) {
    %c0_i32 = arith.constant 0 : i32
    %c0_i32_0 = arith.constant 0 : i32
    return %arg0, %c0_i32 : i32, i32
  }
  func.func @transform_3(%arg0: i32, %arg1: memref<32xi32, #tpu.memory_space<smem>>) -> (i32, i32) {
    %c0_i32 = arith.constant 0 : i32
    %c0_i32_0 = arith.constant 0 : i32
    return %c0_i32, %arg0 : i32, i32
  }
  func.func @transform_4(%arg0: i32, %arg1: memref<32xi32, #tpu.memory_space<smem>>) -> (i32, i32) {
    %c0_i32 = arith.constant 0 : i32
    %c0_i32_0 = arith.constant 0 : i32
    %c0_i32_1 = arith.constant 0 : i32
    return %c0_i32, %c0_i32_0 : i32, i32
  }
  func.func @transform_5(%arg0: i32, %arg1: memref<32xi32, #tpu.memory_space<smem>>) -> (i32, i32) {
    %c0_i32 = arith.constant 0 : i32
    %c0_i32_0 = arith.constant 0 : i32
    %c0_i32_1 = arith.constant 0 : i32
    return %c0_i32, %c0_i32_0 : i32, i32
  }
  func.func @transform_6(%arg0: i32, %arg1: memref<32xi32, #tpu.memory_space<smem>>) -> (i32, i32) {
    %c0_i32 = arith.constant 0 : i32
    %c0_i32_0 = arith.constant 0 : i32
    %c0_i32_1 = arith.constant 0 : i32
    return %c0_i32, %c0_i32_0 : i32, i32
  }
  func.func @transform_7(%arg0: i32, %arg1: memref<32xi32, #tpu.memory_space<smem>>) -> (i32, i32) {
    %c0_i32 = arith.constant 0 : i32
    %c0_i32_0 = arith.constant 0 : i32
    %c0_i32_1 = arith.constant 0 : i32
    return %c0_i32, %c0_i32_0 : i32, i32
  }
  func.func @transform_8(%arg0: i32, %arg1: memref<32xi32, #tpu.memory_space<smem>>) -> (i32, i32) {
    %c0_i32 = arith.constant 0 : i32
    %c0_i32_0 = arith.constant 0 : i32
    %c0_i32_1 = arith.constant 0 : i32
    return %c0_i32, %c0_i32_0 : i32, i32
  }
  func.func @transform_9(%arg0: i32, %arg1: memref<32xi32, #tpu.memory_space<smem>>) -> (i32, i32, i32) {
    %c0_i32 = arith.constant 0 : i32
    %c0_i32_0 = arith.constant 0 : i32
    %c0_i32_1 = arith.constant 0 : i32
    %c0_i32_2 = arith.constant 0 : i32
    return %c0_i32, %c0_i32_0, %c0_i32_1 : i32, i32, i32
  }
  func.func @transform_10(%arg0: i32, %arg1: memref<32xi32, #tpu.memory_space<smem>>) -> (i32, i32, i32) {
    %c0_i32 = arith.constant 0 : i32
    %c0_i32_0 = arith.constant 0 : i32
    %c0_i32_1 = arith.constant 0 : i32
    %c0_i32_2 = arith.constant 0 : i32
    return %c0_i32, %c0_i32_0, %c0_i32_1 : i32, i32, i32
  }
  func.func @transform_11(%arg0: i32, %arg1: memref<32xi32, #tpu.memory_space<smem>>) -> (i32, i32) {
    %c0_i32 = arith.constant 0 : i32
    %c0_i32_0 = arith.constant 0 : i32
    %c0_i32_1 = arith.constant 0 : i32
    return %c0_i32, %c0_i32_0 : i32, i32
  }
  func.func @transform_12(%arg0: i32, %arg1: memref<32xi32, #tpu.memory_space<smem>>) -> (i32, i32) {
    %c0_i32 = arith.constant 0 : i32
    %c0_i32_0 = arith.constant 0 : i32
    %c0_i32_1 = arith.constant 0 : i32
    return %c0_i32, %c0_i32_0 : i32, i32
  }
  func.func @transform_13(%arg0: i32, %arg1: memref<32xi32, #tpu.memory_space<smem>>) -> (i32, i32, i32) {
    %c0_i32 = arith.constant 0 : i32
    %c0_i32_0 = arith.constant 0 : i32
    %c0_i32_1 = arith.constant 0 : i32
    %c0_i32_2 = arith.constant 0 : i32
    return %c0_i32, %c0_i32_0, %c0_i32_1 : i32, i32, i32
  }
  func.func @transform_14(%arg0: i32, %arg1: memref<32xi32, #tpu.memory_space<smem>>) -> (i32, i32, i32) {
    %c0_i32 = arith.constant 0 : i32
    %c0_i32_0 = arith.constant 0 : i32
    %c0_i32_1 = arith.constant 0 : i32
    %c0_i32_2 = arith.constant 0 : i32
    return %c0_i32, %c0_i32_0, %c0_i32_1 : i32, i32, i32
  }
  func.func @transform_15(%arg0: i32, %arg1: memref<32xi32, #tpu.memory_space<smem>>) -> (i32, i32) {
    %c0_i32 = arith.constant 0 : i32
    %c0_i32_0 = arith.constant 0 : i32
    %c0_i32_1 = arith.constant 0 : i32
    return %c0_i32, %c0_i32_0 : i32, i32
  }
}

</mosaic_0001>

<llo_original>
// kernel: tpu_custom_call.1
$region0: #{tpu_custom_call.1}
  #allocation0 [shape = 'u32[]', space=smem, size = 0x4, offset = 0x4, fixed_abs, tag = 'smem constant byte address 0x4 - core index']
  #allocation1 [shape = 'u32[144,128]{1,0:T(1,128)}', space=vmem, size = 0x12000, scoped, tag = 'internal scratch']
  #allocation2 [shape = 'f32[16,128]{1,0:T(8,128)}', space=vmem, size = 0x2000, scoped, tag = 'scratch operand']
  #allocation3 [shape = 'f32[16,128]{1,0:T(8,128)}', space=vmem, size = 0x2000, scoped, tag = 'scratch operand']
  #allocation4 [shape = 'f32[16,128]{1,0:T(8,128)}', space=vmem, size = 0x2000, scoped, tag = 'scratch operand']
  #allocation5 [shape = 'f32[32,128]{1,0:T(8,128)}', space=vmem, size = 0x4000, scoped, tag = 'scratch operand']
  #allocation6 [shape = 'bf16[32,1024]{1,0:T(8,128)(2,1)}', space=vmem, size = 0x10000, scoped, tag = 'scratch operand']
  #allocation7 [shape = 's32[1]{0}', space=sflag, size = 0x4, scoped, tag = 'scoped memory for tpu_custom_call.1']
  #allocation8 [shape = 'u8[512]{0}', space=smem, size = 0x200, scoped, tag = 'prefetched SMEM operand 0']
  %s0 = inlined_call_operand.vmem [shape: s32[32], index: 0, kind: input, shape index: {}]
  %s1 = inlined_call_operand.hbm [shape: f32[16,128], index: 1, kind: input, shape index: {}]
  %s2 = inlined_call_operand.vmem [shape: f32[16,6], index: 2, kind: input, shape index: {}]
  %s3 = inlined_call_operand.hbm [shape: bf16[32,42], index: 3, kind: input, shape index: {}]
  %s4 = inlined_call_operand.hbm [shape: s32[1,32], index: 4, kind: input, shape index: {}]
  %s5 = inlined_call_operand.hbm [shape: bf16[128,256], index: 5, kind: input, shape index: {}]
  %s6 = inlined_call_operand.hbm [shape: f32[1,256], index: 6, kind: input, shape index: {}]
  %s7 = inlined_call_operand.vmem [shape: bf16[6,128], index: 7, kind: input, shape index: {}]
  %s8 = inlined_call_operand.vmem [shape: bf16[42,8], index: 8, kind: input, shape index: {}]
  %s9 = inlined_call_operand.hbm [shape: bf16[1024,128], index: 9, kind: input, shape index: {}]
  %s10 = inlined_call_operand.hbm [shape: bf16[2,128,128], index: 10, kind: input, shape index: {}]
  %s11 = inlined_call_operand.hbm [shape: f32[2,1,128], index: 11, kind: input, shape index: {}]
  %s12 = inlined_call_operand.vmem [shape: bf16[128,128], index: 12, kind: input, shape index: {}]
  %s13 = inlined_call_operand.vmem [shape: f32[1,128], index: 13, kind: input, shape index: {}]
  %s14 = inlined_call_operand.hbm [shape: bf16[4,128,128], index: 14, kind: input, shape index: {}]
  %s15 = inlined_call_operand.vmem [shape: f32[4,1,128], index: 15, kind: input, shape index: {}]
  %s16 = inlined_call_operand.hbm [shape: f32[16,128], index: 16, kind: output, shape index: {}]
  %s17 = sld [smem:[#allocation0]]
  $region121: #{tpu_custom_call.1} parent=0
    _
  %s19 = ssub.s32 1, %s17
  %s20 = scalar_select 0, %s19, %s17
  %s21 = sshll.u32 %s0, 4
  %s22 = int_to_ptr.vmem [resolvable:$true] %s21
  %24 = dma.vmem_to_smem %s22, 16, [#allocation8], [#allocation7]
  %25 = dma.done [#allocation7], 16
  %26 = sfence
  $region1: #{tpu_custom_call.1} parent=0
    #allocation9 [shape = 'u8[8192]{0}', space=vmem, size = 0x2000, scoped, tag = 'input window, operand 1, single buffered']
    #allocation10 [shape = 's32[1]{0}', space=sflag, size = 0x4, scoped, tag = 'scoped memory for tpu_custom_call.1']
    #allocation11 [shape = 's32[1]{0}', space=sflag, size = 0x4, scoped, tag = 'scoped memory for tpu_custom_call.1']
    #allocation12 [shape = 'u8[8192]{0}', space=vmem, size = 0x2000, scoped, tag = 'input window, operand 3, single buffered']
    #allocation13 [shape = 's32[1]{0}', space=sflag, size = 0x4, scoped, tag = 'scoped memory for tpu_custom_call.1']
    #allocation14 [shape = 'u8[512]{0}', space=vmem, size = 0x400, scoped, tag = 'input window, operand 4, single buffered']
    #allocation15 [shape = 'u8[65536]{0}', space=vmem, size = 0x10000, scoped, tag = 'input window, operand 5, single buffered']
    #allocation16 [shape = 's32[1]{0}', space=sflag, size = 0x4, scoped, tag = 'scoped memory for tpu_custom_call.1']
    #allocation17 [shape = 'u8[1024]{0}', space=vmem, size = 0x400, scoped, tag = 'input window, operand 6, single buffered']
    #allocation18 [shape = 'u8[262144]{0}', space=vmem, size = 0x40000, scoped, tag = 'input window, operand 9, single buffered']
    #allocation19 [shape = 's32[1]{0}', space=sflag, size = 0x4, scoped, tag = 'scoped memory for tpu_custom_call.1']
    #allocation20 [shape = 'u8[65536]{0}', space=vmem, size = 0x10000, scoped, tag = 'input window, operand 10, single buffered']
    #allocation21 [shape = 'u8[1024]{0}', space=vmem, size = 0x400, scoped, tag = 'input window, operand 11, single buffered']
    #allocation22 [shape = 's32[1]{0}', space=sflag, size = 0x4, scoped, tag = 'scoped memory for tpu_custom_call.1']
    #allocation23 [shape = 'u8[131072]{0}', space=vmem, size = 0x20000, scoped, tag = 'input window, operand 14, single buffered']
    #allocation24 [shape = 'u8[8192]{0}', space=vmem, size = 0x2000, scoped, tag = 'output window, operand 0, single buffered']
    %27 = vsyncpa [#allocation10], 0
    %28 = vsyncpa [#allocation13], 0
    %29 = vsyncpa [#allocation16], 0
    %30 = vsyncpa [#allocation19], 0
    %31 = vsyncpa [#allocation22], 0
    %32 = vsyncpa [#allocation11], 0
    // Predicated region
    $region2: #{tpu_custom_call.1} parent=1 // pred_check
      _
    $region3: #{tpu_custom_call.1} parent=1 // pred_check_branch
      %34 = sbr.rel (0) target = $region5
    $region4: #{tpu_custom_call.1} parent=1 // pred_region
      %s36 = ssub.s32 256, 256
      %37 = vsyncadd [#allocation10], %s36
      %s38 = sshll.u32 [#allocation9], 4
      %s39 = int_to_ptr.vmem [resolvable:$true] %s38
      %44 = dma.hbm_to_vmem [thread:$0]  %s1, 256, %s39, [#allocation10], 128, 128, 8
    $region5: #{tpu_custom_call.1} parent=1 // pred_fallthru
      _
    // Predicated region
    $region6: #{tpu_custom_call.1} parent=1 // pred_check
      _
    $region7: #{tpu_custom_call.1} parent=1 // pred_check_branch
      %46 = sbr.rel (0) target = $region9
    $region8: #{tpu_custom_call.1} parent=1 // pred_region
      _
    $region9: #{tpu_custom_call.1} parent=1 // pred_fallthru
      _
    // Predicated region
    $region10: #{tpu_custom_call.1} parent=1 // pred_check
      _
    $region11: #{tpu_custom_call.1} parent=1 // pred_check_branch
      %48 = sbr.rel (0) target = $region13
    $region12: #{tpu_custom_call.1} parent=1 // pred_region
      %s50 = ssub.s32 256, 256
      %51 = vsyncadd [#allocation13], %s50
      %s52 = sshll.u32 [#allocation12], 4
      %s53 = int_to_ptr.vmem [resolvable:$true] %s52
      %58 = dma.hbm_to_vmem [thread:$0]  %s3, 256, %s53, [#allocation13], 64, 64, 4
    $region13: #{tpu_custom_call.1} parent=1 // pred_fallthru
      _
    // Predicated region
    $region14: #{tpu_custom_call.1} parent=1 // pred_check
      _
    $region15: #{tpu_custom_call.1} parent=1 // pred_check_branch
      %60 = sbr.rel (0) target = $region17
    $region16: #{tpu_custom_call.1} parent=1 // pred_region
      %s62 = ssub.s32 16, 16
      %63 = vsyncadd [#allocation13], %s62
      %s65 = sshll.u32 [#allocation14], 4
      %s66 = int_to_ptr.vmem [resolvable:$true] %s65
      %68 = dma.hbm_to_vmem [thread:$0]  %s4, 16, %s66, [#allocation13]
    $region17: #{tpu_custom_call.1} parent=1 // pred_fallthru
      _
    // Predicated region
    $region18: #{tpu_custom_call.1} parent=1 // pred_check
      _
    $region19: #{tpu_custom_call.1} parent=1 // pred_check_branch
      %70 = sbr.rel (0) target = $region21
    $region20: #{tpu_custom_call.1} parent=1 // pred_region
      %s72 = ssub.s32 2048, 2048
      %73 = vsyncadd [#allocation16], %s72
      %s74 = sshll.u32 [#allocation15], 4
      %s75 = int_to_ptr.vmem [resolvable:$true] %s74
      %80 = dma.hbm_to_vmem [thread:$0]  %s5, 2048, %s75, [#allocation16], 128, 128, 8
    $region21: #{tpu_custom_call.1} parent=1 // pred_fallthru
      _
    // Predicated region
    $region22: #{tpu_custom_call.1} parent=1 // pred_check
      _
    $region23: #{tpu_custom_call.1} parent=1 // pred_check_branch
      %82 = sbr.rel (0) target = $region25
    $region24: #{tpu_custom_call.1} parent=1 // pred_region
      %s84 = ssub.s32 32, 32
      %85 = vsyncadd [#allocation16], %s84
      %s87 = sshll.u32 [#allocation17], 4
      %s88 = int_to_ptr.vmem [resolvable:$true] %s87
      %90 = dma.hbm_to_vmem [thread:$0]  %s6, 32, %s88, [#allocation16]
    $region25: #{tpu_custom_call.1} parent=1 // pred_fallthru
      _
    // Predicated region
    $region26: #{tpu_custom_call.1} parent=1 // pred_check
      _
    $region27: #{tpu_custom_call.1} parent=1 // pred_check_branch
      %92 = sbr.rel (0) target = $region29
    $region28: #{tpu_custom_call.1} parent=1 // pred_region
      _
    $region29: #{tpu_custom_call.1} parent=1 // pred_fallthru
      _
    // Predicated region
    $region30: #{tpu_custom_call.1} parent=1 // pred_check
      _
    $region31: #{tpu_custom_call.1} parent=1 // pred_check_branch
      %94 = sbr.rel (0) target = $region33
    $region32: #{tpu_custom_call.1} parent=1 // pred_region
      _
    $region33: #{tpu_custom_call.1} parent=1 // pred_fallthru
      _
    // Predicated region
    $region34: #{tpu_custom_call.1} parent=1 // pred_check
      _
    $region35: #{tpu_custom_call.1} parent=1 // pred_check_branch
      %96 = sbr.rel (0) target = $region37
    $region36: #{tpu_custom_call.1} parent=1 // pred_region
      %s98 = ssub.s32 8192, 8192
      %99 = vsyncadd [#allocation19], %s98
      %s100 = sshll.u32 [#allocation18], 4
      %s101 = int_to_ptr.vmem [resolvable:$true] %s100
      %106 = dma.hbm_to_vmem [thread:$0]  %s9, 8192, %s101, [#allocation19], 64, 64, 4
    $region37: #{tpu_custom_call.1} parent=1 // pred_fallthru
      _
    // Predicated region
    $region38: #{tpu_custom_call.1} parent=1 // pred_check
      _
    $region39: #{tpu_custom_call.1} parent=1 // pred_check_branch
      %108 = sbr.rel (0) target = $region41
    $region40: #{tpu_custom_call.1} parent=1 // pred_region
      %s110 = ssub.s32 2048, 2048
      %111 = vsyncadd [#allocation19], %s110
      %s112 = sshll.u32 [#allocation20], 4
      %s113 = int_to_ptr.vmem [resolvable:$true] %s112
      %118 = dma.hbm_to_vmem [thread:$0]  %s10, 2048, %s113, [#allocation19], 64, 64, 4
    $region41: #{tpu_custom_call.1} parent=1 // pred_fallthru
      _
    // Predicated region
    $region42: #{tpu_custom_call.1} parent=1 // pred_check
      _
    $region43: #{tpu_custom_call.1} parent=1 // pred_check_branch
      %120 = sbr.rel (0) target = $region45
    $region44: #{tpu_custom_call.1} parent=1 // pred_region
      %s122 = ssub.s32 32, 32
      %123 = vsyncadd [#allocation22], %s122
      %s124 = sshll.u32 [#allocation21], 4
      %s125 = int_to_ptr.vmem [resolvable:$true] %s124
      %130 = dma.hbm_to_vmem [thread:$0]  %s11, 32, %s125, [#allocation22], 16, 16, 1
    $region45: #{tpu_custom_call.1} parent=1 // pred_fallthru
      _
    // Predicated region
    $region46: #{tpu_custom_call.1} parent=1 // pred_check
      _
    $region47: #{tpu_custom_call.1} parent=1 // pred_check_branch
      %132 = sbr.rel (0) target = $region49
    $region48: #{tpu_custom_call.1} parent=1 // pred_region
      _
    $region49: #{tpu_custom_call.1} parent=1 // pred_fallthru
      _
    // Predicated region
    $region50: #{tpu_custom_call.1} parent=1 // pred_check
      _
    $region51: #{tpu_custom_call.1} parent=1 // pred_check_branch
      %134 = sbr.rel (0) target = $region53
    $region52: #{tpu_custom_call.1} parent=1 // pred_region
      _
    $region53: #{tpu_custom_call.1} parent=1 // pred_fallthru
      _
    // Predicated region
    $region54: #{tpu_custom_call.1} parent=1 // pred_check
      _
    $region55: #{tpu_custom_call.1} parent=1 // pred_check_branch
      %136 = sbr.rel (0) target = $region57
    $region56: #{tpu_custom_call.1} parent=1 // pred_region
      %s138 = ssub.s32 4096, 4096
      %139 = vsyncadd [#allocation22], %s138
      %s140 = sshll.u32 [#allocation23], 4
      %s141 = int_to_ptr.vmem [resolvable:$true] %s140
      %146 = dma.hbm_to_vmem [thread:$0]  %s14, 4096, %s141, [#allocation22], 64, 64, 4
    $region57: #{tpu_custom_call.1} parent=1 // pred_fallthru
      _
    // Predicated region
    $region58: #{tpu_custom_call.1} parent=1 // pred_check
      _
    $region59: #{tpu_custom_call.1} parent=1 // pred_check_branch
      %148 = sbr.rel (0) target = $region61
    $region60: #{tpu_custom_call.1} parent=1 // pred_region
      _
    $region61: #{tpu_custom_call.1} parent=1 // pred_fallthru
      _
    // Predicated region
    $region62: #{tpu_custom_call.1} parent=1 // pred_check
      _
    $region63: #{tpu_custom_call.1} parent=1 // pred_check_branch
      %150 = sbr.rel (0) target = $region65
    $region64: #{tpu_custom_call.1} parent=1 // pred_region
      %151 = dma.done [#allocation10], 256
    $region65: #{tpu_custom_call.1} parent=1 // pred_fallthru
      _
    // Predicated region
    $region66: #{tpu_custom_call.1} parent=1 // pred_check
      _
    $region67: #{tpu_custom_call.1} parent=1 // pred_check_branch
      %153 = sbr.rel (0) target = $region69
    $region68: #{tpu_custom_call.1} parent=1 // pred_region
      %154 = dma.done [#allocation13], 256
    $region69: #{tpu_custom_call.1} parent=1 // pred_fallthru
      _
    // Predicated region
    $region70: #{tpu_custom_call.1} parent=1 // pred_check
      _
    $region71: #{tpu_custom_call.1} parent=1 // pred_check_branch
      %156 = sbr.rel (0) target = $region73
    $region72: #{tpu_custom_call.1} parent=1 // pred_region
      %157 = dma.done [#allocation13], 16
    $region73: #{tpu_custom_call.1} parent=1 // pred_fallthru
      _
    // Predicated region
    $region74: #{tpu_custom_call.1} parent=1 // pred_check
      _
    $region75: #{tpu_custom_call.1} parent=1 // pred_check_branch
      %159 = sbr.rel (0) target = $region77
    $region76: #{tpu_custom_call.1} parent=1 // pred_region
      %160 = dma.done [#allocation16], 2048
    $region77: #{tpu_custom_call.1} parent=1 // pred_fallthru
      _
    // Predicated region
    $region78: #{tpu_custom_call.1} parent=1 // pred_check
      _
    $region79: #{tpu_custom_call.1} parent=1 // pred_check_branch
      %162 = sbr.rel (0) target = $region81
    $region80: #{tpu_custom_call.1} parent=1 // pred_region
      %163 = dma.done [#allocation16], 32
    $region81: #{tpu_custom_call.1} parent=1 // pred_fallthru
      _
    // Predicated region
    $region82: #{tpu_custom_call.1} parent=1 // pred_check
      _
    $region83: #{tpu_custom_call.1} parent=1 // pred_check_branch
      %165 = sbr.rel (0) target = $region85
    $region84: #{tpu_custom_call.1} parent=1 // pred_region
      %166 = dma.done [#allocation19], 8192
    $region85: #{tpu_custom_call.1} parent=1 // pred_fallthru
      _
    // Predicated region
    $region86: #{tpu_custom_call.1} parent=1 // pred_check
      _
    $region87: #{tpu_custom_call.1} parent=1 // pred_check_branch
      %168 = sbr.rel (0) target = $region89
    $region88: #{tpu_custom_call.1} parent=1 // pred_region
      %169 = dma.done [#allocation19], 2048
    $region89: #{tpu_custom_call.1} parent=1 // pred_fallthru
      _
    // Predicated region
    $region90: #{tpu_custom_call.1} parent=1 // pred_check
      _
    $region91: #{tpu_custom_call.1} parent=1 // pred_check_branch
      %171 = sbr.rel (0) target = $region93
    $region92: #{tpu_custom_call.1} parent=1 // pred_region
      %172 = dma.done [#allocation22], 32
    $region93: #{tpu_custom_call.1} parent=1 // pred_fallthru
      _
    // Predicated region
    $region94: #{tpu_custom_call.1} parent=1 // pred_check
      _
    $region95: #{tpu_custom_call.1} parent=1 // pred_check_branch
      %174 = sbr.rel (0) target = $region97
    $region96: #{tpu_custom_call.1} parent=1 // pred_region
      %175 = dma.done [#allocation22], 4096
    $region97: #{tpu_custom_call.1} parent=1 // pred_fallthru
      _
    %p177 = scmp.eq.s32.totalorder 0, 0
    // Predicated region
    $region98: #{tpu_custom_call.1} parent=1 // pred_check
      %p178 = pneg %p177
    $region99: #{tpu_custom_call.1} parent=1 // pred_check_branch
      %180 = sbr.rel (%p178) target = $region101
    $region100: #{tpu_custom_call.1} parent=1 // pred_region
      %v181 = vld [vmem:[#allocation9] sm:$0xff]
      %v182 = vld [vmem:[#allocation9 + $0x8] sm:$0xff]
      %v183 = vpack.c.bf16 %v182, %v181
      %v184 = vld [vmem:[%s2] sm:$0xff]
      %v185 = vld [vmem:[%s2 + $0x8] sm:$0xff]
      %v186 = vpack.c.bf16 %v185, %v184
      %v187 = vld [vmem:[%s7] sm:$0x7]
      %vm188 = vcmask 48128
      %v190 = vsel %vm188, %v186, 0
      %vm192 = vcmask 1042432
      %v194 = vsel %vm192, %v187, 0
      %196 = vmatprep.subr.bf16.mxu0 0
      %197 = vmatpush1.bf16.msra.mxu0 0
      %198 = vmatprep.subr.bf16.mxu0 0
      %199 = vmatpush1.bf16.msra.mxu0 0
      %200 = vmatprep.subr.bf16.mxu0 0
      %201 = vmatpush1.bf16.msra.mxu0 0
      %202 = vmatprep.subr.bf16.mxu0 0
      %203 = vmatpush1.bf16.msra.mxu0 0
      %204 = vmatprep.subr.bf16.mxu0 0
      %205 = vmatpush1.bf16.msra.mxu0 0
      %206 = vmatprep.subr.bf16.mxu0 0
      %207 = vmatpush1.bf16.msra.mxu0 0
      %208 = vmatprep.subr.bf16.mxu0 0
      %209 = vmatpush1.bf16.msra.mxu0 0
      %210 = vmatprep.subr.bf16.mxu0 0
      %211 = vmatpush1.bf16.msra.mxu0 %v194
      %212 = vmatprep.subr.bf16.mxu0 0
      %213 = vmatpush2.bf16.msra.mxu0 0
      %214 = vmatprep.subr.bf16.mxu0 0
      %215 = vmatpush2.bf16.msra.mxu0 0
      %216 = vmatprep.subr.bf16.mxu0 0
      %217 = vmatpush2.bf16.msra.mxu0 0
      %218 = vmatprep.subr.bf16.mxu0 0
      %219 = vmatpush2.bf16.msra.mxu0 0
      %220 = vmatprep.subr.bf16.mxu0 0
      %221 = vmatpush2.bf16.msra.mxu0 0
      %222 = vmatprep.subr.bf16.mxu0 0
      %223 = vmatpush2.bf16.msra.mxu0 0
      %224 = vmatprep.subr.bf16.mxu0 0
      %225 = vmatpush2.bf16.msra.mxu0 0
      %226 = vmatprep.subr.bf16.mxu0 0
      %227 = vmatpush2.bf16.msra.mxu0 0
      %228 = vmatprep.mubr.bf16.mxu0 0
      %229 = vmatmul.mubr.bf16.gmra.mxu0 %v190
      %v230 = vpop.f32.mrf.mxu0
      %v231 = vadd.f32 0.0, %v230
      %v232 = vpop.f32.mrf.mxu0
      %v233 = vpop.f32.mrf.mxu0
      %v234 = vadd.f32 0.0, %v233
      %v235 = vpop.f32.mrf.mxu0
      %236 = vdwg.mxu0
      %v237 = vld [vmem:[#allocation15] sm:$0xff]
      %v238 = vld [vmem:[#allocation15 + $0x8] sm:$0xff]
      %v239 = vld [vmem:[#allocation15 + $0x10] sm:$0xff]
      %v240 = vld [vmem:[#allocation15 + $0x18] sm:$0xff]
      %v241 = vld [vmem:[#allocation15 + $0x20] sm:$0xff]
      %v242 = vld [vmem:[#allocation15 + $0x28] sm:$0xff]
      %v243 = vld [vmem:[#allocation15 + $0x30] sm:$0xff]
      %v244 = vld [vmem:[#allocation15 + $0x38] sm:$0xff]
      %v245 = vld [vmem:[#allocation15 + $0x40] sm:$0xff]
      %v246 = vld [vmem:[#allocation15 + $0x48] sm:$0xff]
      %v247 = vld [vmem:[#allocation15 + $0x50] sm:$0xff]
      %v248 = vld [vmem:[#allocation15 + $0x58] sm:$0xff]
      %v249 = vld [vmem:[#allocation15 + $0x60] sm:$0xff]
      %v250 = vld [vmem:[#allocation15 + $0x68] sm:$0xff]
      %v251 = vld [vmem:[#allocation15 + $0x70] sm:$0xff]
      %v252 = vld [vmem:[#allocation15 + $0x78] sm:$0xff]
      %v253 = vld [vmem:[#allocation17] sm:$0x3]
      %v255 = vlaneseq
      %v256 = vshrl.u32 %v255, 7
      %v257 = vsub.s32 0, %v256
      %v258 = vrot.slane %v253, %v257
      %v259 = vlaneseq
      %v260 = vshrl.u32 %v259, 7
      %v261 = vsub.s32 1, %v260
      %v262 = vrot.slane %v253, %v261
      %v281 = vunpack.c.l.b16 %v237
      %v282 = vunpack.c.h.b16 %v237
      %v283 = vunpack.c.l.b16 %v238
      %v284 = vunpack.c.h.b16 %v238
      %v285 = vunpack.c.l.b16 %v239
      %v286 = vunpack.c.h.b16 %v239
      %v287 = vunpack.c.l.b16 %v240
      %v288 = vunpack.c.h.b16 %v240
      %v289 = vunpack.c.l.b16 %v241
      %v290 = vunpack.c.h.b16 %v241
      %v291 = vunpack.c.l.b16 %v242
      %v292 = vunpack.c.h.b16 %v242
      %v293 = vunpack.c.l.b16 %v243
      %v294 = vunpack.c.h.b16 %v243
      %v295 = vunpack.c.l.b16 %v244
      %v296 = vunpack.c.h.b16 %v244
      %v297 = vunpack.c.l.b16 %v245
      %v298 = vunpack.c.h.b16 %v245
      %v299 = vunpack.c.l.b16 %v246
      %v300 = vunpack.c.h.b16 %v246
      %v301 = vunpack.c.l.b16 %v247
      %v302 = vunpack.c.h.b16 %v247
      %v303 = vunpack.c.l.b16 %v248
      %v304 = vunpack.c.h.b16 %v248
      %v305 = vunpack.c.l.b16 %v249
      %v306 = vunpack.c.h.b16 %v249
      %v307 = vunpack.c.l.b16 %v250
      %v308 = vunpack.c.h.b16 %v250
      %v309 = vunpack.c.l.b16 %v251
      %v310 = vunpack.c.h.b16 %v251
      %v311 = vunpack.c.l.b16 %v252
      %v312 = vunpack.c.h.b16 %v252
      %v313 = vpack.c.b16 %v283, %v281
      %v314 = vpack.c.b16 %v284, %v282
      %v315 = vpack.c.b16 %v287, %v285
      %v316 = vpack.c.b16 %v288, %v286
      %v317 = vpack.c.b16 %v291, %v289
      %v318 = vpack.c.b16 %v292, %v290
      %v319 = vpack.c.b16 %v295, %v293
      %v320 = vpack.c.b16 %v296, %v294
      %v321 = vpack.c.b16 %v299, %v297
      %v322 = vpack.c.b16 %v300, %v298
      %v323 = vpack.c.b16 %v303, %v301
      %v324 = vpack.c.b16 %v304, %v302
      %v325 = vpack.c.b16 %v307, %v305
      %v326 = vpack.c.b16 %v308, %v306
      %v327 = vpack.c.b16 %v311, %v309
      %v328 = vpack.c.b16 %v312, %v310
      %345 = vmatprep.subr.bf16.mxu0 %v328
      %346 = vmatpush1.bf16.msra.mxu0 %v327
      %347 = vmatprep.subr.bf16.mxu0 %v326
      %348 = vmatpush1.bf16.msra.mxu0 %v325
      %349 = vmatprep.subr.bf16.mxu0 %v324
      %350 = vmatpush1.bf16.msra.mxu0 %v323
      %351 = vmatprep.subr.bf16.mxu0 %v322
      %352 = vmatpush1.bf16.msra.mxu0 %v321
      %353 = vmatprep.subr.bf16.mxu0 %v320
      %354 = vmatpush1.bf16.msra.mxu0 %v319
      %355 = vmatprep.subr.bf16.mxu0 %v318
      %356 = vmatpush1.bf16.msra.mxu0 %v317
      %357 = vmatprep.subr.bf16.mxu0 %v316
      %358 = vmatpush1.bf16.msra.mxu0 %v315
      %359 = vmatprep.subr.bf16.mxu0 %v314
      %360 = vmatpush1.bf16.msra.mxu0 %v313
      %361 = vmatprep.subr.bf16.mxu0 0
      %362 = vmatpush2.bf16.msra.mxu0 0
      %363 = vmatprep.subr.bf16.mxu0 0
      %364 = vmatpush2.bf16.msra.mxu0 0
      %365 = vmatprep.subr.bf16.mxu0 0
      %366 = vmatpush2.bf16.msra.mxu0 0
      %367 = vmatprep.subr.bf16.mxu0 0
      %368 = vmatpush2.bf16.msra.mxu0 0
      %369 = vmatprep.subr.bf16.mxu0 0
      %370 = vmatpush2.bf16.msra.mxu0 0
      %371 = vmatprep.subr.bf16.mxu0 0
      %372 = vmatpush2.bf16.msra.mxu0 0
      %373 = vmatprep.subr.bf16.mxu0 0
      %374 = vmatpush2.bf16.msra.mxu0 0
      %375 = vmatprep.subr.bf16.mxu0 0
      %376 = vmatpush2.bf16.msra.mxu0 0
      %377 = vmatprep.mubr.bf16.mxu0 0
      %378 = vmatmul.mubr.bf16.gmra.mxu0 %v183
      %v379 = vpop.f32.mrf.mxu0
      %v380 = vadd.f32 %v258, %v379
      %v381 = vpop.f32.mrf.mxu0
      %v382 = vadd.f32 %v262, %v381
      %v383 = vpop.f32.mrf.mxu0
      %v384 = vadd.f32 %v258, %v383
      %v385 = vpop.f32.mrf.mxu0
      %v386 = vadd.f32 %v262, %v385
      %387 = vdwg.mxu0
      %v388 = vsub.f32 0.0, %v380
      %v389 = vsub.f32 0.0, %v382
      %v390 = vsub.f32 0.0, %v384
      %v391 = vsub.f32 0.0, %v386
      %v392 = vmul.f32 %v388, 1.442695
      %v393 = vpow.pop %v392
      %v394 = vmul.f32 %v389, 1.442695
      %v395 = vpow.pop %v394
      %v396 = vmul.f32 %v390, 1.442695
      %v397 = vpow.pop %v396
      %v398 = vmul.f32 %v391, 1.442695
      %v399 = vpow.pop %v398
      %v400 = vadd.f32 %v393, 1.0
      %v401 = vadd.f32 %v395, 1.0
      %v402 = vadd.f32 %v397, 1.0
      %v403 = vadd.f32 %v399, 1.0
      %v404 = vrcp.pop %v400
      %v405 = vrcp.pop %v401
      %v406 = vrcp.pop %v402
      %v407 = vrcp.pop %v403
      %v408 = vmul.f32 %v380, %v404
      %v409 = vmul.f32 %v382, %v405
      %v410 = vmul.f32 %v384, %v406
      %v411 = vmul.f32 %v386, %v407
      %412 = vst [vmem:[#allocation2] sm:$0xff] %v408
      %413 = vst [vmem:[#allocation2 + $0x8] sm:$0xff] %v410
      %v414 = vmul.f32 %v409, %v231
      %v415 = vmul.f32 %v411, %v234
      %416 = vst [vmem:[#allocation3] sm:$0xff] %v414
      %417 = vst [vmem:[#allocation3 + $0x8] sm:$0xff] %v415
      %418 = vst [vmem:[#allocation4] sm:$0xff] 0.0
      %419 = vst [vmem:[#allocation4 + $0x8] sm:$0xff] 0.0
    $region101: #{tpu_custom_call.1} parent=1 // pred_fallthru
      _
    %v420 = vld [vmem:[#allocation12] sm:$0xf]
    %v421 = vld [vmem:[#allocation12 + $0x4] sm:$0xf]
    %v422 = vld [vmem:[#allocation12 + $0x8] sm:$0xf]
    %v423 = vld [vmem:[#allocation12 + $0xc] sm:$0xf]
    %v424 = vld [vmem:[%s8] sm:$0xf]
    %v425 = vld [vmem:[%s8 + $0x4] sm:$0xf]
    %v426 = vld [vmem:[%s8 + $0x8] sm:$0xf]
    %v427 = vld [vmem:[%s8 + $0xc] sm:$0xf]
    %v428 = vld [vmem:[%s8 + $0x10] sm:$0xf]
    %v429 = vld [vmem:[%s8 + $0x14] sm:$0x1]
    %v434 = vunpack.c.l.b16 %v420
    %v435 = vunpack.c.l.b16 %v421
    %v436 = vunpack.c.l.b16 %v422
    %v437 = vunpack.c.l.b16 %v423
    %v438 = vpack.c.b16 %v435, %v434
    %v439 = vpack.c.b16 %v437, %v436
    %v446 = vunpack.c.l.b16 %v424
    %v447 = vunpack.c.l.b16 %v425
    %v448 = vunpack.c.l.b16 %v426
    %v449 = vunpack.c.l.b16 %v427
    %v450 = vunpack.c.l.b16 %v428
    %v451 = vunpack.c.l.b16 %v429
    %v452 = vpack.c.b16 %v447, %v446
    %v453 = vpack.c.b16 %v449, %v448
    %v454 = vpack.c.b16 %v451, %v450
    %vm457 = vcmask 343040
    %v459 = vsel %vm457, %v438, 0
    %v462 = vsel %vm457, %v439, 0
    %vm464 = vcmask 1044480
    %v466 = vsel %vm464, %v454, 0
    %468 = vmatprep.subr.bf16.mxu0 0
    %469 = vmatpush1.bf16.msra.mxu0 0
    %470 = vmatprep.subr.bf16.mxu0 0
    %471 = vmatpush1.bf16.msra.mxu0 0
    %472 = vmatprep.subr.bf16.mxu0 0
    %473 = vmatpush1.bf16.msra.mxu0 0
    %474 = vmatprep.subr.bf16.mxu0 0
    %475 = vmatpush1.bf16.msra.mxu0 0
    %476 = vmatprep.subr.bf16.mxu0 0
    %477 = vmatpush1.bf16.msra.mxu0 0
    %478 = vmatprep.subr.bf16.mxu0 0
    %479 = vmatpush1.bf16.msra.mxu0 %v466
    %480 = vmatprep.subr.bf16.mxu0 0
    %481 = vmatpush1.bf16.msra.mxu0 %v453
    %482 = vmatprep.subr.bf16.mxu0 0
    %483 = vmatpush1.bf16.msra.mxu0 %v452
    %484 = vmatprep.subr.bf16.mxu0 0
    %485 = vmatpush2.bf16.msra.mxu0 0
    %486 = vmatprep.subr.bf16.mxu0 0
    %487 = vmatpush2.bf16.msra.mxu0 0
    %488 = vmatprep.subr.bf16.mxu0 0
    %489 = vmatpush2.bf16.msra.mxu0 0
    %490 = vmatprep.subr.bf16.mxu0 0
    %491 = vmatpush2.bf16.msra.mxu0 0
    %492 = vmatprep.subr.bf16.mxu0 0
    %493 = vmatpush2.bf16.msra.mxu0 0
    %494 = vmatprep.subr.bf16.mxu0 0
    %495 = vmatpush2.bf16.msra.mxu0 0
    %496 = vmatprep.subr.bf16.mxu0 0
    %497 = vmatpush2.bf16.msra.mxu0 0
    %498 = vmatprep.subr.bf16.mxu0 0
    %499 = vmatpush2.bf16.msra.mxu0 0
    %500 = vmatprep.mubr.bf16.mxu0 0
    %501 = vmatmul.mubr.bf16.gmra.mxu0 %v459
    %v502 = vpop.f32.mrf.mxu0
    %v503 = vadd.f32 0.0, %v502
    %v504 = vpop.f32.mrf.mxu0
    %v505 = vpop.f32.mrf.mxu0
    %v506 = vadd.f32 0.0, %v505
    %v507 = vpop.f32.mrf.mxu0
    %508 = vmatprep.mubr.bf16.mxu0 0
    %509 = vmatmul.mubr.bf16.gmra.mxu0 %v462
    %v510 = vpop.f32.mrf.mxu0
    %v511 = vadd.f32 0.0, %v510
    %v512 = vpop.f32.mrf.mxu0
    %v513 = vpop.f32.mrf.mxu0
    %v514 = vadd.f32 0.0, %v513
    %v515 = vpop.f32.mrf.mxu0
    %516 = vdwg.mxu0
    %s517 = smul.u32 0, 32
    loop: start=0, step=1, limit=32
    $region102: #{tpu_custom_call.1} parent=1 // loop_pre_header
      _
    $region103: #{tpu_custom_call.1} parent=1 // loop_header
      %s519 = sphi 0, %s523
      %p520 = scmp.ge.s32.totalorder %s519, 32
    $region104: #{tpu_custom_call.1} parent=1 // loop_header_branch
      %522 = sbr.rel (%p520) target = $region108
    $region105: #{tpu_custom_call.1} parent=1 // loop_body
      %s524 = sadd.s32 %s517, %s519
      %s525 = sld [smem:[#allocation8 + %s524]]
      %s526 = scalar_lea.vmem [#allocation3], %s525
      %v527 = vld [vmem:[%s526] sm:$0x1]
      %s528 = scalar_lea.vmem [#allocation5], %s519
      %529 = vst [vmem:[%s528] sm:$0x1] %v527
    $region106: #{tpu_custom_call.1} parent=1 // loop_footer
      %s523 = sadd.s32 1, %s519
    $region107: #{tpu_custom_call.1} parent=1 // loop_footer_branch
      %518 = sbr.rel target = $region103
    $region108: #{tpu_custom_call.1} parent=1 // loop_exit
      _
    %v530 = vld [vmem:[#allocation5] sm:$0xff]
    %v531 = vld [vmem:[#allocation5 + $0x8] sm:$0xff]
    %v532 = vld [vmem:[#allocation5 + $0x10] sm:$0xff]
    %v533 = vld [vmem:[#allocation5 + $0x18] sm:$0xff]
    %535 = vset.pattern.permute.xlu0 0
    %536 = vperm.xlu0 %535, %v503
    %v537 = vpop.permute.xlu0 %536
    %540 = vset.pattern.permute.xlu0 0
    %541 = vperm.xlu0 %540, %v506
    %v542 = vpop.permute.xlu0 %541
    %545 = vset.pattern.permute.xlu0 0
    %546 = vperm.xlu0 %545, %v511
    %v547 = vpop.permute.xlu0 %546
    %550 = vset.pattern.permute.xlu0 0
    %551 = vperm.xlu0 %550, %v514
    %v552 = vpop.permute.xlu0 %551
    %v554 = vmul.f32 %v530, %v537
    %v555 = vmul.f32 %v531, %v542
    %v556 = vmul.f32 %v532, %v547
    %v557 = vmul.f32 %v533, %v552
    %v558 = vpack.c.bf16 %v555, %v554
    %v559 = vpack.c.bf16 %v557, %v556
    %v562 = vunpack.c.l.b16 %v558
    %v563 = vunpack.c.h.b16 %v558
    %v564 = vunpack.c.l.b16 %v559
    %v565 = vunpack.c.h.b16 %v559
    %v566 = vpack.c.b16 %v562, %v562
    %v567 = vpack.c.b16 %v563, %v563
    %v568 = vpack.c.b16 %v564, %v564
    %v569 = vpack.c.b16 %v565, %v565
    %574 = vst [vmem:[#allocation6] sm:$0xf] %v566
    %575 = vst [vmem:[#allocation6 + $0x20] sm:$0xf] %v567
    %576 = vst [vmem:[#allocation6 + $0x40] sm:$0xf] %v568
    %577 = vst [vmem:[#allocation6 + $0x60] sm:$0xf] %v569
    %578 = vset.pattern.permute.xlu0 1
    %579 = vperm.xlu0 %578, %v503
    %v580 = vpop.permute.xlu0 %579
    %582 = vset.pattern.permute.xlu0 1
    %583 = vperm.xlu0 %582, %v506
    %v584 = vpop.permute.xlu0 %583
    %586 = vset.pattern.permute.xlu0 1
    %587 = vperm.xlu0 %586, %v511
    %v588 = vpop.permute.xlu0 %587
    %590 = vset.pattern.permute.xlu0 1
    %591 = vperm.xlu0 %590, %v514
    %v592 = vpop.permute.xlu0 %591
    %v594 = vmul.f32 %v530, %v580
    %v595 = vmul.f32 %v531, %v584
    %v596 = vmul.f32 %v532, %v588
    %v597 = vmul.f32 %v533, %v592
    %v598 = vpack.c.bf16 %v595, %v594
    %v599 = vpack.c.bf16 %v597, %v596
    %v602 = vunpack.c.l.b16 %v598
    %v603 = vunpack.c.h.b16 %v598
    %v604 = vunpack.c.l.b16 %v599
    %v605 = vunpack.c.h.b16 %v599
    %v606 = vpack.c.b16 %v602, %v602
    %v607 = vpack.c.b16 %v603, %v603
    %v608 = vpack.c.b16 %v604, %v604
    %v609 = vpack.c.b16 %v605, %v605
    %614 = vst [vmem:[#allocation6 + $0x4] sm:$0xf] %v606
    %615 = vst [vmem:[#allocation6 + $0x24] sm:$0xf] %v607
    %616 = vst [vmem:[#allocation6 + $0x44] sm:$0xf] %v608
    %617 = vst [vmem:[#allocation6 + $0x64] sm:$0xf] %v609
    %618 = vset.pattern.permute.xlu0 2
    %619 = vperm.xlu0 %618, %v503
    %v620 = vpop.permute.xlu0 %619
    %622 = vset.pattern.permute.xlu0 2
    %623 = vperm.xlu0 %622, %v506
    %v624 = vpop.permute.xlu0 %623
    %626 = vset.pattern.permute.xlu0 2
    %627 = vperm.xlu0 %626, %v511
    %v628 = vpop.permute.xlu0 %627
    %630 = vset.pattern.permute.xlu0 2
    %631 = vperm.xlu0 %630, %v514
    %v632 = vpop.permute.xlu0 %631
    %v634 = vmul.f32 %v530, %v620
    %v635 = vmul.f32 %v531, %v624
    %v636 = vmul.f32 %v532, %v628
    %v637 = vmul.f32 %v533, %v632
    %v638 = vpack.c.bf16 %v635, %v634
    %v639 = vpack.c.bf16 %v637, %v636
    %v642 = vunpack.c.l.b16 %v638
    %v643 = vunpack.c.h.b16 %v638
    %v644 = vunpack.c.l.b16 %v639
    %v645 = vunpack.c.h.b16 %v639
    %v646 = vpack.c.b16 %v642, %v642
    %v647 = vpack.c.b16 %v643, %v643
    %v648 = vpack.c.b16 %v644, %v644
    %v649 = vpack.c.b16 %v645, %v645
    %654 = vst [vmem:[#allocation6 + $0x8] sm:$0xf] %v646
    %655 = vst [vmem:[#allocation6 + $0x28] sm:$0xf] %v647
    %656 = vst [vmem:[#allocation6 + $0x48] sm:$0xf] %v648
    %657 = vst [vmem:[#allocation6 + $0x68] sm:$0xf] %v649
    %658 = vset.pattern.permute.xlu0 3
    %659 = vperm.xlu0 %658, %v503
    %v660 = vpop.permute.xlu0 %659
    %662 = vset.pattern.permute.xlu0 3
    %663 = vperm.xlu0 %662, %v506
    %v664 = vpop.permute.xlu0 %663
    %666 = vset.pattern.permute.xlu0 3
    %667 = vperm.xlu0 %666, %v511
    %v668 = vpop.permute.xlu0 %667
    %670 = vset.pattern.permute.xlu0 3
    %671 = vperm.xlu0 %670, %v514
    %v672 = vpop.permute.xlu0 %671
    %v674 = vmul.f32 %v530, %v660
    %v675 = vmul.f32 %v531, %v664
    %v676 = vmul.f32 %v532, %v668
    %v677 = vmul.f32 %v533, %v672
    %v678 = vpack.c.bf16 %v675, %v674
    %v679 = vpack.c.bf16 %v677, %v676
    %v682 = vunpack.c.l.b16 %v678
    %v683 = vunpack.c.h.b16 %v678
    %v684 = vunpack.c.l.b16 %v679
    %v685 = vunpack.c.h.b16 %v679
    %v686 = vpack.c.b16 %v682, %v682
    %v687 = vpack.c.b16 %v683, %v683
    %v688 = vpack.c.b16 %v684, %v684
    %v689 = vpack.c.b16 %v685, %v685
    %694 = vst [vmem:[#allocation6 + $0xc] sm:$0xf] %v686
    %695 = vst [vmem:[#allocation6 + $0x2c] sm:$0xf] %v687
    %696 = vst [vmem:[#allocation6 + $0x4c] sm:$0xf] %v688
    %697 = vst [vmem:[#allocation6 + $0x6c] sm:$0xf] %v689
    %698 = vset.pattern.permute.xlu0 4
    %699 = vperm.xlu0 %698, %v503
    %v700 = vpop.permute.xlu0 %699
    %702 = vset.pattern.permute.xlu0 4
    %703 = vperm.xlu0 %702, %v506
    %v704 = vpop.permute.xlu0 %703
    %706 = vset.pattern.permute.xlu0 4
    %707 = vperm.xlu0 %706, %v511
    %v708 = vpop.permute.xlu0 %707
    %710 = vset.pattern.permute.xlu0 4
    %711 = vperm.xlu0 %710, %v514
    %v712 = vpop.permute.xlu0 %711
    %v714 = vmul.f32 %v530, %v700
    %v715 = vmul.f32 %v531, %v704
    %v716 = vmul.f32 %v532, %v708
    %v717 = vmul.f32 %v533, %v712
    %v718 = vpack.c.bf16 %v715, %v714
    %v719 = vpack.c.bf16 %v717, %v716
    %v722 = vunpack.c.l.b16 %v718
    %v723 = vunpack.c.h.b16 %v718
    %v724 = vunpack.c.l.b16 %v719
    %v725 = vunpack.c.h.b16 %v719
    %v726 = vpack.c.b16 %v722, %v722
    %v727 = vpack.c.b16 %v723, %v723
    %v728 = vpack.c.b16 %v724, %v724
    %v729 = vpack.c.b16 %v725, %v725
    %734 = vst [vmem:[#allocation6 + $0x10] sm:$0xf] %v726
    %735 = vst [vmem:[#allocation6 + $0x30] sm:$0xf] %v727
    %736 = vst [vmem:[#allocation6 + $0x50] sm:$0xf] %v728
    %737 = vst [vmem:[#allocation6 + $0x70] sm:$0xf] %v729
    %738 = vset.pattern.permute.xlu0 5
    %739 = vperm.xlu0 %738, %v503
    %v740 = vpop.permute.xlu0 %739
    %742 = vset.pattern.permute.xlu0 5
    %743 = vperm.xlu0 %742, %v506
    %v744 = vpop.permute.xlu0 %743
    %746 = vset.pattern.permute.xlu0 5
    %747 = vperm.xlu0 %746, %v511
    %v748 = vpop.permute.xlu0 %747
    %750 = vset.pattern.permute.xlu0 5
    %751 = vperm.xlu0 %750, %v514
    %v752 = vpop.permute.xlu0 %751
    %v754 = vmul.f32 %v530, %v740
    %v755 = vmul.f32 %v531, %v744
    %v756 = vmul.f32 %v532, %v748
    %v757 = vmul.f32 %v533, %v752
    %v758 = vpack.c.bf16 %v755, %v754
    %v759 = vpack.c.bf16 %v757, %v756
    %v762 = vunpack.c.l.b16 %v758
    %v763 = vunpack.c.h.b16 %v758
    %v764 = vunpack.c.l.b16 %v759
    %v765 = vunpack.c.h.b16 %v759
    %v766 = vpack.c.b16 %v762, %v762
    %v767 = vpack.c.b16 %v763, %v763
    %v768 = vpack.c.b16 %v764, %v764
    %v769 = vpack.c.b16 %v765, %v765
    %774 = vst [vmem:[#allocation6 + $0x14] sm:$0xf] %v766
    %775 = vst [vmem:[#allocation6 + $0x34] sm:$0xf] %v767
    %776 = vst [vmem:[#allocation6 + $0x54] sm:$0xf] %v768
    %777 = vst [vmem:[#allocation6 + $0x74] sm:$0xf] %v769
    %778 = vset.pattern.permute.xlu0 6
    %779 = vperm.xlu0 %778, %v503
    %v780 = vpop.permute.xlu0 %779
    %782 = vset.pattern.permute.xlu0 6
    %783 = vperm.xlu0 %782, %v506
    %v784 = vpop.permute.xlu0 %783
    %786 = vset.pattern.permute.xlu0 6
    %787 = vperm.xlu0 %786, %v511
    %v788 = vpop.permute.xlu0 %787
    %790 = vset.pattern.permute.xlu0 6
    %791 = vperm.xlu0 %790, %v514
    %v792 = vpop.permute.xlu0 %791
    %v794 = vmul.f32 %v530, %v780
    %v795 = vmul.f32 %v531, %v784
    %v796 = vmul.f32 %v532, %v788
    %v797 = vmul.f32 %v533, %v792
    %v798 = vpack.c.bf16 %v795, %v794
    %v799 = vpack.c.bf16 %v797, %v796
    %v802 = vunpack.c.l.b16 %v798
    %v803 = vunpack.c.h.b16 %v798
    %v804 = vunpack.c.l.b16 %v799
    %v805 = vunpack.c.h.b16 %v799
    %v806 = vpack.c.b16 %v802, %v802
    %v807 = vpack.c.b16 %v803, %v803
    %v808 = vpack.c.b16 %v804, %v804
    %v809 = vpack.c.b16 %v805, %v805
    %814 = vst [vmem:[#allocation6 + $0x18] sm:$0xf] %v806
    %815 = vst [vmem:[#allocation6 + $0x38] sm:$0xf] %v807
    %816 = vst [vmem:[#allocation6 + $0x58] sm:$0xf] %v808
    %817 = vst [vmem:[#allocation6 + $0x78] sm:$0xf] %v809
    %818 = vset.pattern.permute.xlu0 7
    %819 = vperm.xlu0 %818, %v503
    %v820 = vpop.permute.xlu0 %819
    %822 = vset.pattern.permute.xlu0 7
    %823 = vperm.xlu0 %822, %v506
    %v824 = vpop.permute.xlu0 %823
    %826 = vset.pattern.permute.xlu0 7
    %827 = vperm.xlu0 %826, %v511
    %v828 = vpop.permute.xlu0 %827
    %830 = vset.pattern.permute.xlu0 7
    %831 = vperm.xlu0 %830, %v514
    %v832 = vpop.permute.xlu0 %831
    %v834 = vmul.f32 %v530, %v820
    %v835 = vmul.f32 %v531, %v824
    %v836 = vmul.f32 %v532, %v828
    %v837 = vmul.f32 %v533, %v832
    %v838 = vpack.c.bf16 %v835, %v834
    %v839 = vpack.c.bf16 %v837, %v836
    %v842 = vunpack.c.l.b16 %v838
    %v843 = vunpack.c.h.b16 %v838
    %v844 = vunpack.c.l.b16 %v839
    %v845 = vunpack.c.h.b16 %v839
    %v846 = vpack.c.b16 %v842, %v842
    %v847 = vpack.c.b16 %v843, %v843
    %v848 = vpack.c.b16 %v844, %v844
    %v849 = vpack.c.b16 %v845, %v845
    %854 = vst [vmem:[#allocation6 + $0x1c] sm:$0xf] %v846
    %855 = vst [vmem:[#allocation6 + $0x3c] sm:$0xf] %v847
    %856 = vst [vmem:[#allocation6 + $0x5c] sm:$0xf] %v848
    %857 = vst [vmem:[#allocation6 + $0x7c] sm:$0xf] %v849
    %v858 = vld [vmem:[#allocation6] sm:$0xff]
    %v859 = vld [vmem:[#allocation6 + $0x8] sm:$0xff]
    %v860 = vld [vmem:[#allocation6 + $0x10] sm:$0xff]
    %v861 = vld [vmem:[#allocation6 + $0x18] sm:$0xff]
    %v862 = vld [vmem:[#allocation6 + $0x20] sm:$0xff]
    %v863 = vld [vmem:[#allocation6 + $0x28] sm:$0xff]
    %v864 = vld [vmem:[#allocation6 + $0x30] sm:$0xff]
    %v865 = vld [vmem:[#allocation6 + $0x38] sm:$0xff]
    %v866 = vld [vmem:[#allocation6 + $0x40] sm:$0xff]
    %v867 = vld [vmem:[#allocation6 + $0x48] sm:$0xff]
    %v868 = vld [vmem:[#allocation6 + $0x50] sm:$0xff]
    %v869 = vld [vmem:[#allocation6 + $0x58] sm:$0xff]
    %v870 = vld [vmem:[#allocation6 + $0x60] sm:$0xff]
    %v871 = vld [vmem:[#allocation6 + $0x68] sm:$0xff]
    %v872 = vld [vmem:[#allocation6 + $0x70] sm:$0xff]
    %v873 = vld [vmem:[#allocation6 + $0x78] sm:$0xff]
    %v874 = vld [vmem:[#allocation18] sm:$0xf]
    %v875 = vld [vmem:[#allocation18 + $0x4] sm:$0xf]
    %v876 = vld [vmem:[#allocation18 + $0x8] sm:$0xf]
    %v877 = vld [vmem:[#allocation18 + $0xc] sm:$0xf]
    %v878 = vld [vmem:[#allocation18 + $0x10] sm:$0xf]
    %v879 = vld [vmem:[#allocation18 + $0x14] sm:$0xf]
    %v880 = vld [vmem:[#allocation18 + $0x18] sm:$0xf]
    %v881 = vld [vmem:[#allocation18 + $0x1c] sm:$0xf]
    %v882 = vld [vmem:[#allocation18 + $0x20] sm:$0xf]
    %v883 = vld [vmem:[#allocation18 + $0x24] sm:$0xf]
    %v884 = vld [vmem:[#allocation18 + $0x28] sm:$0xf]
    %v885 = vld [vmem:[#allocation18 + $0x2c] sm:$0xf]
    %v886 = vld [vmem:[#allocation18 + $0x30] sm:$0xf]
    %v887 = vld [vmem:[#allocation18 + $0x34] sm:$0xf]
    %v888 = vld [vmem:[#allocation18 + $0x38] sm:$0xf]
    %v889 = vld [vmem:[#allocation18 + $0x3c] sm:$0xf]
    %v890 = vld [vmem:[#allocation18 + $0x40] sm:$0xf]
    %v891 = vld [vmem:[#allocation18 + $0x44] sm:$0xf]
    %v892 = vld [vmem:[#allocation18 + $0x48] sm:$0xf]
    %v893 = vld [vmem:[#allocation18 + $0x4c] sm:$0xf]
    %v894 = vld [vmem:[#allocation18 + $0x50] sm:$0xf]
    %v895 = vld [vmem:[#allocation18 + $0x54] sm:$0xf]
    %v896 = vld [vmem:[#allocation18 + $0x58] sm:$0xf]
    %v897 = vld [vmem:[#allocation18 + $0x5c] sm:$0xf]
    %v898 = vld [vmem:[#allocation18 + $0x60] sm:$0xf]
    %v899 = vld [vmem:[#allocation18 + $0x64] sm:$0xf]
    %v900 = vld [vmem:[#allocation18 + $0x68] sm:$0xf]
    %v901 = vld [vmem:[#allocation18 + $0x6c] sm:$0xf]
    %v902 = vld [vmem:[#allocation18 + $0x70] sm:$0xf]
    %v903 = vld [vmem:[#allocation18 + $0x74] sm:$0xf]
    %v904 = vld [vmem:[#allocation18 + $0x78] sm:$0xf]
    %v905 = vld [vmem:[#allocation18 + $0x7c] sm:$0xf]
    %v906 = vld [vmem:[#allocation18 + $0x80] sm:$0xf]
    %v907 = vld [vmem:[#allocation18 + $0x84] sm:$0xf]
    %v908 = vld [vmem:[#allocation18 + $0x88] sm:$0xf]
    %v909 = vld [vmem:[#allocation18 + $0x8c] sm:$0xf]
    %v910 = vld [vmem:[#allocation18 + $0x90] sm:$0xf]
    %v911 = vld [vmem:[#allocation18 + $0x94] sm:$0xf]
    %v912 = vld [vmem:[#allocation18 + $0x98] sm:$0xf]
    %v913 = vld [vmem:[#allocation18 + $0x9c] sm:$0xf]
    %v914 = vld [vmem:[#allocation18 + $0xa0] sm:$0xf]
    %v915 = vld [vmem:[#allocation18 + $0xa4] sm:$0xf]
    %v916 = vld [vmem:[#allocation18 + $0xa8] sm:$0xf]
    %v917 = vld [vmem:[#allocation18 + $0xac] sm:$0xf]
    %v918 = vld [vmem:[#allocation18 + $0xb0] sm:$0xf]
    %v919 = vld [vmem:[#allocation18 + $0xb4] sm:$0xf]
    %v920 = vld [vmem:[#allocation18 + $0xb8] sm:$0xf]
    %v921 = vld [vmem:[#allocation18 + $0xbc] sm:$0xf]
    %v922 = vld [vmem:[#allocation18 + $0xc0] sm:$0xf]
    %v923 = vld [vmem:[#allocation18 + $0xc4] sm:$0xf]
    %v924 = vld [vmem:[#allocation18 + $0xc8] sm:$0xf]
    %v925 = vld [vmem:[#allocation18 + $0xcc] sm:$0xf]
    %v926 = vld [vmem:[#allocation18 + $0xd0] sm:$0xf]
    %v927 = vld [vmem:[#allocation18 + $0xd4] sm:$0xf]
    %v928 = vld [vmem:[#allocation18 + $0xd8] sm:$0xf]
    %v929 = vld [vmem:[#allocation18 + $0xdc] sm:$0xf]
    %v930 = vld [vmem:[#allocation18 + $0xe0] sm:$0xf]
    %v931 = vld [vmem:[#allocation18 + $0xe4] sm:$0xf]
    %v932 = vld [vmem:[#allocation18 + $0xe8] sm:$0xf]
    %v933 = vld [vmem:[#allocation18 + $0xec] sm:$0xf]
    %v934 = vld [vmem:[#allocation18 + $0xf0] sm:$0xf]
    %v935 = vld [vmem:[#allocation18 + $0xf4] sm:$0xf]
    %v936 = vld [vmem:[#allocation18 + $0xf8] sm:$0xf]
    %v937 = vld [vmem:[#allocation18 + $0xfc] sm:$0xf]
    %v938 = vld [vmem:[#allocation18 + $0x100] sm:$0xf]
    %v939 = vld [vmem:[#allocation18 + $0x104] sm:$0xf]
    %v940 = vld [vmem:[#allocation18 + $0x108] sm:$0xf]
    %v941 = vld [vmem:[#allocation18 + $0x10c] sm:$0xf]
    %v942 = vld [vmem:[#allocation18 + $0x110] sm:$0xf]
    %v943 = vld [vmem:[#allocation18 + $0x114] sm:$0xf]
    %v944 = vld [vmem:[#allocation18 + $0x118] sm:$0xf]
    %v945 = vld [vmem:[#allocation18 + $0x11c] sm:$0xf]
    %v946 = vld [vmem:[#allocation18 + $0x120] sm:$0xf]
    %v947 = vld [vmem:[#allocation18 + $0x124] sm:$0xf]
    %v948 = vld [vmem:[#allocation18 + $0x128] sm:$0xf]
    %v949 = vld [vmem:[#allocation18 + $0x12c] sm:$0xf]
    %v950 = vld [vmem:[#allocation18 + $0x130] sm:$0xf]
    %v951 = vld [vmem:[#allocation18 + $0x134] sm:$0xf]
    %v952 = vld [vmem:[#allocation18 + $0x138] sm:$0xf]
    %v953 = vld [vmem:[#allocation18 + $0x13c] sm:$0xf]
    %v954 = vld [vmem:[#allocation18 + $0x140] sm:$0xf]
    %v955 = vld [vmem:[#allocation18 + $0x144] sm:$0xf]
    %v956 = vld [vmem:[#allocation18 + $0x148] sm:$0xf]
    %v957 = vld [vmem:[#allocation18 + $0x14c] sm:$0xf]
    %v958 = vld [vmem:[#allocation18 + $0x150] sm:$0xf]
    %v959 = vld [vmem:[#allocation18 + $0x154] sm:$0xf]
    %v960 = vld [vmem:[#allocation18 + $0x158] sm:$0xf]
    %v961 = vld [vmem:[#allocation18 + $0x15c] sm:$0xf]
    %v962 = vld [vmem:[#allocation18 + $0x160] sm:$0xf]
    %v963 = vld [vmem:[#allocation18 + $0x164] sm:$0xf]
    %v964 = vld [vmem:[#allocation18 + $0x168] sm:$0xf]
    %v965 = vld [vmem:[#allocation18 + $0x16c] sm:$0xf]
    %v966 = vld [vmem:[#allocation18 + $0x170] sm:$0xf]
    %v967 = vld [vmem:[#allocation18 + $0x174] sm:$0xf]
    %v968 = vld [vmem:[#allocation18 + $0x178] sm:$0xf]
    %v969 = vld [vmem:[#allocation18 + $0x17c] sm:$0xf]
    %v970 = vld [vmem:[#allocation18 + $0x180] sm:$0xf]
    %v971 = vld [vmem:[#allocation18 + $0x184] sm:$0xf]
    %v972 = vld [vmem:[#allocation18 + $0x188] sm:$0xf]
    %v973 = vld [vmem:[#allocation18 + $0x18c] sm:$0xf]
    %v974 = vld [vmem:[#allocation18 + $0x190] sm:$0xf]
    %v975 = vld [vmem:[#allocation18 + $0x194] sm:$0xf]
    %v976 = vld [vmem:[#allocation18 + $0x198] sm:$0xf]
    %v977 = vld [vmem:[#allocation18 + $0x19c] sm:$0xf]
    %v978 = vld [vmem:[#allocation18 + $0x1a0] sm:$0xf]
    %v979 = vld [vmem:[#allocation18 + $0x1a4] sm:$0xf]
    %v980 = vld [vmem:[#allocation18 + $0x1a8] sm:$0xf]
    %v981 = vld [vmem:[#allocation18 + $0x1ac] sm:$0xf]
    %v982 = vld [vmem:[#allocation18 + $0x1b0] sm:$0xf]
    %v983 = vld [vmem:[#allocation18 + $0x1b4] sm:$0xf]
    %v984 = vld [vmem:[#allocation18 + $0x1b8] sm:$0xf]
    %v985 = vld [vmem:[#allocation18 + $0x1bc] sm:$0xf]
    %v986 = vld [vmem:[#allocation18 + $0x1c0] sm:$0xf]
    %v987 = vld [vmem:[#allocation18 + $0x1c4] sm:$0xf]
    %v988 = vld [vmem:[#allocation18 + $0x1c8] sm:$0xf]
    %v989 = vld [vmem:[#allocation18 + $0x1cc] sm:$0xf]
    %v990 = vld [vmem:[#allocation18 + $0x1d0] sm:$0xf]
    %v991 = vld [vmem:[#allocation18 + $0x1d4] sm:$0xf]
    %v992 = vld [vmem:[#allocation18 + $0x1d8] sm:$0xf]
    %v993 = vld [vmem:[#allocation18 + $0x1dc] sm:$0xf]
    %v994 = vld [vmem:[#allocation18 + $0x1e0] sm:$0xf]
    %v995 = vld [vmem:[#allocation18 + $0x1e4] sm:$0xf]
    %v996 = vld [vmem:[#allocation18 + $0x1e8] sm:$0xf]
    %v997 = vld [vmem:[#allocation18 + $0x1ec] sm:$0xf]
    %v998 = vld [vmem:[#allocation18 + $0x1f0] sm:$0xf]
    %v999 = vld [vmem:[#allocation18 + $0x1f4] sm:$0xf]
    %v1000 = vld [vmem:[#allocation18 + $0x1f8] sm:$0xf]
    %v1001 = vld [vmem:[#allocation18 + $0x1fc] sm:$0xf]
    %v1018 = vunpack.c.l.b16 %v858
    %v1019 = vunpack.c.h.b16 %v858
    %v1020 = vunpack.c.l.b16 %v859
    %v1021 = vunpack.c.h.b16 %v859
    %v1022 = vunpack.c.l.b16 %v860
    %v1023 = vunpack.c.h.b16 %v860
    %v1024 = vunpack.c.l.b16 %v861
    %v1025 = vunpack.c.h.b16 %v861
    %v1026 = vunpack.c.l.b16 %v862
    %v1027 = vunpack.c.h.b16 %v862
    %v1028 = vunpack.c.l.b16 %v863
    %v1029 = vunpack.c.h.b16 %v863
    %v1030 = vunpack.c.l.b16 %v864
    %v1031 = vunpack.c.h.b16 %v864
    %v1032 = vunpack.c.l.b16 %v865
    %v1033 = vunpack.c.h.b16 %v865
    %v1034 = vunpack.c.l.b16 %v866
    %v1035 = vunpack.c.h.b16 %v866
    %v1036 = vunpack.c.l.b16 %v867
    %v1037 = vunpack.c.h.b16 %v867
    %v1038 = vunpack.c.l.b16 %v868
    %v1039 = vunpack.c.h.b16 %v868
    %v1040 = vunpack.c.l.b16 %v869
    %v1041 = vunpack.c.h.b16 %v869
    %v1042 = vunpack.c.l.b16 %v870
    %v1043 = vunpack.c.h.b16 %v870
    %v1044 = vunpack.c.l.b16 %v871
    %v1045 = vunpack.c.h.b16 %v871
    %v1046 = vunpack.c.l.b16 %v872
    %v1047 = vunpack.c.h.b16 %v872
    %v1048 = vunpack.c.l.b16 %v873
    %v1049 = vunpack.c.h.b16 %v873
    %v1050 = vpack.c.b16 %v1026, %v1018
    %v1051 = vpack.c.b16 %v1027, %v1019
    %v1052 = vpack.c.b16 %v1028, %v1020
    %v1053 = vpack.c.b16 %v1029, %v1021
    %v1054 = vpack.c.b16 %v1030, %v1022
    %v1055 = vpack.c.b16 %v1031, %v1023
    %v1056 = vpack.c.b16 %v1032, %v1024
    %v1057 = vpack.c.b16 %v1033, %v1025
    %v1058 = vpack.c.b16 %v1042, %v1034
    %v1059 = vpack.c.b16 %v1043, %v1035
    %v1060 = vpack.c.b16 %v1044, %v1036
    %v1061 = vpack.c.b16 %v1045, %v1037
    %v1062 = vpack.c.b16 %v1046, %v1038
    %v1063 = vpack.c.b16 %v1047, %v1039
    %v1064 = vpack.c.b16 %v1048, %v1040
    %v1065 = vpack.c.b16 %v1049, %v1041
    %v1210 = vunpack.c.l.b16 %v874
    %v1211 = vunpack.c.l.b16 %v875
    %v1212 = vunpack.c.l.b16 %v876
    %v1213 = vunpack.c.l.b16 %v877
    %v1214 = vunpack.c.l.b16 %v878
    %v1215 = vunpack.c.l.b16 %v879
    %v1216 = vunpack.c.l.b16 %v880
    %v1217 = vunpack.c.l.b16 %v881
    %v1218 = vunpack.c.l.b16 %v882
    %v1219 = vunpack.c.l.b16 %v883
    %v1220 = vunpack.c.l.b16 %v884
    %v1221 = vunpack.c.l.b16 %v885
    %v1222 = vunpack.c.l.b16 %v886
    %v1223 = vunpack.c.l.b16 %v887
    %v1224 = vunpack.c.l.b16 %v888
    %v1225 = vunpack.c.l.b16 %v889
    %v1226 = vunpack.c.l.b16 %v890
    %v1227 = vunpack.c.l.b16 %v891
    %v1228 = vunpack.c.l.b16 %v892
    %v1229 = vunpack.c.l.b16 %v893
    %v1230 = vunpack.c.l.b16 %v894
    %v1231 = vunpack.c.l.b16 %v895
    %v1232 = vunpack.c.l.b16 %v896
    %v1233 = vunpack.c.l.b16 %v897
    %v1234 = vunpack.c.l.b16 %v898
    %v1235 = vunpack.c.l.b16 %v899
    %v1236 = vunpack.c.l.b16 %v900
    %v1237 = vunpack.c.l.b16 %v901
    %v1238 = vunpack.c.l.b16 %v902
    %v1239 = vunpack.c.l.b16 %v903
    %v1240 = vunpack.c.l.b16 %v904
    %v1241 = vunpack.c.l.b16 %v905
    %v1242 = vunpack.c.l.b16 %v906
    %v1243 = vunpack.c.l.b16 %v907
    %v1244 = vunpack.c.l.b16 %v908
    %v1245 = vunpack.c.l.b16 %v909
    %v1246 = vunpack.c.l.b16 %v910
    %v1247 = vunpack.c.l.b16 %v911
    %v1248 = vunpack.c.l.b16 %v912
    %v1249 = vunpack.c.l.b16 %v913
    %v1250 = vunpack.c.l.b16 %v914
    %v1251 = vunpack.c.l.b16 %v915
    %v1252 = vunpack.c.l.b16 %v916
    %v1253 = vunpack.c.l.b16 %v917
    %v1254 = vunpack.c.l.b16 %v918
    %v1255 = vunpack.c.l.b16 %v919
    %v1256 = vunpack.c.l.b16 %v920
    %v1257 = vunpack.c.l.b16 %v921
    %v1258 = vunpack.c.l.b16 %v922
    %v1259 = vunpack.c.l.b16 %v923
    %v1260 = vunpack.c.l.b16 %v924
    %v1261 = vunpack.c.l.b16 %v925
    %v1262 = vunpack.c.l.b16 %v926
    %v1263 = vunpack.c.l.b16 %v927
    %v1264 = vunpack.c.l.b16 %v928
    %v1265 = vunpack.c.l.b16 %v929
    %v1266 = vunpack.c.l.b16 %v930
    %v1267 = vunpack.c.l.b16 %v931
    %v1268 = vunpack.c.l.b16 %v932
    %v1269 = vunpack.c.l.b16 %v933
    %v1270 = vunpack.c.l.b16 %v934
    %v1271 = vunpack.c.l.b16 %v935
    %v1272 = vunpack.c.l.b16 %v936
    %v1273 = vunpack.c.l.b16 %v937
    %v1274 = vunpack.c.l.b16 %v938
    %v1275 = vunpack.c.l.b16 %v939
    %v1276 = vunpack.c.l.b16 %v940
    %v1277 = vunpack.c.l.b16 %v941
    %v1278 = vunpack.c.l.b16 %v942
    %v1279 = vunpack.c.l.b16 %v943
    %v1280 = vunpack.c.l.b16 %v944
    %v1281 = vunpack.c.l.b16 %v945
    %v1282 = vunpack.c.l.b16 %v946
    %v1283 = vunpack.c.l.b16 %v947
    %v1284 = vunpack.c.l.b16 %v948
    %v1285 = vunpack.c.l.b16 %v949
    %v1286 = vunpack.c.l.b16 %v950
    %v1287 = vunpack.c.l.b16 %v951
    %v1288 = vunpack.c.l.b16 %v952
    %v1289 = vunpack.c.l.b16 %v953
    %v1290 = vunpack.c.l.b16 %v954
    %v1291 = vunpack.c.l.b16 %v955
    %v1292 = vunpack.c.l.b16 %v956
    %v1293 = vunpack.c.l.b16 %v957
    %v1294 = vunpack.c.l.b16 %v958
    %v1295 = vunpack.c.l.b16 %v959
    %v1296 = vunpack.c.l.b16 %v960
    %v1297 = vunpack.c.l.b16 %v961
    %v1298 = vunpack.c.l.b16 %v962
    %v1299 = vunpack.c.l.b16 %v963
    %v1300 = vunpack.c.l.b16 %v964
    %v1301 = vunpack.c.l.b16 %v965
    %v1302 = vunpack.c.l.b16 %v966
    %v1303 = vunpack.c.l.b16 %v967
    %v1304 = vunpack.c.l.b16 %v968
    %v1305 = vunpack.c.l.b16 %v969
    %v1306 = vunpack.c.l.b16 %v970
    %v1307 = vunpack.c.l.b16 %v971
    %v1308 = vunpack.c.l.b16 %v972
    %v1309 = vunpack.c.l.b16 %v973
    %v1310 = vunpack.c.l.b16 %v974
    %v1311 = vunpack.c.l.b16 %v975
    %v1312 = vunpack.c.l.b16 %v976
    %v1313 = vunpack.c.l.b16 %v977
    %v1314 = vunpack.c.l.b16 %v978
    %v1315 = vunpack.c.l.b16 %v979
    %v1316 = vunpack.c.l.b16 %v980
    %v1317 = vunpack.c.l.b16 %v981
    %v1318 = vunpack.c.l.b16 %v982
    %v1319 = vunpack.c.l.b16 %v983
    %v1320 = vunpack.c.l.b16 %v984
    %v1321 = vunpack.c.l.b16 %v985
    %v1322 = vunpack.c.l.b16 %v986
    %v1323 = vunpack.c.l.b16 %v987
    %v1324 = vunpack.c.l.b16 %v988
    %v1325 = vunpack.c.l.b16 %v989
    %v1326 = vunpack.c.l.b16 %v990
    %v1327 = vunpack.c.l.b16 %v991
    %v1328 = vunpack.c.l.b16 %v992
    %v1329 = vunpack.c.l.b16 %v993
    %v1330 = vunpack.c.l.b16 %v994
    %v1331 = vunpack.c.l.b16 %v995
    %v1332 = vunpack.c.l.b16 %v996
    %v1333 = vunpack.c.l.b16 %v997
    %v1334 = vunpack.c.l.b16 %v998
    %v1335 = vunpack.c.l.b16 %v999
    %v1336 = vunpack.c.l.b16 %v1000
    %v1337 = vunpack.c.l.b16 %v1001
    %v1338 = vpack.c.b16 %v1211, %v1210
    %v1339 = vpack.c.b16 %v1213, %v1212
    %v1340 = vpack.c.b16 %v1215, %v1214
    %v1341 = vpack.c.b16 %v1217, %v1216
    %v1342 = vpack.c.b16 %v1219, %v1218
    %v1343 = vpack.c.b16 %v1221, %v1220
    %v1344 = vpack.c.b16 %v1223, %v1222
    %v1345 = vpack.c.b16 %v1225, %v1224
    %v1346 = vpack.c.b16 %v1227, %v1226
    %v1347 = vpack.c.b16 %v1229, %v1228
    %v1348 = vpack.c.b16 %v1231, %v1230
    %v1349 = vpack.c.b16 %v1233, %v1232
    %v1350 = vpack.c.b16 %v1235, %v1234
    %v1351 = vpack.c.b16 %v1237, %v1236
    %v1352 = vpack.c.b16 %v1239, %v1238
    %v1353 = vpack.c.b16 %v1241, %v1240
    %v1354 = vpack.c.b16 %v1243, %v1242
    %v1355 = vpack.c.b16 %v1245, %v1244
    %v1356 = vpack.c.b16 %v1247, %v1246
    %v1357 = vpack.c.b16 %v1249, %v1248
    %v1358 = vpack.c.b16 %v1251, %v1250
    %v1359 = vpack.c.b16 %v1253, %v1252
    %v1360 = vpack.c.b16 %v1255, %v1254
    %v1361 = vpack.c.b16 %v1257, %v1256
    %v1362 = vpack.c.b16 %v1259, %v1258
    %v1363 = vpack.c.b16 %v1261, %v1260
    %v1364 = vpack.c.b16 %v1263, %v1262
    %v1365 = vpack.c.b16 %v1265, %v1264
    %v1366 = vpack.c.b16 %v1267, %v1266
    %v1367 = vpack.c.b16 %v1269, %v1268
    %v1368 = vpack.c.b16 %v1271, %v1270
    %v1369 = vpack.c.b16 %v1273, %v1272
    %v1370 = vpack.c.b16 %v1275, %v1274
    %v1371 = vpack.c.b16 %v1277, %v1276
    %v1372 = vpack.c.b16 %v1279, %v1278
    %v1373 = vpack.c.b16 %v1281, %v1280
    %v1374 = vpack.c.b16 %v1283, %v1282
    %v1375 = vpack.c.b16 %v1285, %v1284
    %v1376 = vpack.c.b16 %v1287, %v1286
    %v1377 = vpack.c.b16 %v1289, %v1288
    %v1378 = vpack.c.b16 %v1291, %v1290
    %v1379 = vpack.c.b16 %v1293, %v1292
    %v1380 = vpack.c.b16 %v1295, %v1294
    %v1381 = vpack.c.b16 %v1297, %v1296
    %v1382 = vpack.c.b16 %v1299, %v1298
    %v1383 = vpack.c.b16 %v1301, %v1300
    %v1384 = vpack.c.b16 %v1303, %v1302
    %v1385 = vpack.c.b16 %v1305, %v1304
    %v1386 = vpack.c.b16 %v1307, %v1306
    %v1387 = vpack.c.b16 %v1309, %v1308
    %v1388 = vpack.c.b16 %v1311, %v1310
    %v1389 = vpack.c.b16 %v1313, %v1312
    %v1390 = vpack.c.b16 %v1315, %v1314
    %v1391 = vpack.c.b16 %v1317, %v1316
    %v1392 = vpack.c.b16 %v1319, %v1318
    %v1393 = vpack.c.b16 %v1321, %v1320
    %v1394 = vpack.c.b16 %v1323, %v1322
    %v1395 = vpack.c.b16 %v1325, %v1324
    %v1396 = vpack.c.b16 %v1327, %v1326
    %v1397 = vpack.c.b16 %v1329, %v1328
    %v1398 = vpack.c.b16 %v1331, %v1330
    %v1399 = vpack.c.b16 %v1333, %v1332
    %v1400 = vpack.c.b16 %v1335, %v1334
    %v1401 = vpack.c.b16 %v1337, %v1336
    %1466 = vmatprep.subr.bf16.mxu0 0
    %1467 = vmatpush1.bf16.msra.mxu0 %v1345
    %1468 = vmatprep.subr.bf16.mxu0 0
    %1469 = vmatpush1.bf16.msra.mxu0 %v1344
    %1470 = vmatprep.subr.bf16.mxu0 0
    %1471 = vmatpush1.bf16.msra.mxu0 %v1343
    %1472 = vmatprep.subr.bf16.mxu0 0
    %1473 = vmatpush1.bf16.msra.mxu0 %v1342
    %1474 = vmatprep.subr.bf16.mxu0 0
    %1475 = vmatpush1.bf16.msra.mxu0 %v1341
    %1476 = vmatprep.subr.bf16.mxu0 0
    %1477 = vmatpush1.bf16.msra.mxu0 %v1340
    %1478 = vmatprep.subr.bf16.mxu0 0
    %1479 = vmatpush1.bf16.msra.mxu0 %v1339
    %1480 = vmatprep.subr.bf16.mxu0 0
    %1481 = vmatpush1.bf16.msra.mxu0 %v1338
    %1482 = vmatprep.subr.bf16.mxu0 0
    %1483 = vmatpush2.bf16.msra.mxu0 %v1353
    %1484 = vmatprep.subr.bf16.mxu0 0
    %1485 = vmatpush2.bf16.msra.mxu0 %v1352
    %1486 = vmatprep.subr.bf16.mxu0 0
    %1487 = vmatpush2.bf16.msra.mxu0 %v1351
    %1488 = vmatprep.subr.bf16.mxu0 0
    %1489 = vmatpush2.bf16.msra.mxu0 %v1350
    %1490 = vmatprep.subr.bf16.mxu0 0
    %1491 = vmatpush2.bf16.msra.mxu0 %v1349
    %1492 = vmatprep.subr.bf16.mxu0 0
    %1493 = vmatpush2.bf16.msra.mxu0 %v1348
    %1494 = vmatprep.subr.bf16.mxu0 0
    %1495 = vmatpush2.bf16.msra.mxu0 %v1347
    %1496 = vmatprep.subr.bf16.mxu0 0
    %1497 = vmatpush2.bf16.msra.mxu0 %v1346
    %1498 = vmatprep.mubr.bf16.mxu0 %v1051
    %1499 = vmatmul.mubr.bf16.gmra.mxu0 %v1050
    %v1500 = vpop.f32.mrf.mxu0
    %v1501 = vadd.f32 0.0, %v1500
    %v1502 = vpop.f32.mrf.mxu0
    %v1503 = vpop.f32.mrf.mxu0
    %v1504 = vadd.f32 0.0, %v1503
    %v1505 = vpop.f32.mrf.mxu0
    %1506 = vmatprep.mubr.bf16.mxu0 %v1059
    %1507 = vmatmul.mubr.bf16.gmra.mxu0 %v1058
    %v1508 = vpop.f32.mrf.mxu0
    %v1509 = vadd.f32 0.0, %v1508
    %v1510 = vpop.f32.mrf.mxu0
    %v1511 = vpop.f32.mrf.mxu0
    %v1512 = vadd.f32 0.0, %v1511
    %v1513 = vpop.f32.mrf.mxu0
    %1514 = vdwg.mxu0
    %1515 = vmatprep.subr.bf16.mxu0 0
    %1516 = vmatpush1.bf16.msra.mxu0 %v1361
    %1517 = vmatprep.subr.bf16.mxu0 0
    %1518 = vmatpush1.bf16.msra.mxu0 %v1360
    %1519 = vmatprep.subr.bf16.mxu0 0
    %1520 = vmatpush1.bf16.msra.mxu0 %v1359
    %1521 = vmatprep.subr.bf16.mxu0 0
    %1522 = vmatpush1.bf16.msra.mxu0 %v1358
    %1523 = vmatprep.subr.bf16.mxu0 0
    %1524 = vmatpush1.bf16.msra.mxu0 %v1357
    %1525 = vmatprep.subr.bf16.mxu0 0
    %1526 = vmatpush1.bf16.msra.mxu0 %v1356
    %1527 = vmatprep.subr.bf16.mxu0 0
    %1528 = vmatpush1.bf16.msra.mxu0 %v1355
    %1529 = vmatprep.subr.bf16.mxu0 0
    %1530 = vmatpush1.bf16.msra.mxu0 %v1354
    %1531 = vmatprep.subr.bf16.mxu0 0
    %1532 = vmatpush2.bf16.msra.mxu0 %v1369
    %1533 = vmatprep.subr.bf16.mxu0 0
    %1534 = vmatpush2.bf16.msra.mxu0 %v1368
    %1535 = vmatprep.subr.bf16.mxu0 0
    %1536 = vmatpush2.bf16.msra.mxu0 %v1367
    %1537 = vmatprep.subr.bf16.mxu0 0
    %1538 = vmatpush2.bf16.msra.mxu0 %v1366
    %1539 = vmatprep.subr.bf16.mxu0 0
    %1540 = vmatpush2.bf16.msra.mxu0 %v1365
    %1541 = vmatprep.subr.bf16.mxu0 0
    %1542 = vmatpush2.bf16.msra.mxu0 %v1364
    %1543 = vmatprep.subr.bf16.mxu0 0
    %1544 = vmatpush2.bf16.msra.mxu0 %v1363
    %1545 = vmatprep.subr.bf16.mxu0 0
    %1546 = vmatpush2.bf16.msra.mxu0 %v1362
    %1547 = vmatprep.mubr.bf16.mxu0 %v1053
    %1548 = vmatmul.mubr.bf16.gmra.mxu0 %v1052
    %v1549 = vpop.f32.mrf.mxu0
    %v1550 = vadd.f32 %v1501, %v1549
    %v1551 = vpop.f32.mrf.mxu0
    %v1552 = vpop.f32.mrf.mxu0
    %v1553 = vadd.f32 %v1504, %v1552
    %v1554 = vpop.f32.mrf.mxu0
    %1555 = vmatprep.mubr.bf16.mxu0 %v1061
    %1556 = vmatmul.mubr.bf16.gmra.mxu0 %v1060
    %v1557 = vpop.f32.mrf.mxu0
    %v1558 = vadd.f32 %v1509, %v1557
    %v1559 = vpop.f32.mrf.mxu0
    %v1560 = vpop.f32.mrf.mxu0
    %v1561 = vadd.f32 %v1512, %v1560
    %v1562 = vpop.f32.mrf.mxu0
    %1563 = vdwg.mxu0
    %1564 = vmatprep.subr.bf16.mxu0 0
    %1565 = vmatpush1.bf16.msra.mxu0 %v1377
    %1566 = vmatprep.subr.bf16.mxu0 0
    %1567 = vmatpush1.bf16.msra.mxu0 %v1376
    %1568 = vmatprep.subr.bf16.mxu0 0
    %1569 = vmatpush1.bf16.msra.mxu0 %v1375
    %1570 = vmatprep.subr.bf16.mxu0 0
    %1571 = vmatpush1.bf16.msra.mxu0 %v1374
    %1572 = vmatprep.subr.bf16.mxu0 0
    %1573 = vmatpush1.bf16.msra.mxu0 %v1373
    %1574 = vmatprep.subr.bf16.mxu0 0
    %1575 = vmatpush1.bf16.msra.mxu0 %v1372
    %1576 = vmatprep.subr.bf16.mxu0 0
    %1577 = vmatpush1.bf16.msra.mxu0 %v1371
    %1578 = vmatprep.subr.bf16.mxu0 0
    %1579 = vmatpush1.bf16.msra.mxu0 %v1370
    %1580 = vmatprep.subr.bf16.mxu0 0
    %1581 = vmatpush2.bf16.msra.mxu0 %v1385
    %1582 = vmatprep.subr.bf16.mxu0 0
    %1583 = vmatpush2.bf16.msra.mxu0 %v1384
    %1584 = vmatprep.subr.bf16.mxu0 0
    %1585 = vmatpush2.bf16.msra.mxu0 %v1383
    %1586 = vmatprep.subr.bf16.mxu0 0
    %1587 = vmatpush2.bf16.msra.mxu0 %v1382
    %1588 = vmatprep.subr.bf16.mxu0 0
    %1589 = vmatpush2.bf16.msra.mxu0 %v1381
    %1590 = vmatprep.subr.bf16.mxu0 0
    %1591 = vmatpush2.bf16.msra.mxu0 %v1380
    %1592 = vmatprep.subr.bf16.mxu0 0
    %1593 = vmatpush2.bf16.msra.mxu0 %v1379
    %1594 = vmatprep.subr.bf16.mxu0 0
    %1595 = vmatpush2.bf16.msra.mxu0 %v1378
    %1596 = vmatprep.mubr.bf16.mxu0 %v1055
    %1597 = vmatmul.mubr.bf16.gmra.mxu0 %v1054
    %v1598 = vpop.f32.mrf.mxu0
    %v1599 = vadd.f32 %v1550, %v1598
    %v1600 = vpop.f32.mrf.mxu0
    %v1601 = vpop.f32.mrf.mxu0
    %v1602 = vadd.f32 %v1553, %v1601
    %v1603 = vpop.f32.mrf.mxu0
    %1604 = vmatprep.mubr.bf16.mxu0 %v1063
    %1605 = vmatmul.mubr.bf16.gmra.mxu0 %v1062
    %v1606 = vpop.f32.mrf.mxu0
    %v1607 = vadd.f32 %v1558, %v1606
    %v1608 = vpop.f32.mrf.mxu0
    %v1609 = vpop.f32.mrf.mxu0
    %v1610 = vadd.f32 %v1561, %v1609
    %v1611 = vpop.f32.mrf.mxu0
    %1612 = vdwg.mxu0
    %1613 = vmatprep.subr.bf16.mxu0 0
    %1614 = vmatpush1.bf16.msra.mxu0 %v1393
    %1615 = vmatprep.subr.bf16.mxu0 0
    %1616 = vmatpush1.bf16.msra.mxu0 %v1392
    %1617 = vmatprep.subr.bf16.mxu0 0
    %1618 = vmatpush1.bf16.msra.mxu0 %v1391
    %1619 = vmatprep.subr.bf16.mxu0 0
    %1620 = vmatpush1.bf16.msra.mxu0 %v1390
    %1621 = vmatprep.subr.bf16.mxu0 0
    %1622 = vmatpush1.bf16.msra.mxu0 %v1389
    %1623 = vmatprep.subr.bf16.mxu0 0
    %1624 = vmatpush1.bf16.msra.mxu0 %v1388
    %1625 = vmatprep.subr.bf16.mxu0 0
    %1626 = vmatpush1.bf16.msra.mxu0 %v1387
    %1627 = vmatprep.subr.bf16.mxu0 0
    %1628 = vmatpush1.bf16.msra.mxu0 %v1386
    %1629 = vmatprep.subr.bf16.mxu0 0
    %1630 = vmatpush2.bf16.msra.mxu0 %v1401
    %1631 = vmatprep.subr.bf16.mxu0 0
    %1632 = vmatpush2.bf16.msra.mxu0 %v1400
    %1633 = vmatprep.subr.bf16.mxu0 0
    %1634 = vmatpush2.bf16.msra.mxu0 %v1399
    %1635 = vmatprep.subr.bf16.mxu0 0
    %1636 = vmatpush2.bf16.msra.mxu0 %v1398
    %1637 = vmatprep.subr.bf16.mxu0 0
    %1638 = vmatpush2.bf16.msra.mxu0 %v1397
    %1639 = vmatprep.subr.bf16.mxu0 0
    %1640 = vmatpush2.bf16.msra.mxu0 %v1396
    %1641 = vmatprep.subr.bf16.mxu0 0
    %1642 = vmatpush2.bf16.msra.mxu0 %v1395
    %1643 = vmatprep.subr.bf16.mxu0 0
    %1644 = vmatpush2.bf16.msra.mxu0 %v1394
    %1645 = vmatprep.mubr.bf16.mxu0 %v1057
    %1646 = vmatmul.mubr.bf16.gmra.mxu0 %v1056
    %v1647 = vpop.f32.mrf.mxu0
    %v1648 = vadd.f32 %v1599, %v1647
    %v1649 = vpop.f32.mrf.mxu0
    %v1650 = vpop.f32.mrf.mxu0
    %v1651 = vadd.f32 %v1602, %v1650
    %v1652 = vpop.f32.mrf.mxu0
    %1653 = vmatprep.mubr.bf16.mxu0 %v1065
    %1654 = vmatmul.mubr.bf16.gmra.mxu0 %v1064
    %v1655 = vpop.f32.mrf.mxu0
    %v1656 = vadd.f32 %v1607, %v1655
    %v1657 = vpop.f32.mrf.mxu0
    %v1658 = vpop.f32.mrf.mxu0
    %v1659 = vadd.f32 %v1610, %v1658
    %v1660 = vpop.f32.mrf.mxu0
    %1661 = vdwg.mxu0
    %v1662 = vlaneseq
    %v1663 = vshrl.u32 %v1662, 7
    %v1664 = vadd.s32 %v1663, 8
    %v1665 = vld [vmem:[#allocation14] sm:$0x1]
    %v1666 = vlaneseq
    %v1667 = vshrl.u32 %v1666, 7
    %v1668 = vsub.s32 0, %v1667
    %v1669 = vrot.slane %v1665, %v1668
    %vm1670 = vcmp.eq.s32.totalorder %v1669, %v1663
    %vm1671 = vcmp.eq.s32.totalorder %v1669, %v1664
    %v1672 = vsel %vm1670, 1, 0
    %v1673 = vsel %vm1671, 1, 0
    %v1674 = vcvt.s32.f32 %v1672
    %v1675 = vcvt.s32.f32 %v1673
    %v1676 = vpack.c.bf16 %v1675, %v1674
    %v1677 = vld [vmem:[#allocation4] sm:$0xff]
    %v1678 = vld [vmem:[#allocation4 + $0x8] sm:$0xff]
    %v1679 = vpack.c.bf16 %v1651, %v1648
    %v1680 = vpack.c.bf16 %v1659, %v1656
    %vm1681 = vcmask 261120
    %v1683 = vsel %vm1681, %v1676, 0
    %1685 = vmatprep.subr.bf16.mxu0 0
    %1686 = vmatpush1.bf16.msra.mxu0 0
    %1687 = vmatprep.subr.bf16.mxu0 0
    %1688 = vmatpush1.bf16.msra.mxu0 0
    %1689 = vmatprep.subr.bf16.mxu0 0
    %1690 = vmatpush1.bf16.msra.mxu0 0
    %1691 = vmatprep.subr.bf16.mxu0 0
    %1692 = vmatpush1.bf16.msra.mxu0 0
    %1693 = vmatprep.subr.bf16.mxu0 0
    %1694 = vmatpush1.bf16.msra.mxu0 0
    %1695 = vmatprep.subr.bf16.mxu0 0
    %1696 = vmatpush1.bf16.msra.mxu0 0
    %1697 = vmatprep.subr.bf16.mxu0 0
    %1698 = vmatpush1.bf16.msra.mxu0 %v1680
    %1699 = vmatprep.subr.bf16.mxu0 0
    %1700 = vmatpush1.bf16.msra.mxu0 %v1679
    %1701 = vmatprep.subr.bf16.mxu0 0
    %1702 = vmatpush2.bf16.msra.mxu0 0
    %1703 = vmatprep.subr.bf16.mxu0 0
    %1704 = vmatpush2.bf16.msra.mxu0 0
    %1705 = vmatprep.subr.bf16.mxu0 0
    %1706 = vmatpush2.bf16.msra.mxu0 0
    %1707 = vmatprep.subr.bf16.mxu0 0
    %1708 = vmatpush2.bf16.msra.mxu0 0
    %1709 = vmatprep.subr.bf16.mxu0 0
    %1710 = vmatpush2.bf16.msra.mxu0 0
    %1711 = vmatprep.subr.bf16.mxu0 0
    %1712 = vmatpush2.bf16.msra.mxu0 0
    %1713 = vmatprep.subr.bf16.mxu0 0
    %1714 = vmatpush2.bf16.msra.mxu0 0
    %1715 = vmatprep.subr.bf16.mxu0 0
    %1716 = vmatpush2.bf16.msra.mxu0 0
    %1717 = vmatprep.mubr.bf16.mxu0 0
    %1718 = vmatmul.mubr.bf16.gmra.mxu0 %v1683
    %v1719 = vpop.f32.mrf.mxu0
    %v1720 = vadd.f32 0.0, %v1719
    %v1721 = vpop.f32.mrf.mxu0
    %v1722 = vpop.f32.mrf.mxu0
    %v1723 = vadd.f32 0.0, %v1722
    %v1724 = vpop.f32.mrf.mxu0
    %1725 = vdwg.mxu0
    %v1726 = vadd.f32 %v1677, %v1720
    %v1727 = vadd.f32 %v1678, %v1723
    %1728 = vst [vmem:[#allocation4] sm:$0xff] %v1726
    %1729 = vst [vmem:[#allocation4 + $0x8] sm:$0xff] %v1727
    // Predicated region
    $region109: #{tpu_custom_call.1} parent=1 // pred_check
      %p1730 = pneg %p177
    $region110: #{tpu_custom_call.1} parent=1 // pred_check_branch
      %1732 = sbr.rel (%p1730) target = $region112
    $region111: #{tpu_custom_call.1} parent=1 // pred_region
      %v1733 = vld [vmem:[#allocation2] sm:$0xff]
      %v1734 = vld [vmem:[#allocation2 + $0x8] sm:$0xff]
      %v1735 = vld [vmem:[#allocation4] sm:$0xff]
      %v1736 = vld [vmem:[#allocation4 + $0x8] sm:$0xff]
      %v1737 = vadd.f32 %v1733, %v1735
      %v1738 = vadd.f32 %v1734, %v1736
      %v1739 = vpack.c.bf16 %v1738, %v1737
      %v1740 = vld [vmem:[#allocation20] sm:$0xf]
      %v1741 = vld [vmem:[#allocation20 + $0x4] sm:$0xf]
      %v1742 = vld [vmem:[#allocation20 + $0x8] sm:$0xf]
      %v1743 = vld [vmem:[#allocation20 + $0xc] sm:$0xf]
      %v1744 = vld [vmem:[#allocation20 + $0x10] sm:$0xf]
      %v1745 = vld [vmem:[#allocation20 + $0x14] sm:$0xf]
      %v1746 = vld [vmem:[#allocation20 + $0x18] sm:$0xf]
      %v1747 = vld [vmem:[#allocation20 + $0x1c] sm:$0xf]
      %v1748 = vld [vmem:[#allocation20 + $0x20] sm:$0xf]
      %v1749 = vld [vmem:[#allocation20 + $0x24] sm:$0xf]
      %v1750 = vld [vmem:[#allocation20 + $0x28] sm:$0xf]
      %v1751 = vld [vmem:[#allocation20 + $0x2c] sm:$0xf]
      %v1752 = vld [vmem:[#allocation20 + $0x30] sm:$0xf]
      %v1753 = vld [vmem:[#allocation20 + $0x34] sm:$0xf]
      %v1754 = vld [vmem:[#allocation20 + $0x38] sm:$0xf]
      %v1755 = vld [vmem:[#allocation20 + $0x3c] sm:$0xf]
      %v1756 = vld [vmem:[#allocation21] sm:$0x1]
      %v1758 = vlaneseq
      %v1759 = vshrl.u32 %v1758, 7
      %v1760 = vsub.s32 0, %v1759
      %v1761 = vrot.slane %v1756, %v1760
      %v1779 = vunpack.c.l.b16 %v1740
      %v1780 = vunpack.c.l.b16 %v1741
      %v1781 = vunpack.c.l.b16 %v1742
      %v1782 = vunpack.c.l.b16 %v1743
      %v1783 = vunpack.c.l.b16 %v1744
      %v1784 = vunpack.c.l.b16 %v1745
      %v1785 = vunpack.c.l.b16 %v1746
      %v1786 = vunpack.c.l.b16 %v1747
      %v1787 = vunpack.c.l.b16 %v1748
      %v1788 = vunpack.c.l.b16 %v1749
      %v1789 = vunpack.c.l.b16 %v1750
      %v1790 = vunpack.c.l.b16 %v1751
      %v1791 = vunpack.c.l.b16 %v1752
      %v1792 = vunpack.c.l.b16 %v1753
      %v1793 = vunpack.c.l.b16 %v1754
      %v1794 = vunpack.c.l.b16 %v1755
      %v1795 = vpack.c.b16 %v1780, %v1779
      %v1796 = vpack.c.b16 %v1782, %v1781
      %v1797 = vpack.c.b16 %v1784, %v1783
      %v1798 = vpack.c.b16 %v1786, %v1785
      %v1799 = vpack.c.b16 %v1788, %v1787
      %v1800 = vpack.c.b16 %v1790, %v1789
      %v1801 = vpack.c.b16 %v1792, %v1791
      %v1802 = vpack.c.b16 %v1794, %v1793
      %1811 = vmatprep.subr.bf16.mxu0 0
      %1812 = vmatpush1.bf16.msra.mxu0 %v1802
      %1813 = vmatprep.subr.bf16.mxu0 0
      %1814 = vmatpush1.bf16.msra.mxu0 %v1801
      %1815 = vmatprep.subr.bf16.mxu0 0
      %1816 = vmatpush1.bf16.msra.mxu0 %v1800
      %1817 = vmatprep.subr.bf16.mxu0 0
      %1818 = vmatpush1.bf16.msra.mxu0 %v1799
      %1819 = vmatprep.subr.bf16.mxu0 0
      %1820 = vmatpush1.bf16.msra.mxu0 %v1798
      %1821 = vmatprep.subr.bf16.mxu0 0
      %1822 = vmatpush1.bf16.msra.mxu0 %v1797
      %1823 = vmatprep.subr.bf16.mxu0 0
      %1824 = vmatpush1.bf16.msra.mxu0 %v1796
      %1825 = vmatprep.subr.bf16.mxu0 0
      %1826 = vmatpush1.bf16.msra.mxu0 %v1795
      %1827 = vmatprep.subr.bf16.mxu0 0
      %1828 = vmatpush2.bf16.msra.mxu0 0
      %1829 = vmatprep.subr.bf16.mxu0 0
      %1830 = vmatpush2.bf16.msra.mxu0 0
      %1831 = vmatprep.subr.bf16.mxu0 0
      %1832 = vmatpush2.bf16.msra.mxu0 0
      %1833 = vmatprep.subr.bf16.mxu0 0
      %1834 = vmatpush2.bf16.msra.mxu0 0
      %1835 = vmatprep.subr.bf16.mxu0 0
      %1836 = vmatpush2.bf16.msra.mxu0 0
      %1837 = vmatprep.subr.bf16.mxu0 0
      %1838 = vmatpush2.bf16.msra.mxu0 0
      %1839 = vmatprep.subr.bf16.mxu0 0
      %1840 = vmatpush2.bf16.msra.mxu0 0
      %1841 = vmatprep.subr.bf16.mxu0 0
      %1842 = vmatpush2.bf16.msra.mxu0 0
      %1843 = vmatprep.mubr.bf16.mxu0 0
      %1844 = vmatmul.mubr.bf16.gmra.mxu0 %v1739
      %v1845 = vpop.f32.mrf.mxu0
      %v1846 = vadd.f32 %v1761, %v1845
      %v1847 = vpop.f32.mrf.mxu0
      %v1848 = vpop.f32.mrf.mxu0
      %v1849 = vadd.f32 %v1761, %v1848
      %v1850 = vpop.f32.mrf.mxu0
      %1851 = vdwg.mxu0
      %v1852 = vsub.f32 0.0, %v1846
      %v1853 = vsub.f32 0.0, %v1849
      %v1854 = vmul.f32 %v1852, 1.442695
      %v1855 = vpow.pop %v1854
      %v1856 = vmul.f32 %v1853, 1.442695
      %v1857 = vpow.pop %v1856
      %v1858 = vadd.f32 %v1855, 1.0
      %v1859 = vadd.f32 %v1857, 1.0
      %v1860 = vrcp.pop %v1858
      %v1861 = vrcp.pop %v1859
      %v1862 = vmul.f32 %v1846, %v1860
      %v1863 = vmul.f32 %v1849, %v1861
      %v1864 = vpack.c.bf16 %v1863, %v1862
      %s1865 = scalar_lea.vmem [#allocation20], 64
      %v1866 = vld [vmem:[%s1865] sm:$0xf]
      %v1867 = vld [vmem:[%s1865 + $0x4] sm:$0xf]
      %v1868 = vld [vmem:[%s1865 + $0x8] sm:$0xf]
      %v1869 = vld [vmem:[%s1865 + $0xc] sm:$0xf]
      %v1870 = vld [vmem:[%s1865 + $0x10] sm:$0xf]
      %v1871 = vld [vmem:[%s1865 + $0x14] sm:$0xf]
      %v1872 = vld [vmem:[%s1865 + $0x18] sm:$0xf]
      %v1873 = vld [vmem:[%s1865 + $0x1c] sm:$0xf]
      %v1874 = vld [vmem:[%s1865 + $0x20] sm:$0xf]
      %v1875 = vld [vmem:[%s1865 + $0x24] sm:$0xf]
      %v1876 = vld [vmem:[%s1865 + $0x28] sm:$0xf]
      %v1877 = vld [vmem:[%s1865 + $0x2c] sm:$0xf]
      %v1878 = vld [vmem:[%s1865 + $0x30] sm:$0xf]
      %v1879 = vld [vmem:[%s1865 + $0x34] sm:$0xf]
      %v1880 = vld [vmem:[%s1865 + $0x38] sm:$0xf]
      %v1881 = vld [vmem:[%s1865 + $0x3c] sm:$0xf]
      %s1882 = scalar_lea.vmem [#allocation21], 1
      %v1883 = vld [vmem:[%s1882] sm:$0x1]
      %v1885 = vlaneseq
      %v1886 = vshrl.u32 %v1885, 7
      %v1887 = vsub.s32 0, %v1886
      %v1888 = vrot.slane %v1883, %v1887
      %v1906 = vunpack.c.l.b16 %v1866
      %v1907 = vunpack.c.l.b16 %v1867
      %v1908 = vunpack.c.l.b16 %v1868
      %v1909 = vunpack.c.l.b16 %v1869
      %v1910 = vunpack.c.l.b16 %v1870
      %v1911 = vunpack.c.l.b16 %v1871
      %v1912 = vunpack.c.l.b16 %v1872
      %v1913 = vunpack.c.l.b16 %v1873
      %v1914 = vunpack.c.l.b16 %v1874
      %v1915 = vunpack.c.l.b16 %v1875
      %v1916 = vunpack.c.l.b16 %v1876
      %v1917 = vunpack.c.l.b16 %v1877
      %v1918 = vunpack.c.l.b16 %v1878
      %v1919 = vunpack.c.l.b16 %v1879
      %v1920 = vunpack.c.l.b16 %v1880
      %v1921 = vunpack.c.l.b16 %v1881
      %v1922 = vpack.c.b16 %v1907, %v1906
      %v1923 = vpack.c.b16 %v1909, %v1908
      %v1924 = vpack.c.b16 %v1911, %v1910
      %v1925 = vpack.c.b16 %v1913, %v1912
      %v1926 = vpack.c.b16 %v1915, %v1914
      %v1927 = vpack.c.b16 %v1917, %v1916
      %v1928 = vpack.c.b16 %v1919, %v1918
      %v1929 = vpack.c.b16 %v1921, %v1920
      %1938 = vmatprep.subr.bf16.mxu0 0
      %1939 = vmatpush1.bf16.msra.mxu0 %v1929
      %1940 = vmatprep.subr.bf16.mxu0 0
      %1941 = vmatpush1.bf16.msra.mxu0 %v1928
      %1942 = vmatprep.subr.bf16.mxu0 0
      %1943 = vmatpush1.bf16.msra.mxu0 %v1927
      %1944 = vmatprep.subr.bf16.mxu0 0
      %1945 = vmatpush1.bf16.msra.mxu0 %v1926
      %1946 = vmatprep.subr.bf16.mxu0 0
      %1947 = vmatpush1.bf16.msra.mxu0 %v1925
      %1948 = vmatprep.subr.bf16.mxu0 0
      %1949 = vmatpush1.bf16.msra.mxu0 %v1924
      %1950 = vmatprep.subr.bf16.mxu0 0
      %1951 = vmatpush1.bf16.msra.mxu0 %v1923
      %1952 = vmatprep.subr.bf16.mxu0 0
      %1953 = vmatpush1.bf16.msra.mxu0 %v1922
      %1954 = vmatprep.subr.bf16.mxu0 0
      %1955 = vmatpush2.bf16.msra.mxu0 0
      %1956 = vmatprep.subr.bf16.mxu0 0
      %1957 = vmatpush2.bf16.msra.mxu0 0
      %1958 = vmatprep.subr.bf16.mxu0 0
      %1959 = vmatpush2.bf16.msra.mxu0 0
      %1960 = vmatprep.subr.bf16.mxu0 0
      %1961 = vmatpush2.bf16.msra.mxu0 0
      %1962 = vmatprep.subr.bf16.mxu0 0
      %1963 = vmatpush2.bf16.msra.mxu0 0
      %1964 = vmatprep.subr.bf16.mxu0 0
      %1965 = vmatpush2.bf16.msra.mxu0 0
      %1966 = vmatprep.subr.bf16.mxu0 0
      %1967 = vmatpush2.bf16.msra.mxu0 0
      %1968 = vmatprep.subr.bf16.mxu0 0
      %1969 = vmatpush2.bf16.msra.mxu0 0
      %1970 = vmatprep.mubr.bf16.mxu0 0
      %1971 = vmatmul.mubr.bf16.gmra.mxu0 %v1864
      %v1972 = vpop.f32.mrf.mxu0
      %v1973 = vadd.f32 %v1888, %v1972
      %v1974 = vpop.f32.mrf.mxu0
      %v1975 = vpop.f32.mrf.mxu0
      %v1976 = vadd.f32 %v1888, %v1975
      %v1977 = vpop.f32.mrf.mxu0
      %1978 = vdwg.mxu0
      %v1979 = vsub.f32 0.0, %v1973
      %v1980 = vsub.f32 0.0, %v1976
      %v1981 = vmul.f32 %v1979, 1.442695
      %v1982 = vpow.pop %v1981
      %v1983 = vmul.f32 %v1980, 1.442695
      %v1984 = vpow.pop %v1983
      %v1985 = vadd.f32 %v1982, 1.0
      %v1986 = vadd.f32 %v1984, 1.0
      %v1987 = vrcp.pop %v1985
      %v1988 = vrcp.pop %v1986
      %v1989 = vmul.f32 %v1973, %v1987
      %v1990 = vmul.f32 %v1976, %v1988
      %v1991 = vadd.f32 %v1737, %v1989
      %v1992 = vadd.f32 %v1738, %v1990
      %v1993 = vpack.c.bf16 %v1992, %v1991
      %v1994 = vld [vmem:[%s12] sm:$0xf]
      %v1995 = vld [vmem:[%s12 + $0x4] sm:$0xf]
      %v1996 = vld [vmem:[%s12 + $0x8] sm:$0xf]
      %v1997 = vld [vmem:[%s12 + $0xc] sm:$0xf]
      %v1998 = vld [vmem:[%s12 + $0x10] sm:$0xf]
      %v1999 = vld [vmem:[%s12 + $0x14] sm:$0xf]
      %v2000 = vld [vmem:[%s12 + $0x18] sm:$0xf]
      %v2001 = vld [vmem:[%s12 + $0x1c] sm:$0xf]
      %v2002 = vld [vmem:[%s12 + $0x20] sm:$0xf]
      %v2003 = vld [vmem:[%s12 + $0x24] sm:$0xf]
      %v2004 = vld [vmem:[%s12 + $0x28] sm:$0xf]
      %v2005 = vld [vmem:[%s12 + $0x2c] sm:$0xf]
      %v2006 = vld [vmem:[%s12 + $0x30] sm:$0xf]
      %v2007 = vld [vmem:[%s12 + $0x34] sm:$0xf]
      %v2008 = vld [vmem:[%s12 + $0x38] sm:$0xf]
      %v2009 = vld [vmem:[%s12 + $0x3c] sm:$0xf]
      %v2010 = vld [vmem:[%s13] sm:$0x1]
      %v2012 = vlaneseq
      %v2013 = vshrl.u32 %v2012, 7
      %v2014 = vsub.s32 0, %v2013
      %v2015 = vrot.slane %v2010, %v2014
      %v2033 = vunpack.c.l.b16 %v1994
      %v2034 = vunpack.c.l.b16 %v1995
      %v2035 = vunpack.c.l.b16 %v1996
      %v2036 = vunpack.c.l.b16 %v1997
      %v2037 = vunpack.c.l.b16 %v1998
      %v2038 = vunpack.c.l.b16 %v1999
      %v2039 = vunpack.c.l.b16 %v2000
      %v2040 = vunpack.c.l.b16 %v2001
      %v2041 = vunpack.c.l.b16 %v2002
      %v2042 = vunpack.c.l.b16 %v2003
      %v2043 = vunpack.c.l.b16 %v2004
      %v2044 = vunpack.c.l.b16 %v2005
      %v2045 = vunpack.c.l.b16 %v2006
      %v2046 = vunpack.c.l.b16 %v2007
      %v2047 = vunpack.c.l.b16 %v2008
      %v2048 = vunpack.c.l.b16 %v2009
      %v2049 = vpack.c.b16 %v2034, %v2033
      %v2050 = vpack.c.b16 %v2036, %v2035
      %v2051 = vpack.c.b16 %v2038, %v2037
      %v2052 = vpack.c.b16 %v2040, %v2039
      %v2053 = vpack.c.b16 %v2042, %v2041
      %v2054 = vpack.c.b16 %v2044, %v2043
      %v2055 = vpack.c.b16 %v2046, %v2045
      %v2056 = vpack.c.b16 %v2048, %v2047
      %2065 = vmatprep.subr.bf16.mxu0 0
      %2066 = vmatpush1.bf16.msra.mxu0 %v2056
      %2067 = vmatprep.subr.bf16.mxu0 0
      %2068 = vmatpush1.bf16.msra.mxu0 %v2055
      %2069 = vmatprep.subr.bf16.mxu0 0
      %2070 = vmatpush1.bf16.msra.mxu0 %v2054
      %2071 = vmatprep.subr.bf16.mxu0 0
      %2072 = vmatpush1.bf16.msra.mxu0 %v2053
      %2073 = vmatprep.subr.bf16.mxu0 0
      %2074 = vmatpush1.bf16.msra.mxu0 %v2052
      %2075 = vmatprep.subr.bf16.mxu0 0
      %2076 = vmatpush1.bf16.msra.mxu0 %v2051
      %2077 = vmatprep.subr.bf16.mxu0 0
      %2078 = vmatpush1.bf16.msra.mxu0 %v2050
      %2079 = vmatprep.subr.bf16.mxu0 0
      %2080 = vmatpush1.bf16.msra.mxu0 %v2049
      %2081 = vmatprep.subr.bf16.mxu0 0
      %2082 = vmatpush2.bf16.msra.mxu0 0
      %2083 = vmatprep.subr.bf16.mxu0 0
      %2084 = vmatpush2.bf16.msra.mxu0 0
      %2085 = vmatprep.subr.bf16.mxu0 0
      %2086 = vmatpush2.bf16.msra.mxu0 0
      %2087 = vmatprep.subr.bf16.mxu0 0
      %2088 = vmatpush2.bf16.msra.mxu0 0
      %2089 = vmatprep.subr.bf16.mxu0 0
      %2090 = vmatpush2.bf16.msra.mxu0 0
      %2091 = vmatprep.subr.bf16.mxu0 0
      %2092 = vmatpush2.bf16.msra.mxu0 0
      %2093 = vmatprep.subr.bf16.mxu0 0
      %2094 = vmatpush2.bf16.msra.mxu0 0
      %2095 = vmatprep.subr.bf16.mxu0 0
      %2096 = vmatpush2.bf16.msra.mxu0 0
      %2097 = vmatprep.mubr.bf16.mxu0 0
      %2098 = vmatmul.mubr.bf16.gmra.mxu0 %v1993
      %v2099 = vpop.f32.mrf.mxu0
      %v2100 = vadd.f32 %v2015, %v2099
      %v2101 = vpop.f32.mrf.mxu0
      %v2102 = vpop.f32.mrf.mxu0
      %v2103 = vadd.f32 %v2015, %v2102
      %v2104 = vpop.f32.mrf.mxu0
      %2105 = vdwg.mxu0
      %v2106 = vsub.f32 0.0, %v2100
      %v2107 = vsub.f32 0.0, %v2103
      %v2108 = vmul.f32 %v2106, 1.442695
      %v2109 = vpow.pop %v2108
      %v2110 = vmul.f32 %v2107, 1.442695
      %v2111 = vpow.pop %v2110
      %v2112 = vadd.f32 %v2109, 1.0
      %v2113 = vadd.f32 %v2111, 1.0
      %v2114 = vrcp.pop %v2112
      %v2115 = vrcp.pop %v2113
      %v2116 = vmul.f32 %v2100, %v2114
      %v2117 = vmul.f32 %v2103, %v2115
      %v2118 = vld [vmem:[#allocation9] sm:$0xff]
      %v2119 = vld [vmem:[#allocation9 + $0x8] sm:$0xff]
      %v2120 = vadd.f32 %v2116, %v2118
      %v2121 = vadd.f32 %v2117, %v2119
      %v2122 = vpack.c.bf16 %v2121, %v2120
      %v2123 = vld [vmem:[#allocation23] sm:$0xf]
      %v2124 = vld [vmem:[#allocation23 + $0x4] sm:$0xf]
      %v2125 = vld [vmem:[#allocation23 + $0x8] sm:$0xf]
      %v2126 = vld [vmem:[#allocation23 + $0xc] sm:$0xf]
      %v2127 = vld [vmem:[#allocation23 + $0x10] sm:$0xf]
      %v2128 = vld [vmem:[#allocation23 + $0x14] sm:$0xf]
      %v2129 = vld [vmem:[#allocation23 + $0x18] sm:$0xf]
      %v2130 = vld [vmem:[#allocation23 + $0x1c] sm:$0xf]
      %v2131 = vld [vmem:[#allocation23 + $0x20] sm:$0xf]
      %v2132 = vld [vmem:[#allocation23 + $0x24] sm:$0xf]
      %v2133 = vld [vmem:[#allocation23 + $0x28] sm:$0xf]
      %v2134 = vld [vmem:[#allocation23 + $0x2c] sm:$0xf]
      %v2135 = vld [vmem:[#allocation23 + $0x30] sm:$0xf]
      %v2136 = vld [vmem:[#allocation23 + $0x34] sm:$0xf]
      %v2137 = vld [vmem:[#allocation23 + $0x38] sm:$0xf]
      %v2138 = vld [vmem:[#allocation23 + $0x3c] sm:$0xf]
      %v2139 = vld [vmem:[%s15] sm:$0x1]
      %v2141 = vlaneseq
      %v2142 = vshrl.u32 %v2141, 7
      %v2143 = vsub.s32 0, %v2142
      %v2144 = vrot.slane %v2139, %v2143
      %v2162 = vunpack.c.l.b16 %v2123
      %v2163 = vunpack.c.l.b16 %v2124
      %v2164 = vunpack.c.l.b16 %v2125
      %v2165 = vunpack.c.l.b16 %v2126
      %v2166 = vunpack.c.l.b16 %v2127
      %v2167 = vunpack.c.l.b16 %v2128
      %v2168 = vunpack.c.l.b16 %v2129
      %v2169 = vunpack.c.l.b16 %v2130
      %v2170 = vunpack.c.l.b16 %v2131
      %v2171 = vunpack.c.l.b16 %v2132
      %v2172 = vunpack.c.l.b16 %v2133
      %v2173 = vunpack.c.l.b16 %v2134
      %v2174 = vunpack.c.l.b16 %v2135
      %v2175 = vunpack.c.l.b16 %v2136
      %v2176 = vunpack.c.l.b16 %v2137
      %v2177 = vunpack.c.l.b16 %v2138
      %v2178 = vpack.c.b16 %v2163, %v2162
      %v2179 = vpack.c.b16 %v2165, %v2164
      %v2180 = vpack.c.b16 %v2167, %v2166
      %v2181 = vpack.c.b16 %v2169, %v2168
      %v2182 = vpack.c.b16 %v2171, %v2170
      %v2183 = vpack.c.b16 %v2173, %v2172
      %v2184 = vpack.c.b16 %v2175, %v2174
      %v2185 = vpack.c.b16 %v2177, %v2176
      %2194 = vmatprep.subr.bf16.mxu0 0
      %2195 = vmatpush1.bf16.msra.mxu0 %v2185
      %2196 = vmatprep.subr.bf16.mxu0 0
      %2197 = vmatpush1.bf16.msra.mxu0 %v2184
      %2198 = vmatprep.subr.bf16.mxu0 0
      %2199 = vmatpush1.bf16.msra.mxu0 %v2183
      %2200 = vmatprep.subr.bf16.mxu0 0
      %2201 = vmatpush1.bf16.msra.mxu0 %v2182
      %2202 = vmatprep.subr.bf16.mxu0 0
      %2203 = vmatpush1.bf16.msra.mxu0 %v2181
      %2204 = vmatprep.subr.bf16.mxu0 0
      %2205 = vmatpush1.bf16.msra.mxu0 %v2180
      %2206 = vmatprep.subr.bf16.mxu0 0
      %2207 = vmatpush1.bf16.msra.mxu0 %v2179
      %2208 = vmatprep.subr.bf16.mxu0 0
      %2209 = vmatpush1.bf16.msra.mxu0 %v2178
      %2210 = vmatprep.subr.bf16.mxu0 0
      %2211 = vmatpush2.bf16.msra.mxu0 0
      %2212 = vmatprep.subr.bf16.mxu0 0
      %2213 = vmatpush2.bf16.msra.mxu0 0
      %2214 = vmatprep.subr.bf16.mxu0 0
      %2215 = vmatpush2.bf16.msra.mxu0 0
      %2216 = vmatprep.subr.bf16.mxu0 0
      %2217 = vmatpush2.bf16.msra.mxu0 0
      %2218 = vmatprep.subr.bf16.mxu0 0
      %2219 = vmatpush2.bf16.msra.mxu0 0
      %2220 = vmatprep.subr.bf16.mxu0 0
      %2221 = vmatpush2.bf16.msra.mxu0 0
      %2222 = vmatprep.subr.bf16.mxu0 0
      %2223 = vmatpush2.bf16.msra.mxu0 0
      %2224 = vmatprep.subr.bf16.mxu0 0
      %2225 = vmatpush2.bf16.msra.mxu0 0
      %2226 = vmatprep.mubr.bf16.mxu0 0
      %2227 = vmatmul.mubr.bf16.gmra.mxu0 %v2122
      %v2228 = vpop.f32.mrf.mxu0
      %v2229 = vadd.f32 %v2144, %v2228
      %v2230 = vpop.f32.mrf.mxu0
      %v2231 = vpop.f32.mrf.mxu0
      %v2232 = vadd.f32 %v2144, %v2231
      %v2233 = vpop.f32.mrf.mxu0
      %2234 = vdwg.mxu0
      %v2235 = vsub.f32 0.0, %v2229
      %v2236 = vsub.f32 0.0, %v2232
      %v2237 = vmul.f32 %v2235, 1.442695
      %v2238 = vpow.pop %v2237
      %v2239 = vmul.f32 %v2236, 1.442695
      %v2240 = vpow.pop %v2239
      %v2241 = vadd.f32 %v2238, 1.0
      %v2242 = vadd.f32 %v2240, 1.0
      %v2243 = vrcp.pop %v2241
      %v2244 = vrcp.pop %v2242
      %v2245 = vmul.f32 %v2229, %v2243
      %v2246 = vmul.f32 %v2232, %v2244
      %v2247 = vpack.c.bf16 %v2246, %v2245
      %s2248 = scalar_lea.vmem [#allocation23], 64
      %v2249 = vld [vmem:[%s2248] sm:$0xf]
      %v2250 = vld [vmem:[%s2248 + $0x4] sm:$0xf]
      %v2251 = vld [vmem:[%s2248 + $0x8] sm:$0xf]
      %v2252 = vld [vmem:[%s2248 + $0xc] sm:$0xf]
      %v2253 = vld [vmem:[%s2248 + $0x10] sm:$0xf]
      %v2254 = vld [vmem:[%s2248 + $0x14] sm:$0xf]
      %v2255 = vld [vmem:[%s2248 + $0x18] sm:$0xf]
      %v2256 = vld [vmem:[%s2248 + $0x1c] sm:$0xf]
      %v2257 = vld [vmem:[%s2248 + $0x20] sm:$0xf]
      %v2258 = vld [vmem:[%s2248 + $0x24] sm:$0xf]
      %v2259 = vld [vmem:[%s2248 + $0x28] sm:$0xf]
      %v2260 = vld [vmem:[%s2248 + $0x2c] sm:$0xf]
      %v2261 = vld [vmem:[%s2248 + $0x30] sm:$0xf]
      %v2262 = vld [vmem:[%s2248 + $0x34] sm:$0xf]
      %v2263 = vld [vmem:[%s2248 + $0x38] sm:$0xf]
      %v2264 = vld [vmem:[%s2248 + $0x3c] sm:$0xf]
      %s2265 = scalar_lea.vmem %s15, 1
      %v2266 = vld [vmem:[%s2265] sm:$0x1]
      %v2268 = vlaneseq
      %v2269 = vshrl.u32 %v2268, 7
      %v2270 = vsub.s32 0, %v2269
      %v2271 = vrot.slane %v2266, %v2270
      %v2289 = vunpack.c.l.b16 %v2249
      %v2290 = vunpack.c.l.b16 %v2250
      %v2291 = vunpack.c.l.b16 %v2251
      %v2292 = vunpack.c.l.b16 %v2252
      %v2293 = vunpack.c.l.b16 %v2253
      %v2294 = vunpack.c.l.b16 %v2254
      %v2295 = vunpack.c.l.b16 %v2255
      %v2296 = vunpack.c.l.b16 %v2256
      %v2297 = vunpack.c.l.b16 %v2257
      %v2298 = vunpack.c.l.b16 %v2258
      %v2299 = vunpack.c.l.b16 %v2259
      %v2300 = vunpack.c.l.b16 %v2260
      %v2301 = vunpack.c.l.b16 %v2261
      %v2302 = vunpack.c.l.b16 %v2262
      %v2303 = vunpack.c.l.b16 %v2263
      %v2304 = vunpack.c.l.b16 %v2264
      %v2305 = vpack.c.b16 %v2290, %v2289
      %v2306 = vpack.c.b16 %v2292, %v2291
      %v2307 = vpack.c.b16 %v2294, %v2293
      %v2308 = vpack.c.b16 %v2296, %v2295
      %v2309 = vpack.c.b16 %v2298, %v2297
      %v2310 = vpack.c.b16 %v2300, %v2299
      %v2311 = vpack.c.b16 %v2302, %v2301
      %v2312 = vpack.c.b16 %v2304, %v2303
      %2321 = vmatprep.subr.bf16.mxu0 0
      %2322 = vmatpush1.bf16.msra.mxu0 %v2312
      %2323 = vmatprep.subr.bf16.mxu0 0
      %2324 = vmatpush1.bf16.msra.mxu0 %v2311
      %2325 = vmatprep.subr.bf16.mxu0 0
      %2326 = vmatpush1.bf16.msra.mxu0 %v2310
      %2327 = vmatprep.subr.bf16.mxu0 0
      %2328 = vmatpush1.bf16.msra.mxu0 %v2309
      %2329 = vmatprep.subr.bf16.mxu0 0
      %2330 = vmatpush1.bf16.msra.mxu0 %v2308
      %2331 = vmatprep.subr.bf16.mxu0 0
      %2332 = vmatpush1.bf16.msra.mxu0 %v2307
      %2333 = vmatprep.subr.bf16.mxu0 0
      %2334 = vmatpush1.bf16.msra.mxu0 %v2306
      %2335 = vmatprep.subr.bf16.mxu0 0
      %2336 = vmatpush1.bf16.msra.mxu0 %v2305
      %2337 = vmatprep.subr.bf16.mxu0 0
      %2338 = vmatpush2.bf16.msra.mxu0 0
      %2339 = vmatprep.subr.bf16.mxu0 0
      %2340 = vmatpush2.bf16.msra.mxu0 0
      %2341 = vmatprep.subr.bf16.mxu0 0
      %2342 = vmatpush2.bf16.msra.mxu0 0
      %2343 = vmatprep.subr.bf16.mxu0 0
      %2344 = vmatpush2.bf16.msra.mxu0 0
      %2345 = vmatprep.subr.bf16.mxu0 0
      %2346 = vmatpush2.bf16.msra.mxu0 0
      %2347 = vmatprep.subr.bf16.mxu0 0
      %2348 = vmatpush2.bf16.msra.mxu0 0
      %2349 = vmatprep.subr.bf16.mxu0 0
      %2350 = vmatpush2.bf16.msra.mxu0 0
      %2351 = vmatprep.subr.bf16.mxu0 0
      %2352 = vmatpush2.bf16.msra.mxu0 0
      %2353 = vmatprep.mubr.bf16.mxu0 0
      %2354 = vmatmul.mubr.bf16.gmra.mxu0 %v2247
      %v2355 = vpop.f32.mrf.mxu0
      %v2356 = vadd.f32 %v2271, %v2355
      %v2357 = vpop.f32.mrf.mxu0
      %v2358 = vpop.f32.mrf.mxu0
      %v2359 = vadd.f32 %v2271, %v2358
      %v2360 = vpop.f32.mrf.mxu0
      %2361 = vdwg.mxu0
      %v2362 = vsub.f32 0.0, %v2356
      %v2363 = vsub.f32 0.0, %v2359
      %v2364 = vmul.f32 %v2362, 1.442695
      %v2365 = vpow.pop %v2364
      %v2366 = vmul.f32 %v2363, 1.442695
      %v2367 = vpow.pop %v2366
      %v2368 = vadd.f32 %v2365, 1.0
      %v2369 = vadd.f32 %v2367, 1.0
      %v2370 = vrcp.pop %v2368
      %v2371 = vrcp.pop %v2369
      %v2372 = vmul.f32 %v2356, %v2370
      %v2373 = vmul.f32 %v2359, %v2371
      %v2374 = vadd.f32 %v2120, %v2372
      %v2375 = vadd.f32 %v2121, %v2373
      %v2376 = vpack.c.bf16 %v2375, %v2374
      %s2377 = scalar_lea.vmem [#allocation23], 128
      %v2378 = vld [vmem:[%s2377] sm:$0xf]
      %v2379 = vld [vmem:[%s2377 + $0x4] sm:$0xf]
      %v2380 = vld [vmem:[%s2377 + $0x8] sm:$0xf]
      %v2381 = vld [vmem:[%s2377 + $0xc] sm:$0xf]
      %v2382 = vld [vmem:[%s2377 + $0x10] sm:$0xf]
      %v2383 = vld [vmem:[%s2377 + $0x14] sm:$0xf]
      %v2384 = vld [vmem:[%s2377 + $0x18] sm:$0xf]
      %v2385 = vld [vmem:[%s2377 + $0x1c] sm:$0xf]
      %v2386 = vld [vmem:[%s2377 + $0x20] sm:$0xf]
      %v2387 = vld [vmem:[%s2377 + $0x24] sm:$0xf]
      %v2388 = vld [vmem:[%s2377 + $0x28] sm:$0xf]
      %v2389 = vld [vmem:[%s2377 + $0x2c] sm:$0xf]
      %v2390 = vld [vmem:[%s2377 + $0x30] sm:$0xf]
      %v2391 = vld [vmem:[%s2377 + $0x34] sm:$0xf]
      %v2392 = vld [vmem:[%s2377 + $0x38] sm:$0xf]
      %v2393 = vld [vmem:[%s2377 + $0x3c] sm:$0xf]
      %s2394 = scalar_lea.vmem %s15, 2
      %v2395 = vld [vmem:[%s2394] sm:$0x1]
      %v2397 = vlaneseq
      %v2398 = vshrl.u32 %v2397, 7
      %v2399 = vsub.s32 0, %v2398
      %v2400 = vrot.slane %v2395, %v2399
      %v2418 = vunpack.c.l.b16 %v2378
      %v2419 = vunpack.c.l.b16 %v2379
      %v2420 = vunpack.c.l.b16 %v2380
      %v2421 = vunpack.c.l.b16 %v2381
      %v2422 = vunpack.c.l.b16 %v2382
      %v2423 = vunpack.c.l.b16 %v2383
      %v2424 = vunpack.c.l.b16 %v2384
      %v2425 = vunpack.c.l.b16 %v2385
      %v2426 = vunpack.c.l.b16 %v2386
      %v2427 = vunpack.c.l.b16 %v2387
      %v2428 = vunpack.c.l.b16 %v2388
      %v2429 = vunpack.c.l.b16 %v2389
      %v2430 = vunpack.c.l.b16 %v2390
      %v2431 = vunpack.c.l.b16 %v2391
      %v2432 = vunpack.c.l.b16 %v2392
      %v2433 = vunpack.c.l.b16 %v2393
      %v2434 = vpack.c.b16 %v2419, %v2418
      %v2435 = vpack.c.b16 %v2421, %v2420
      %v2436 = vpack.c.b16 %v2423, %v2422
      %v2437 = vpack.c.b16 %v2425, %v2424
      %v2438 = vpack.c.b16 %v2427, %v2426
      %v2439 = vpack.c.b16 %v2429, %v2428
      %v2440 = vpack.c.b16 %v2431, %v2430
      %v2441 = vpack.c.b16 %v2433, %v2432
      %2450 = vmatprep.subr.bf16.mxu0 0
      %2451 = vmatpush1.bf16.msra.mxu0 %v2441
      %2452 = vmatprep.subr.bf16.mxu0 0
      %2453 = vmatpush1.bf16.msra.mxu0 %v2440
      %2454 = vmatprep.subr.bf16.mxu0 0
      %2455 = vmatpush1.bf16.msra.mxu0 %v2439
      %2456 = vmatprep.subr.bf16.mxu0 0
      %2457 = vmatpush1.bf16.msra.mxu0 %v2438
      %2458 = vmatprep.subr.bf16.mxu0 0
      %2459 = vmatpush1.bf16.msra.mxu0 %v2437
      %2460 = vmatprep.subr.bf16.mxu0 0
      %2461 = vmatpush1.bf16.msra.mxu0 %v2436
      %2462 = vmatprep.subr.bf16.mxu0 0
      %2463 = vmatpush1.bf16.msra.mxu0 %v2435
      %2464 = vmatprep.subr.bf16.mxu0 0
      %2465 = vmatpush1.bf16.msra.mxu0 %v2434
      %2466 = vmatprep.subr.bf16.mxu0 0
      %2467 = vmatpush2.bf16.msra.mxu0 0
      %2468 = vmatprep.subr.bf16.mxu0 0
      %2469 = vmatpush2.bf16.msra.mxu0 0
      %2470 = vmatprep.subr.bf16.mxu0 0
      %2471 = vmatpush2.bf16.msra.mxu0 0
      %2472 = vmatprep.subr.bf16.mxu0 0
      %2473 = vmatpush2.bf16.msra.mxu0 0
      %2474 = vmatprep.subr.bf16.mxu0 0
      %2475 = vmatpush2.bf16.msra.mxu0 0
      %2476 = vmatprep.subr.bf16.mxu0 0
      %2477 = vmatpush2.bf16.msra.mxu0 0
      %2478 = vmatprep.subr.bf16.mxu0 0
      %2479 = vmatpush2.bf16.msra.mxu0 0
      %2480 = vmatprep.subr.bf16.mxu0 0
      %2481 = vmatpush2.bf16.msra.mxu0 0
      %2482 = vmatprep.mubr.bf16.mxu0 0
      %2483 = vmatmul.mubr.bf16.gmra.mxu0 %v2376
      %v2484 = vpop.f32.mrf.mxu0
      %v2485 = vadd.f32 %v2400, %v2484
      %v2486 = vpop.f32.mrf.mxu0
      %v2487 = vpop.f32.mrf.mxu0
      %v2488 = vadd.f32 %v2400, %v2487
      %v2489 = vpop.f32.mrf.mxu0
      %2490 = vdwg.mxu0
      %v2491 = vsub.f32 0.0, %v2485
      %v2492 = vsub.f32 0.0, %v2488
      %v2493 = vmul.f32 %v2491, 1.442695
      %v2494 = vpow.pop %v2493
      %v2495 = vmul.f32 %v2492, 1.442695
      %v2496 = vpow.pop %v2495
      %v2497 = vadd.f32 %v2494, 1.0
      %v2498 = vadd.f32 %v2496, 1.0
      %v2499 = vrcp.pop %v2497
      %v2500 = vrcp.pop %v2498
      %v2501 = vmul.f32 %v2485, %v2499
      %v2502 = vmul.f32 %v2488, %v2500
      %v2503 = vpack.c.bf16 %v2502, %v2501
      %s2504 = scalar_lea.vmem [#allocation23], 192
      %v2505 = vld [vmem:[%s2504] sm:$0xf]
      %v2506 = vld [vmem:[%s2504 + $0x4] sm:$0xf]
      %v2507 = vld [vmem:[%s2504 + $0x8] sm:$0xf]
      %v2508 = vld [vmem:[%s2504 + $0xc] sm:$0xf]
      %v2509 = vld [vmem:[%s2504 + $0x10] sm:$0xf]
      %v2510 = vld [vmem:[%s2504 + $0x14] sm:$0xf]
      %v2511 = vld [vmem:[%s2504 + $0x18] sm:$0xf]
      %v2512 = vld [vmem:[%s2504 + $0x1c] sm:$0xf]
      %v2513 = vld [vmem:[%s2504 + $0x20] sm:$0xf]
      %v2514 = vld [vmem:[%s2504 + $0x24] sm:$0xf]
      %v2515 = vld [vmem:[%s2504 + $0x28] sm:$0xf]
      %v2516 = vld [vmem:[%s2504 + $0x2c] sm:$0xf]
      %v2517 = vld [vmem:[%s2504 + $0x30] sm:$0xf]
      %v2518 = vld [vmem:[%s2504 + $0x34] sm:$0xf]
      %v2519 = vld [vmem:[%s2504 + $0x38] sm:$0xf]
      %v2520 = vld [vmem:[%s2504 + $0x3c] sm:$0xf]
      %s2521 = scalar_lea.vmem %s15, 3
      %v2522 = vld [vmem:[%s2521] sm:$0x1]
      %v2524 = vlaneseq
      %v2525 = vshrl.u32 %v2524, 7
      %v2526 = vsub.s32 0, %v2525
      %v2527 = vrot.slane %v2522, %v2526
      %v2545 = vunpack.c.l.b16 %v2505
      %v2546 = vunpack.c.l.b16 %v2506
      %v2547 = vunpack.c.l.b16 %v2507
      %v2548 = vunpack.c.l.b16 %v2508
      %v2549 = vunpack.c.l.b16 %v2509
      %v2550 = vunpack.c.l.b16 %v2510
      %v2551 = vunpack.c.l.b16 %v2511
      %v2552 = vunpack.c.l.b16 %v2512
      %v2553 = vunpack.c.l.b16 %v2513
      %v2554 = vunpack.c.l.b16 %v2514
      %v2555 = vunpack.c.l.b16 %v2515
      %v2556 = vunpack.c.l.b16 %v2516
      %v2557 = vunpack.c.l.b16 %v2517
      %v2558 = vunpack.c.l.b16 %v2518
      %v2559 = vunpack.c.l.b16 %v2519
      %v2560 = vunpack.c.l.b16 %v2520
      %v2561 = vpack.c.b16 %v2546, %v2545
      %v2562 = vpack.c.b16 %v2548, %v2547
      %v2563 = vpack.c.b16 %v2550, %v2549
      %v2564 = vpack.c.b16 %v2552, %v2551
      %v2565 = vpack.c.b16 %v2554, %v2553
      %v2566 = vpack.c.b16 %v2556, %v2555
      %v2567 = vpack.c.b16 %v2558, %v2557
      %v2568 = vpack.c.b16 %v2560, %v2559
      %2577 = vmatprep.subr.bf16.mxu0 0
      %2578 = vmatpush1.bf16.msra.mxu0 %v2568
      %2579 = vmatprep.subr.bf16.mxu0 0
      %2580 = vmatpush1.bf16.msra.mxu0 %v2567
      %2581 = vmatprep.subr.bf16.mxu0 0
      %2582 = vmatpush1.bf16.msra.mxu0 %v2566
      %2583 = vmatprep.subr.bf16.mxu0 0
      %2584 = vmatpush1.bf16.msra.mxu0 %v2565
      %2585 = vmatprep.subr.bf16.mxu0 0
      %2586 = vmatpush1.bf16.msra.mxu0 %v2564
      %2587 = vmatprep.subr.bf16.mxu0 0
      %2588 = vmatpush1.bf16.msra.mxu0 %v2563
      %2589 = vmatprep.subr.bf16.mxu0 0
      %2590 = vmatpush1.bf16.msra.mxu0 %v2562
      %2591 = vmatprep.subr.bf16.mxu0 0
      %2592 = vmatpush1.bf16.msra.mxu0 %v2561
      %2593 = vmatprep.subr.bf16.mxu0 0
      %2594 = vmatpush2.bf16.msra.mxu0 0
      %2595 = vmatprep.subr.bf16.mxu0 0
      %2596 = vmatpush2.bf16.msra.mxu0 0
      %2597 = vmatprep.subr.bf16.mxu0 0
      %2598 = vmatpush2.bf16.msra.mxu0 0
      %2599 = vmatprep.subr.bf16.mxu0 0
      %2600 = vmatpush2.bf16.msra.mxu0 0
      %2601 = vmatprep.subr.bf16.mxu0 0
      %2602 = vmatpush2.bf16.msra.mxu0 0
      %2603 = vmatprep.subr.bf16.mxu0 0
      %2604 = vmatpush2.bf16.msra.mxu0 0
      %2605 = vmatprep.subr.bf16.mxu0 0
      %2606 = vmatpush2.bf16.msra.mxu0 0
      %2607 = vmatprep.subr.bf16.mxu0 0
      %2608 = vmatpush2.bf16.msra.mxu0 0
      %2609 = vmatprep.mubr.bf16.mxu0 0
      %2610 = vmatmul.mubr.bf16.gmra.mxu0 %v2503
      %v2611 = vpop.f32.mrf.mxu0
      %v2612 = vadd.f32 %v2527, %v2611
      %v2613 = vpop.f32.mrf.mxu0
      %v2614 = vpop.f32.mrf.mxu0
      %v2615 = vadd.f32 %v2527, %v2614
      %v2616 = vpop.f32.mrf.mxu0
      %2617 = vdwg.mxu0
      %v2618 = vsub.f32 0.0, %v2612
      %v2619 = vsub.f32 0.0, %v2615
      %v2620 = vmul.f32 %v2618, 1.442695
      %v2621 = vpow.pop %v2620
      %v2622 = vmul.f32 %v2619, 1.442695
      %v2623 = vpow.pop %v2622
      %v2624 = vadd.f32 %v2621, 1.0
      %v2625 = vadd.f32 %v2623, 1.0
      %v2626 = vrcp.pop %v2624
      %v2627 = vrcp.pop %v2625
      %v2628 = vmul.f32 %v2612, %v2626
      %v2629 = vmul.f32 %v2615, %v2627
      %v2630 = vadd.f32 %v2374, %v2628
      %v2631 = vadd.f32 %v2375, %v2629
      %2632 = vst [vmem:[#allocation24] sm:$0xff] %v2630
      %2633 = vst [vmem:[#allocation24 + $0x8] sm:$0xff] %v2631
    $region112: #{tpu_custom_call.1} parent=1 // pred_fallthru
      _
    // Predicated region
    $region113: #{tpu_custom_call.1} parent=1 // pred_check
      _
    $region114: #{tpu_custom_call.1} parent=1 // pred_check_branch
      %2635 = sbr.rel (0) target = $region116
    $region115: #{tpu_custom_call.1} parent=1 // pred_region
      %s2637 = ssub.s32 256, 256
      %2638 = vsyncadd [#allocation11], %s2637
      %s2639 = sshll.u32 [#allocation24], 4
      %s2640 = int_to_ptr.vmem [resolvable:$true] %s2639
      %2645 = dma.vmem_to_hbm [thread:$0]  %s2640, 256, %s16, [#allocation11], 128, 128, 8
    $region116: #{tpu_custom_call.1} parent=1 // pred_fallthru
      _
    // Predicated region
    $region117: #{tpu_custom_call.1} parent=1 // pred_check
      _
    $region118: #{tpu_custom_call.1} parent=1 // pred_check_branch
      %2647 = sbr.rel (0) target = $region120
    $region119: #{tpu_custom_call.1} parent=1 // pred_region
      %2648 = dma.done [#allocation11], 256
    $region120: #{tpu_custom_call.1} parent=1 // pred_fallthru
      _
    %2649 = vsyncpa [#allocation10], 1
    %2650 = vsyncpa [#allocation13], 1
    %2651 = vsyncpa [#allocation16], 1
    %2652 = vsyncpa [#allocation19], 1
    %2653 = vsyncpa [#allocation22], 1
    %2654 = vsyncpa [#allocation11], 1

</llo_original>
